<compile_context>
chip_gen: v7x
topology: tpu7x:2x2x1
jax: 0.10.0
libtpu: 0.0.40
codegen_flags: <defaults>
</compile_context>

<pallas_src>
import functools
import math

import numpy as np
import jax
import jax.numpy as jnp
from jax.experimental import pallas as pl
from jax.experimental.pallas import tpu as pltpu


# ----------------------------- shared math helpers ---------------------------

def _layer_norm(x, g, b, eps=1e-5):
    mu = jnp.mean(x, axis=-1, keepdims=True)
    var = jnp.mean(jnp.square(x - mu), axis=-1, keepdims=True)
    return (x - mu) * jax.lax.rsqrt(var + eps) * g + b


def _mm(x, w, b=None):
    """Kernel matmul: cast activation to the (bf16) weight dtype, accumulate f32."""
    out = jnp.dot(x.astype(w.dtype), w, preferred_element_type=jnp.float32)
    if b is not None:
        out = out + b
    return out


def _linear(x, w, b):
    """f32 reference linear."""
    return jnp.dot(x, w, preferred_element_type=jnp.float32) + b


def _gelu(x):
    # exact (erf-based) GELU, matching torch.nn.GELU() default
    return 0.5 * x * (1.0 + jax.lax.erf(x * (1.0 / math.sqrt(2.0))))


def _softmax_exact(x):
    m = jnp.max(x, axis=-1, keepdims=True)
    e = jnp.exp(x - m)
    return e / jnp.sum(e, axis=-1, keepdims=True)


# ----------------------------- Pallas kernel body ----------------------------

def _model_kernel(cfg, x_ref, *refs):
    bb, S, H, L = cfg
    (W_in, b_in, g_in, be_in,
     W_gc, b_gc, g_gc, be_gc,
     pe_ref,
     W_ta, b_ta, g_ta, be_ta,
     qkv_w, qkv_b, wo_w, wo_b, n1_g, n1_b,
     ff1_w, ff1_b, ff2_w, ff2_b, n2_g, n2_b,
     Wc1, bc1, gc1, bec1,
     Wc2, bc2, gc2, bec2,
     Wc3, bc3,
     o_ref) = refs

    x = x_ref[...]                                   # (bb, S, Din), f32
    Din = x.shape[-1]
    M = bb * S
    D = W_in.shape[-1]
    hd = D // H

    # ---- input projection + LayerNorm on the flattened (M, D) slab ----
    h = _layer_norm(_mm(x.reshape(M, Din), W_in[...], b_in[...]),
                    g_in[...], be_in[...])

    # ---- global context: per-sample mean over sequence -> Linear/LN/ReLU ----
    h3 = h.reshape(bb, S, D)
    gmean = jnp.mean(h3, axis=1)                                      # (bb, D)
    gctx = jax.nn.relu(_layer_norm(_mm(gmean, W_gc[...], b_gc[...]),
                                   g_gc[...], be_gc[...]))
    h3 = h3 + gctx[:, None, :] * 0.1

    # ---- positional encoding + time-aware projection (Linear/LN/GELU) ----
    h3 = h3 + pe_ref[...][None]                                       # (bb, S, D)
    h = _gelu(_layer_norm(_mm(h3.reshape(M, D), W_ta[...], b_ta[...]),
                          g_ta[...], be_ta[...]))

    # ---- transformer encoder layers (post-LN, ReLU feed-forward) ----
    def layer_body(l, h):
        # fused QKV projection (1/sqrt(hd) already folded into the Q columns)
        qkv = _mm(h, qkv_w[l], qkv_b[l])                  # (M, 3D), one MXU matmul
        qkv = qkv.astype(jnp.bfloat16).reshape(bb, S, 3 * D)
        wo_l = wo_w[l]                                    # (H, hd, D), bf16

        # per-head attention; the head merge is folded into the output projection
        # as H accumulating (M,hd)x(hd,D) matmuls -> no concatenates / relayouts.
        attn = jnp.zeros((M, D), jnp.float32)
        for hh in range(H):
            q = qkv[:, :, 0 * D + hh * hd:0 * D + (hh + 1) * hd]      # (bb,S,hd)
            k = qkv[:, :, 1 * D + hh * hd:1 * D + (hh + 1) * hd]
            v = qkv[:, :, 2 * D + hh * hd:2 * D + (hh + 1) * hd]
            sco = jnp.einsum('bsd,btd->bst', q, k,
                             preferred_element_type=jnp.float32)      # (bb,S,S)
            e = jnp.exp(sco - jnp.max(sco, axis=-1, keepdims=True))
            ctx = jnp.einsum('bst,btd->bsd', e.astype(jnp.bfloat16), v,
                             preferred_element_type=jnp.float32)      # (bb,S,hd)
            # normalize AFTER the PV matmul: hd-wide multiply instead of S-wide
            inv = pl.reciprocal(jnp.sum(e, axis=-1, keepdims=True), approx=True)
            ctx = (ctx * inv).reshape(M, hd)
            attn = attn + jnp.dot(ctx.astype(jnp.bfloat16), wo_l[hh],
                                  preferred_element_type=jnp.float32)
        attn = attn + wo_b[l]

        h = _layer_norm(h + attn, n1_g[l], n1_b[l])
        ff = _mm(jax.nn.relu(_mm(h, ff1_w[l], ff1_b[l])), ff2_w[l], ff2_b[l])
        return _layer_norm(h + ff, n2_g[l], n2_b[l])

    h = jax.lax.fori_loop(0, L, layer_body, h)

    # ---- pooling: mean over sequence + 0.5 * last step ----
    h3 = h.reshape(bb, S, D)
    pooled = jnp.mean(h3, axis=1) + h3[:, S - 1, :] * 0.5             # (bb, D)

    # ---- classifier MLP; last layer lane-padded to 128 outputs ----
    c = jax.nn.relu(_layer_norm(_mm(pooled, Wc1[...], bc1[...]), gc1[...], bec1[...]))
    c = jax.nn.relu(_layer_norm(_mm(c, Wc2[...], bc2[...]), gc2[...], bec2[...]))
    o_ref[...] = _mm(c, Wc3[...], bc3[...])                           # (bb, NC_pad)


# ----------------------------- wrapper ----------------------------------------

def _pick_batch_block(B, S, target_rows=256):
    """Largest divisor of B with bb*S <= ~target_rows (fills the MXU M dimension);
    falls back to the largest feasible divisor when S alone exceeds the target."""
    best = 1
    for cand in range(1, B + 1):
        if B % cand == 0 and cand * S <= max(target_rows, S):
            best = cand
    return best


def transformer_forward(x, packed_params, *, nhead, num_layers, num_classes,
                        batch_block=None):
    B, S, Din = x.shape
    if batch_block is None:
        batch_block = _pick_batch_block(B, S)
    assert B % batch_block == 0
    NCp = packed_params[-1].shape[-1]             # lane-padded classifier width
    grid = (B // batch_block,)

    kernel = functools.partial(
        _model_kernel, (batch_block, S, nhead, num_layers))

    def _resident(p):          # whole parameter resident in VMEM across the grid
        nd = p.ndim

        def idx(i):
            return (0,) * nd

        return pl.BlockSpec(p.shape, idx)

    in_specs = [pl.BlockSpec((batch_block, S, Din), lambda i: (i, 0, 0))]
    in_specs += [_resident(p) for p in packed_params]

    # VMEM budget: resident params (+pipeline copies) + activation/output blocks.
    footprint = sum(int(p.nbytes) for p in packed_params)
    footprint += batch_block * S * Din * 4 + batch_block * NCp * 4
    vmem_limit = int(min(64 * 2 ** 20, max(32 * 2 ** 20, 6 * footprint)))

    out = pl.pallas_call(
        kernel,
        out_shape=jax.ShapeDtypeStruct((B, NCp), jnp.float32),
        grid=grid,
        in_specs=in_specs,
        out_specs=pl.BlockSpec((batch_block, NCp), lambda i: (i, 0)),
        compiler_params=pltpu.CompilerParams(
            # TODO(synk): use pltpu.CORE_PARALLEL on v7x (2 TCs); plain "parallel"
            # is a no-op on single-TC v5e/v6e.
            dimension_semantics=("parallel",),
            vmem_limit_bytes=vmem_limit),
    )(x, *packed_params)
    return out[:, :num_classes]


# ----------------------------- parameter construction ------------------------

def init_params(key, input_dim, d_model, nhead, num_layers, dim_feedforward,
                num_classes, seq_len):
    """Raw (PyTorch-layout) parameters: separate Wq/Wk/Wv, unscaled.

    Weight matrices are snapped to bf16-representable values so the bf16-weight
    kernel and the f32 reference evaluate the same network.
    """
    ks = iter(jax.random.split(key, 64))
    params = []

    def lin(fan_in, fan_out):                 # xavier-uniform weight, zero bias
        limit = math.sqrt(6.0 / (fan_in + fan_out))
        w = jax.random.uniform(next(ks), (fan_in, fan_out), jnp.float32,
                               -limit, limit)
        params.append(w.astype(jnp.bfloat16).astype(jnp.float32))
        params.append(jnp.zeros((1, fan_out), jnp.float32))

    def ln(dim):                              # LayerNorm gamma=1, beta=0
        params.append(jnp.ones((1, dim), jnp.float32))
        params.append(jnp.zeros((1, dim), jnp.float32))

    lin(input_dim, d_model); ln(d_model)                 # input_proj, input_norm
    lin(d_model, d_model);  ln(d_model)                  # global_context

    # sinusoidal positional encoding (learnable param, sinusoidal init)
    pos = np.arange(seq_len, dtype=np.float32)[:, None]
    div = np.exp(np.arange(0, d_model, 2, dtype=np.float32)
                 * (-np.log(10000.0) / d_model))
    pe = np.zeros((seq_len, d_model), np.float32)
    pe[:, 0::2] = np.sin(pos * div)
    pe[:, 1::2] = np.cos(pos * div)
    params.append(jnp.asarray(pe))

    lin(d_model, d_model); ln(d_model)                   # time_aware_proj

    for _ in range(num_layers):                          # encoder layers
        lin(d_model, d_model)                            # Wq
        lin(d_model, d_model)                            # Wk
        lin(d_model, d_model)                            # Wv
        lin(d_model, d_model)                            # out_proj
        ln(d_model)                                      # norm1
        lin(d_model, dim_feedforward)                    # linear1
        lin(dim_feedforward, d_model)                    # linear2
        ln(d_model)                                      # norm2

    lin(d_model, 2 * d_model); ln(2 * d_model)           # classifier
    lin(2 * d_model, d_model); ln(d_model)
    lin(d_model, num_classes)
    return params


def pack_params(raw_params, *, nhead, num_layers):
    """Kernel-layout parameters:
      * weight matrices cast to bf16 (biases / LayerNorm params / PE stay f32),
      * Wq/Wk/Wv (+biases) fused into one (D, 3D) matmul, 1/sqrt(hd) folded into Q,
      * per-layer params stacked along a leading L axis,
      * out_proj reshaped to (H, hd, D) so the head merge folds into its matmul,
      * classifier output lane-padded to a multiple of 128.
    """
    H, L = nhead, num_layers
    it = iter(raw_params)
    nxt = lambda: next(it)
    w16 = lambda a: a.astype(jnp.bfloat16)

    packed = []
    packed += [w16(nxt()), nxt(), nxt(), nxt()]          # input_proj + input_norm
    packed += [w16(nxt()), nxt(), nxt(), nxt()]          # global_context
    packed.append(nxt())                                 # positional encoding (f32)
    packed += [w16(nxt()), nxt(), nxt(), nxt()]          # time_aware_proj

    stacks = [[] for _ in range(12)]
    (qkv_w, qkv_b, wo_w, wo_b, n1_g, n1_b,
     ff1_w, ff1_b, ff2_w, ff2_b, n2_g, n2_b) = stacks
    for _ in range(L):
        Wq, bq, Wk, bk, Wv, bv = (nxt() for _ in range(6))
        D = Wq.shape[0]
        hd = D // H
        scale = 1.0 / math.sqrt(hd)
        qkv_w.append(jnp.concatenate([Wq * scale, Wk, Wv], axis=1))
        qkv_b.append(jnp.concatenate([bq * scale, bk, bv], axis=1))
        Wo, bo = nxt(), nxt()
        wo_w.append(Wo.reshape(H, hd, D))
        wo_b.append(bo)
        n1_g.append(nxt()); n1_b.append(nxt())
        ff1_w.append(nxt()); ff1_b.append(nxt())
        ff2_w.append(nxt()); ff2_b.append(nxt())
        n2_g.append(nxt()); n2_b.append(nxt())
    bf16_stacks = {0, 2, 6, 8}                           # qkv_w, wo_w, ff1_w, ff2_w
    packed += [w16(jnp.stack(s)) if i in bf16_stacks else jnp.stack(s)
               for i, s in enumerate(stacks)]

    packed += [w16(nxt()), nxt(), nxt(), nxt()]          # classifier layer 1 + LN
    packed += [w16(nxt()), nxt(), nxt(), nxt()]          # classifier layer 2 + LN
    Wc3, bc3 = nxt(), nxt()
    NC = Wc3.shape[1]
    NCp = ((NC + 127) // 128) * 128                      # lane-dense output width
    Wc3p = jnp.zeros((Wc3.shape[0], NCp), jnp.float32).at[:, :NC].set(Wc3)
    bc3p = jnp.zeros((1, NCp), jnp.float32).at[:, :NC].set(bc3)
    packed += [w16(Wc3p), bc3p]
    return packed


# ----------------------------- pure-JAX reference (raw params) ----------------

def _reference_forward(cfg, x, params):
    B, S, H, L = cfg
    it = iter(params)
    nxt = lambda: next(it)

    W_in, b_in, g_in, be_in = nxt(), nxt(), nxt(), nxt()
    W_gc, b_gc, g_gc, be_gc = nxt(), nxt(), nxt(), nxt()
    pe = nxt()
    W_ta, b_ta, g_ta, be_ta = nxt(), nxt(), nxt(), nxt()
    layers = [tuple(nxt() for _ in range(16)) for _ in range(L)]
    Wc1, bc1, gc1, bec1 = nxt(), nxt(), nxt(), nxt()
    Wc2, bc2, gc2, bec2 = nxt(), nxt(), nxt(), nxt()
    Wc3, bc3 = nxt(), nxt()

    D = W_in.shape[1]
    hd = D // H
    scale = 1.0 / math.sqrt(hd)

    outs = []
    for bi in range(B):
        xb = x[bi]
        h = _layer_norm(_linear(xb, W_in, b_in), g_in, be_in)
        gmean = jnp.mean(h, axis=0, keepdims=True)
        gctx = jax.nn.relu(_layer_norm(_linear(gmean, W_gc, b_gc), g_gc, be_gc))
        h = h + gctx * 0.1
        h = h + pe
        h = _gelu(_layer_norm(_linear(h, W_ta, b_ta), g_ta, be_ta))

        for (Wq, bq, Wk, bk, Wv, bv, Wo, bo,
             gn1, bn1, W1, b1, W2, b2, gn2, bn2) in layers:
            q = _linear(h, Wq, bq)
            k = _linear(h, Wk, bk)
            v = _linear(h, Wv, bv)
            heads = []
            for hh in range(H):
                lo, hi = hh * hd, (hh + 1) * hd
                sco = jax.lax.dot_general(
                    q[:, lo:hi], k[:, lo:hi], (((1,), (1,)), ((), ())),
                    preferred_element_type=jnp.float32) * scale
                heads.append(jnp.dot(_softmax_exact(sco), v[:, lo:hi],
                                     preferred_element_type=jnp.float32))
            attn_out = _linear(jnp.concatenate(heads, axis=-1), Wo, bo)
            h = _layer_norm(h + attn_out, gn1, bn1)
            ff = _linear(jax.nn.relu(_linear(h, W1, b1)), W2, b2)
            h = _layer_norm(h + ff, gn2, bn2)

        pooled = jnp.mean(h, axis=0, keepdims=True) + h[S - 1:S, :] * 0.5
        c = jax.nn.relu(_layer_norm(_linear(pooled, Wc1, bc1), gc1, bec1))
        c = jax.nn.relu(_layer_norm(_linear(c, Wc2, bc2), gc2, bec2))
        outs.append(_linear(c, Wc3, bc3))
    return jnp.concatenate(outs, axis=0)


# ----------------------------- main -------------------------------------------

if __name__ == "__main__":
    B, S = 2, 8
    input_dim, d_model, nhead = 4, 32, 4
    num_layers, dim_feedforward, num_classes = 2, 64, 3

    key = jax.random.PRNGKey(0)
    kx, kp = jax.random.split(key)
    x = jax.random.normal(kx, (B, S, input_dim), jnp.float32)
    raw_params = init_params(kp, input_dim, d_model, nhead, num_layers,
                             dim_feedforward, num_classes, seq_len=S)
    params = pack_params(raw_params, nhead=nhead, num_layers=num_layers)

    out = transformer_forward(x, params, nhead=nhead, num_layers=num_layers,
                              num_classes=num_classes)
    out = jax.block_until_ready(out)

    # pure-JAX f32 reference with the original (unfused, unscaled) parameters
    ref = jax.jit(lambda xx, *pp: _reference_forward((B, S, nhead, num_layers),
                                                     xx, list(pp)))(x, *raw_params)
    ref = jax.block_until_ready(ref)

    assert out.shape == (B, num_classes)
    assert bool(jnp.all(jnp.isfinite(out)))
    # tolerance reflects the kernel's bf16 matmul inputs vs. the f32 reference
    assert bool(jnp.allclose(out, ref, rtol=2e-2, atol=2e-2)), (out, ref)
    print("KERNEL_OK")
</pallas_src>

<mosaic_0001>
module attributes {stable_mosaic.version = 11 : i64} {
  func.func @_model_kernel(%arg0: i32, %arg1: memref<2x8x4xf32, #tpu.memory_space<vmem>>, %arg2: memref<4x32xbf16, #tpu.memory_space<vmem>>, %arg3: memref<1x32xf32, #tpu.memory_space<vmem>>, %arg4: memref<1x32xf32, #tpu.memory_space<vmem>>, %arg5: memref<1x32xf32, #tpu.memory_space<vmem>>, %arg6: memref<32x32xbf16, #tpu.memory_space<vmem>>, %arg7: memref<1x32xf32, #tpu.memory_space<vmem>>, %arg8: memref<1x32xf32, #tpu.memory_space<vmem>>, %arg9: memref<1x32xf32, #tpu.memory_space<vmem>>, %arg10: memref<8x32xf32, #tpu.memory_space<vmem>>, %arg11: memref<32x32xbf16, #tpu.memory_space<vmem>>, %arg12: memref<1x32xf32, #tpu.memory_space<vmem>>, %arg13: memref<1x32xf32, #tpu.memory_space<vmem>>, %arg14: memref<1x32xf32, #tpu.memory_space<vmem>>, %arg15: memref<2x32x96xbf16, #tpu.memory_space<vmem>>, %arg16: memref<2x1x96xf32, #tpu.memory_space<vmem>>, %arg17: memref<2x4x8x32xbf16, #tpu.memory_space<vmem>>, %arg18: memref<2x1x32xf32, #tpu.memory_space<vmem>>, %arg19: memref<2x1x32xf32, #tpu.memory_space<vmem>>, %arg20: memref<2x1x32xf32, #tpu.memory_space<vmem>>, %arg21: memref<2x32x64xbf16, #tpu.memory_space<vmem>>, %arg22: memref<2x1x64xf32, #tpu.memory_space<vmem>>, %arg23: memref<2x64x32xbf16, #tpu.memory_space<vmem>>, %arg24: memref<2x1x32xf32, #tpu.memory_space<vmem>>, %arg25: memref<2x1x32xf32, #tpu.memory_space<vmem>>, %arg26: memref<2x1x32xf32, #tpu.memory_space<vmem>>, %arg27: memref<32x64xbf16, #tpu.memory_space<vmem>>, %arg28: memref<1x64xf32, #tpu.memory_space<vmem>>, %arg29: memref<1x64xf32, #tpu.memory_space<vmem>>, %arg30: memref<1x64xf32, #tpu.memory_space<vmem>>, %arg31: memref<64x32xbf16, #tpu.memory_space<vmem>>, %arg32: memref<1x32xf32, #tpu.memory_space<vmem>>, %arg33: memref<1x32xf32, #tpu.memory_space<vmem>>, %arg34: memref<1x32xf32, #tpu.memory_space<vmem>>, %arg35: memref<32x128xbf16, #tpu.memory_space<vmem>>, %arg36: memref<1x128xf32, #tpu.memory_space<vmem>>, %arg37: memref<2x128xf32, #tpu.memory_space<vmem>>) attributes {dimension_semantics = [#tpu.dimension_semantics<parallel>], iteration_bounds = array<i64: 1>, scalar_prefetch = 0 : i64, scratch_operands = 0 : i64, tpu.core_type = #tpu.core_type<tc>, window_params = [{transform_indices = @transform_0, window_bounds = array<i64: 2, 8, 4>}, {pipeline_mode = #tpu.pipeline_mode<synchronous>, transform_indices = @transform_1, window_bounds = array<i64: 4, 32>}, {pipeline_mode = #tpu.pipeline_mode<synchronous>, transform_indices = @transform_2, window_bounds = array<i64: 1, 32>}, {pipeline_mode = #tpu.pipeline_mode<synchronous>, transform_indices = @transform_3, window_bounds = array<i64: 1, 32>}, {pipeline_mode = #tpu.pipeline_mode<synchronous>, transform_indices = @transform_4, window_bounds = array<i64: 1, 32>}, {pipeline_mode = #tpu.pipeline_mode<synchronous>, transform_indices = @transform_5, window_bounds = array<i64: 32, 32>}, {pipeline_mode = #tpu.pipeline_mode<synchronous>, transform_indices = @transform_6, window_bounds = array<i64: 1, 32>}, {pipeline_mode = #tpu.pipeline_mode<synchronous>, transform_indices = @transform_7, window_bounds = array<i64: 1, 32>}, {pipeline_mode = #tpu.pipeline_mode<synchronous>, transform_indices = @transform_8, window_bounds = array<i64: 1, 32>}, {pipeline_mode = #tpu.pipeline_mode<synchronous>, transform_indices = @transform_9, window_bounds = array<i64: 8, 32>}, {pipeline_mode = #tpu.pipeline_mode<synchronous>, transform_indices = @transform_10, window_bounds = array<i64: 32, 32>}, {pipeline_mode = #tpu.pipeline_mode<synchronous>, transform_indices = @transform_11, window_bounds = array<i64: 1, 32>}, {pipeline_mode = #tpu.pipeline_mode<synchronous>, transform_indices = @transform_12, window_bounds = array<i64: 1, 32>}, {pipeline_mode = #tpu.pipeline_mode<synchronous>, transform_indices = @transform_13, window_bounds = array<i64: 1, 32>}, {pipeline_mode = #tpu.pipeline_mode<synchronous>, transform_indices = @transform_14, window_bounds = array<i64: 2, 32, 96>}, {pipeline_mode = #tpu.pipeline_mode<synchronous>, transform_indices = @transform_15, window_bounds = array<i64: 2, 1, 96>}, {pipeline_mode = #tpu.pipeline_mode<synchronous>, transform_indices = @transform_16, window_bounds = array<i64: 2, 4, 8, 32>}, {pipeline_mode = #tpu.pipeline_mode<synchronous>, transform_indices = @transform_17, window_bounds = array<i64: 2, 1, 32>}, {pipeline_mode = #tpu.pipeline_mode<synchronous>, transform_indices = @transform_18, window_bounds = array<i64: 2, 1, 32>}, {pipeline_mode = #tpu.pipeline_mode<synchronous>, transform_indices = @transform_19, window_bounds = array<i64: 2, 1, 32>}, {pipeline_mode = #tpu.pipeline_mode<synchronous>, transform_indices = @transform_20, window_bounds = array<i64: 2, 32, 64>}, {pipeline_mode = #tpu.pipeline_mode<synchronous>, transform_indices = @transform_21, window_bounds = array<i64: 2, 1, 64>}, {pipeline_mode = #tpu.pipeline_mode<synchronous>, transform_indices = @transform_22, window_bounds = array<i64: 2, 64, 32>}, {pipeline_mode = #tpu.pipeline_mode<synchronous>, transform_indices = @transform_23, window_bounds = array<i64: 2, 1, 32>}, {pipeline_mode = #tpu.pipeline_mode<synchronous>, transform_indices = @transform_24, window_bounds = array<i64: 2, 1, 32>}, {pipeline_mode = #tpu.pipeline_mode<synchronous>, transform_indices = @transform_25, window_bounds = array<i64: 2, 1, 32>}, {pipeline_mode = #tpu.pipeline_mode<synchronous>, transform_indices = @transform_26, window_bounds = array<i64: 32, 64>}, {pipeline_mode = #tpu.pipeline_mode<synchronous>, transform_indices = @transform_27, window_bounds = array<i64: 1, 64>}, {pipeline_mode = #tpu.pipeline_mode<synchronous>, transform_indices = @transform_28, window_bounds = array<i64: 1, 64>}, {pipeline_mode = #tpu.pipeline_mode<synchronous>, transform_indices = @transform_29, window_bounds = array<i64: 1, 64>}, {pipeline_mode = #tpu.pipeline_mode<synchronous>, transform_indices = @transform_30, window_bounds = array<i64: 64, 32>}, {pipeline_mode = #tpu.pipeline_mode<synchronous>, transform_indices = @transform_31, window_bounds = array<i64: 1, 32>}, {pipeline_mode = #tpu.pipeline_mode<synchronous>, transform_indices = @transform_32, window_bounds = array<i64: 1, 32>}, {pipeline_mode = #tpu.pipeline_mode<synchronous>, transform_indices = @transform_33, window_bounds = array<i64: 1, 32>}, {pipeline_mode = #tpu.pipeline_mode<synchronous>, transform_indices = @transform_34, window_bounds = array<i64: 32, 128>}, {pipeline_mode = #tpu.pipeline_mode<synchronous>, transform_indices = @transform_35, window_bounds = array<i64: 1, 128>}, {transform_indices = @transform_36, window_bounds = array<i64: 2, 128>}]} {
    %c0 = arith.constant 0 : index
    %c0_0 = arith.constant 0 : index
    %c0_1 = arith.constant 0 : index
    %0 = vector.load %arg1[%c0, %c0_0, %c0_1] : memref<2x8x4xf32, #tpu.memory_space<vmem>>, vector<2x8x4xf32>
    %1 = vector.shape_cast %0 : vector<2x8x4xf32> to vector<16x4xf32>
    %c0_2 = arith.constant 0 : index
    %c0_3 = arith.constant 0 : index
    %2 = vector.load %arg2[%c0_2, %c0_3] : memref<4x32xbf16, #tpu.memory_space<vmem>>, vector<4x32xbf16>
    %c0_4 = arith.constant 0 : index
    %c0_5 = arith.constant 0 : index
    %3 = vector.load %arg3[%c0_4, %c0_5] : memref<1x32xf32, #tpu.memory_space<vmem>>, vector<1x32xf32>
    %4 = arith.truncf %1 : vector<16x4xf32> to vector<16x4xbf16>
    %cst = arith.constant dense<0.000000e+00> : vector<16x32xf32>
    %5 = tpu.matmul %4, %2, %cst {dimension_numbers = #tpu.dot_dimension_numbers<[1], [0], [0], [1], [0, 0, 1, 1], [], []>} : vector<16x4xbf16>, vector<4x32xbf16>, vector<16x32xf32> -> vector<16x32xf32>
    %6 = vector.broadcast %3 : vector<1x32xf32> to vector<16x32xf32>
    %7 = arith.addf %5, %6 : vector<16x32xf32>
    %c0_6 = arith.constant 0 : index
    %c0_7 = arith.constant 0 : index
    %8 = vector.load %arg4[%c0_6, %c0_7] : memref<1x32xf32, #tpu.memory_space<vmem>>, vector<1x32xf32>
    %c0_8 = arith.constant 0 : index
    %c0_9 = arith.constant 0 : index
    %9 = vector.load %arg5[%c0_8, %c0_9] : memref<1x32xf32, #tpu.memory_space<vmem>>, vector<1x32xf32>
    %cst_10 = arith.constant dense<0.000000e+00> : vector<16xf32>
    %10 = vector.multi_reduction <add>, %7, %cst_10 [1] : vector<16x32xf32> to vector<16xf32>
    %11 = vector.shape_cast %10 : vector<16xf32> to vector<16x1xf32>
    %cst_11 = arith.constant 3.200000e+01 : f32
    %12 = vector.broadcast %cst_11 : f32 to vector<16x1xf32>
    %13 = arith.divf %11, %12 : vector<16x1xf32>
    %14 = vector.broadcast %13 : vector<16x1xf32> to vector<16x32xf32>
    %15 = arith.subf %7, %14 : vector<16x32xf32>
    %16 = arith.mulf %15, %15 : vector<16x32xf32>
    %cst_12 = arith.constant dense<0.000000e+00> : vector<16xf32>
    %17 = vector.multi_reduction <add>, %16, %cst_12 [1] : vector<16x32xf32> to vector<16xf32>
    %18 = vector.shape_cast %17 : vector<16xf32> to vector<16x1xf32>
    %cst_13 = arith.constant 3.200000e+01 : f32
    %19 = vector.broadcast %cst_13 : f32 to vector<16x1xf32>
    %20 = arith.divf %18, %19 : vector<16x1xf32>
    %21 = vector.broadcast %13 : vector<16x1xf32> to vector<16x32xf32>
    %22 = arith.subf %7, %21 : vector<16x32xf32>
    %cst_14 = arith.constant 9.99999974E-6 : f32
    %23 = vector.broadcast %cst_14 : f32 to vector<16x1xf32>
    %24 = arith.addf %20, %23 : vector<16x1xf32>
    %25 = math.rsqrt %24 : vector<16x1xf32>
    %26 = vector.broadcast %25 : vector<16x1xf32> to vector<16x32xf32>
    %27 = arith.mulf %22, %26 : vector<16x32xf32>
    %28 = vector.broadcast %8 : vector<1x32xf32> to vector<16x32xf32>
    %29 = arith.mulf %27, %28 : vector<16x32xf32>
    %30 = vector.broadcast %9 : vector<1x32xf32> to vector<16x32xf32>
    %31 = arith.addf %29, %30 : vector<16x32xf32>
    %32 = vector.shape_cast %31 : vector<16x32xf32> to vector<2x8x32xf32>
    %cst_15 = arith.constant dense<0.000000e+00> : vector<2x32xf32>
    %33 = vector.multi_reduction <add>, %32, %cst_15 [1] : vector<2x8x32xf32> to vector<2x32xf32>
    %cst_16 = arith.constant 8.000000e+00 : f32
    %34 = vector.broadcast %cst_16 : f32 to vector<2x32xf32>
    %35 = arith.divf %33, %34 : vector<2x32xf32>
    %c0_17 = arith.constant 0 : index
    %c0_18 = arith.constant 0 : index
    %36 = vector.load %arg6[%c0_17, %c0_18] : memref<32x32xbf16, #tpu.memory_space<vmem>>, vector<32x32xbf16>
    %c0_19 = arith.constant 0 : index
    %c0_20 = arith.constant 0 : index
    %37 = vector.load %arg7[%c0_19, %c0_20] : memref<1x32xf32, #tpu.memory_space<vmem>>, vector<1x32xf32>
    %38 = arith.truncf %35 : vector<2x32xf32> to vector<2x32xbf16>
    %cst_21 = arith.constant dense<0.000000e+00> : vector<2x32xf32>
    %39 = tpu.matmul %38, %36, %cst_21 {dimension_numbers = #tpu.dot_dimension_numbers<[1], [0], [0], [1], [0, 0, 1, 1], [], []>} : vector<2x32xbf16>, vector<32x32xbf16>, vector<2x32xf32> -> vector<2x32xf32>
    %40 = vector.broadcast %37 : vector<1x32xf32> to vector<2x32xf32>
    %41 = arith.addf %39, %40 : vector<2x32xf32>
    %c0_22 = arith.constant 0 : index
    %c0_23 = arith.constant 0 : index
    %42 = vector.load %arg8[%c0_22, %c0_23] : memref<1x32xf32, #tpu.memory_space<vmem>>, vector<1x32xf32>
    %c0_24 = arith.constant 0 : index
    %c0_25 = arith.constant 0 : index
    %43 = vector.load %arg9[%c0_24, %c0_25] : memref<1x32xf32, #tpu.memory_space<vmem>>, vector<1x32xf32>
    %cst_26 = arith.constant dense<0.000000e+00> : vector<2xf32>
    %44 = vector.multi_reduction <add>, %41, %cst_26 [1] : vector<2x32xf32> to vector<2xf32>
    %45 = vector.shape_cast %44 : vector<2xf32> to vector<2x1xf32>
    %cst_27 = arith.constant 3.200000e+01 : f32
    %46 = vector.broadcast %cst_27 : f32 to vector<2x1xf32>
    %47 = arith.divf %45, %46 : vector<2x1xf32>
    %48 = vector.broadcast %47 : vector<2x1xf32> to vector<2x32xf32>
    %49 = arith.subf %41, %48 : vector<2x32xf32>
    %50 = arith.mulf %49, %49 : vector<2x32xf32>
    %cst_28 = arith.constant dense<0.000000e+00> : vector<2xf32>
    %51 = vector.multi_reduction <add>, %50, %cst_28 [1] : vector<2x32xf32> to vector<2xf32>
    %52 = vector.shape_cast %51 : vector<2xf32> to vector<2x1xf32>
    %cst_29 = arith.constant 3.200000e+01 : f32
    %53 = vector.broadcast %cst_29 : f32 to vector<2x1xf32>
    %54 = arith.divf %52, %53 : vector<2x1xf32>
    %55 = vector.broadcast %47 : vector<2x1xf32> to vector<2x32xf32>
    %56 = arith.subf %41, %55 : vector<2x32xf32>
    %cst_30 = arith.constant 9.99999974E-6 : f32
    %57 = vector.broadcast %cst_30 : f32 to vector<2x1xf32>
    %58 = arith.addf %54, %57 : vector<2x1xf32>
    %59 = math.rsqrt %58 : vector<2x1xf32>
    %60 = vector.broadcast %59 : vector<2x1xf32> to vector<2x32xf32>
    %61 = arith.mulf %56, %60 : vector<2x32xf32>
    %62 = vector.broadcast %42 : vector<1x32xf32> to vector<2x32xf32>
    %63 = arith.mulf %61, %62 : vector<2x32xf32>
    %64 = vector.broadcast %43 : vector<1x32xf32> to vector<2x32xf32>
    %65 = arith.addf %63, %64 : vector<2x32xf32>
    %cst_31 = arith.constant 0.000000e+00 : f32
    %66 = vector.broadcast %cst_31 : f32 to vector<2x32xf32>
    %67 = arith.maximumf %65, %66 : vector<2x32xf32>
    %68 = vector.shape_cast %67 : vector<2x32xf32> to vector<2x1x32xf32>
    %cst_32 = arith.constant 1.000000e-01 : f32
    %69 = vector.broadcast %cst_32 : f32 to vector<2x1x32xf32>
    %70 = arith.mulf %68, %69 : vector<2x1x32xf32>
    %71 = vector.broadcast %70 : vector<2x1x32xf32> to vector<2x8x32xf32>
    %72 = arith.addf %32, %71 : vector<2x8x32xf32>
    %c0_33 = arith.constant 0 : index
    %c0_34 = arith.constant 0 : index
    %73 = vector.load %arg10[%c0_33, %c0_34] : memref<8x32xf32, #tpu.memory_space<vmem>>, vector<8x32xf32>
    %74 = vector.shape_cast %73 : vector<8x32xf32> to vector<1x8x32xf32>
    %75 = vector.broadcast %74 : vector<1x8x32xf32> to vector<2x8x32xf32>
    %76 = arith.addf %72, %75 : vector<2x8x32xf32>
    %77 = vector.shape_cast %76 : vector<2x8x32xf32> to vector<16x32xf32>
    %c0_35 = arith.constant 0 : index
    %c0_36 = arith.constant 0 : index
    %78 = vector.load %arg11[%c0_35, %c0_36] : memref<32x32xbf16, #tpu.memory_space<vmem>>, vector<32x32xbf16>
    %c0_37 = arith.constant 0 : index
    %c0_38 = arith.constant 0 : index
    %79 = vector.load %arg12[%c0_37, %c0_38] : memref<1x32xf32, #tpu.memory_space<vmem>>, vector<1x32xf32>
    %80 = arith.truncf %77 : vector<16x32xf32> to vector<16x32xbf16>
    %cst_39 = arith.constant dense<0.000000e+00> : vector<16x32xf32>
    %81 = tpu.matmul %80, %78, %cst_39 {dimension_numbers = #tpu.dot_dimension_numbers<[1], [0], [0], [1], [0, 0, 1, 1], [], []>} : vector<16x32xbf16>, vector<32x32xbf16>, vector<16x32xf32> -> vector<16x32xf32>
    %82 = vector.broadcast %79 : vector<1x32xf32> to vector<16x32xf32>
    %83 = arith.addf %81, %82 : vector<16x32xf32>
    %c0_40 = arith.constant 0 : index
    %c0_41 = arith.constant 0 : index
    %84 = vector.load %arg13[%c0_40, %c0_41] : memref<1x32xf32, #tpu.memory_space<vmem>>, vector<1x32xf32>
    %c0_42 = arith.constant 0 : index
    %c0_43 = arith.constant 0 : index
    %85 = vector.load %arg14[%c0_42, %c0_43] : memref<1x32xf32, #tpu.memory_space<vmem>>, vector<1x32xf32>
    %cst_44 = arith.constant dense<0.000000e+00> : vector<16xf32>
    %86 = vector.multi_reduction <add>, %83, %cst_44 [1] : vector<16x32xf32> to vector<16xf32>
    %87 = vector.shape_cast %86 : vector<16xf32> to vector<16x1xf32>
    %cst_45 = arith.constant 3.200000e+01 : f32
    %88 = vector.broadcast %cst_45 : f32 to vector<16x1xf32>
    %89 = arith.divf %87, %88 : vector<16x1xf32>
    %90 = vector.broadcast %89 : vector<16x1xf32> to vector<16x32xf32>
    %91 = arith.subf %83, %90 : vector<16x32xf32>
    %92 = arith.mulf %91, %91 : vector<16x32xf32>
    %cst_46 = arith.constant dense<0.000000e+00> : vector<16xf32>
    %93 = vector.multi_reduction <add>, %92, %cst_46 [1] : vector<16x32xf32> to vector<16xf32>
    %94 = vector.shape_cast %93 : vector<16xf32> to vector<16x1xf32>
    %cst_47 = arith.constant 3.200000e+01 : f32
    %95 = vector.broadcast %cst_47 : f32 to vector<16x1xf32>
    %96 = arith.divf %94, %95 : vector<16x1xf32>
    %97 = vector.broadcast %89 : vector<16x1xf32> to vector<16x32xf32>
    %98 = arith.subf %83, %97 : vector<16x32xf32>
    %cst_48 = arith.constant 9.99999974E-6 : f32
    %99 = vector.broadcast %cst_48 : f32 to vector<16x1xf32>
    %100 = arith.addf %96, %99 : vector<16x1xf32>
    %101 = math.rsqrt %100 : vector<16x1xf32>
    %102 = vector.broadcast %101 : vector<16x1xf32> to vector<16x32xf32>
    %103 = arith.mulf %98, %102 : vector<16x32xf32>
    %104 = vector.broadcast %84 : vector<1x32xf32> to vector<16x32xf32>
    %105 = arith.mulf %103, %104 : vector<16x32xf32>
    %106 = vector.broadcast %85 : vector<1x32xf32> to vector<16x32xf32>
    %107 = arith.addf %105, %106 : vector<16x32xf32>
    %cst_49 = arith.constant 5.000000e-01 : f32
    %108 = vector.broadcast %cst_49 : f32 to vector<16x32xf32>
    %109 = arith.mulf %108, %107 : vector<16x32xf32>
    %cst_50 = arith.constant 0.707106769 : f32
    %110 = vector.broadcast %cst_50 : f32 to vector<16x32xf32>
    %111 = arith.mulf %107, %110 : vector<16x32xf32>
    %112 = math.erf %111 : vector<16x32xf32>
    %cst_51 = arith.constant 1.000000e+00 : f32
    %113 = vector.broadcast %cst_51 : f32 to vector<16x32xf32>
    %114 = arith.addf %113, %112 : vector<16x32xf32>
    %115 = arith.mulf %109, %114 : vector<16x32xf32>
    %c0_i32 = arith.constant 0 : i32
    %c2_i32 = arith.constant 2 : i32
    %116 = arith.addi %c0_i32, %c2_i32 : i32
    %c1_i32 = arith.constant 1 : i32
    %117 = scf.for %arg38 = %c0_i32 to %116 step %c1_i32 iter_args(%arg39 = %115) -> (vector<16x32xf32>)  : i32 {
      %198 = arith.index_cast %arg38 : i32 to index
      %c0_93 = arith.constant 0 : index
      %c0_94 = arith.constant 0 : index
      %199 = vector.load %arg15[%198, %c0_93, %c0_94] : memref<2x32x96xbf16, #tpu.memory_space<vmem>>, vector<1x32x96xbf16>
      %200 = vector.shape_cast %199 : vector<1x32x96xbf16> to vector<32x96xbf16>
      %201 = arith.index_cast %arg38 : i32 to index
      %c0_95 = arith.constant 0 : index
      %c0_96 = arith.constant 0 : index
      %202 = vector.load %arg16[%201, %c0_95, %c0_96] : memref<2x1x96xf32, #tpu.memory_space<vmem>>, vector<1x1x96xf32>
      %203 = vector.shape_cast %202 : vector<1x1x96xf32> to vector<1x96xf32>
      %204 = arith.truncf %arg39 : vector<16x32xf32> to vector<16x32xbf16>
      %cst_97 = arith.constant dense<0.000000e+00> : vector<16x96xf32>
      %205 = tpu.matmul %204, %200, %cst_97 {dimension_numbers = #tpu.dot_dimension_numbers<[1], [0], [0], [1], [0, 0, 1, 1], [], []>} : vector<16x32xbf16>, vector<32x96xbf16>, vector<16x96xf32> -> vector<16x96xf32>
      %206 = vector.broadcast %203 : vector<1x96xf32> to vector<16x96xf32>
      %207 = arith.addf %205, %206 : vector<16x96xf32>
      %208 = arith.truncf %207 : vector<16x96xf32> to vector<16x96xbf16>
      %209 = vector.shape_cast %208 : vector<16x96xbf16> to vector<2x8x96xbf16>
      %210 = arith.index_cast %arg38 : i32 to index
      %c0_98 = arith.constant 0 : index
      %c0_99 = arith.constant 0 : index
      %c0_100 = arith.constant 0 : index
      %211 = vector.load %arg17[%210, %c0_98, %c0_99, %c0_100] : memref<2x4x8x32xbf16, #tpu.memory_space<vmem>>, vector<1x4x8x32xbf16>
      %212 = vector.shape_cast %211 : vector<1x4x8x32xbf16> to vector<4x8x32xbf16>
      %cst_101 = arith.constant 0.000000e+00 : f32
      %213 = vector.broadcast %cst_101 : f32 to vector<16x32xf32>
      %214 = vector.extract_strided_slice %209 {offsets = [0, 0, 0], sizes = [2, 8, 8], strides = [1, 1, 1]} : vector<2x8x96xbf16> to vector<2x8x8xbf16>
      %215 = vector.extract_strided_slice %209 {offsets = [0, 0, 32], sizes = [2, 8, 8], strides = [1, 1, 1]} : vector<2x8x96xbf16> to vector<2x8x8xbf16>
      %216 = vector.extract_strided_slice %209 {offsets = [0, 0, 64], sizes = [2, 8, 8], strides = [1, 1, 1]} : vector<2x8x96xbf16> to vector<2x8x8xbf16>
      "tpu.trace_start"() <{level = 10 : i32, message = "bsd,btd->bst"}> : () -> ()
      %cst_102 = arith.constant dense<0.000000e+00> : vector<2x8x8xf32>
      %217 = tpu.matmul %214, %215, %cst_102 {dimension_numbers = #tpu.dot_dimension_numbers<[2], [2], [1], [1], [0, 0, 0, 1, 1, 1], [0], [0]>} : vector<2x8x8xbf16>, vector<2x8x8xbf16>, vector<2x8x8xf32> -> vector<2x8x8xf32>
      "tpu.trace_stop"() : () -> ()
      %cst_103 = arith.constant dense<0xFF800000> : vector<2x8xf32>
      %218 = vector.multi_reduction <maximumf>, %217, %cst_103 [2] : vector<2x8x8xf32> to vector<2x8xf32>
      %219 = vector.shape_cast %218 : vector<2x8xf32> to vector<2x8x1xf32>
      %220 = vector.broadcast %219 : vector<2x8x1xf32> to vector<2x8x8xf32>
      %221 = arith.subf %217, %220 : vector<2x8x8xf32>
      %222 = math.exp %221 : vector<2x8x8xf32>
      %223 = arith.truncf %222 : vector<2x8x8xf32> to vector<2x8x8xbf16>
      "tpu.trace_start"() <{level = 10 : i32, message = "bst,btd->bsd"}> : () -> ()
      %cst_104 = arith.constant dense<0.000000e+00> : vector<2x8x8xf32>
      %224 = tpu.matmul %223, %216, %cst_104 {dimension_numbers = #tpu.dot_dimension_numbers<[2], [1], [1], [2], [0, 0, 0, 1, 1, 2], [0], [0]>} : vector<2x8x8xbf16>, vector<2x8x8xbf16>, vector<2x8x8xf32> -> vector<2x8x8xf32>
      "tpu.trace_stop"() : () -> ()
      %cst_105 = arith.constant dense<0.000000e+00> : vector<2x8xf32>
      %225 = vector.multi_reduction <add>, %222, %cst_105 [2] : vector<2x8x8xf32> to vector<2x8xf32>
      %226 = vector.shape_cast %225 : vector<2x8xf32> to vector<2x8x1xf32>
      %227 = tpu.reciprocal %226 {approx = true} : vector<2x8x1xf32> -> vector<2x8x1xf32>
      %228 = vector.broadcast %227 : vector<2x8x1xf32> to vector<2x8x8xf32>
      %229 = arith.mulf %224, %228 : vector<2x8x8xf32>
      %230 = vector.shape_cast %229 : vector<2x8x8xf32> to vector<16x8xf32>
      %231 = arith.truncf %230 : vector<16x8xf32> to vector<16x8xbf16>
      %232 = vector.extract_strided_slice %212 {offsets = [0, 0, 0], sizes = [1, 8, 32], strides = [1, 1, 1]} : vector<4x8x32xbf16> to vector<1x8x32xbf16>
      %233 = vector.shape_cast %232 : vector<1x8x32xbf16> to vector<8x32xbf16>
      %cst_106 = arith.constant dense<0.000000e+00> : vector<16x32xf32>
      %234 = tpu.matmul %231, %233, %cst_106 {dimension_numbers = #tpu.dot_dimension_numbers<[1], [0], [0], [1], [0, 0, 1, 1], [], []>} : vector<16x8xbf16>, vector<8x32xbf16>, vector<16x32xf32> -> vector<16x32xf32>
      %235 = arith.addf %213, %234 : vector<16x32xf32>
      %236 = vector.extract_strided_slice %209 {offsets = [0, 0, 8], sizes = [2, 8, 8], strides = [1, 1, 1]} : vector<2x8x96xbf16> to vector<2x8x8xbf16>
      %237 = vector.extract_strided_slice %209 {offsets = [0, 0, 40], sizes = [2, 8, 8], strides = [1, 1, 1]} : vector<2x8x96xbf16> to vector<2x8x8xbf16>
      %238 = vector.extract_strided_slice %209 {offsets = [0, 0, 72], sizes = [2, 8, 8], strides = [1, 1, 1]} : vector<2x8x96xbf16> to vector<2x8x8xbf16>
      "tpu.trace_start"() <{level = 10 : i32, message = "bsd,btd->bst"}> : () -> ()
      %cst_107 = arith.constant dense<0.000000e+00> : vector<2x8x8xf32>
      %239 = tpu.matmul %236, %237, %cst_107 {dimension_numbers = #tpu.dot_dimension_numbers<[2], [2], [1], [1], [0, 0, 0, 1, 1, 1], [0], [0]>} : vector<2x8x8xbf16>, vector<2x8x8xbf16>, vector<2x8x8xf32> -> vector<2x8x8xf32>
      "tpu.trace_stop"() : () -> ()
      %cst_108 = arith.constant dense<0xFF800000> : vector<2x8xf32>
      %240 = vector.multi_reduction <maximumf>, %239, %cst_108 [2] : vector<2x8x8xf32> to vector<2x8xf32>
      %241 = vector.shape_cast %240 : vector<2x8xf32> to vector<2x8x1xf32>
      %242 = vector.broadcast %241 : vector<2x8x1xf32> to vector<2x8x8xf32>
      %243 = arith.subf %239, %242 : vector<2x8x8xf32>
      %244 = math.exp %243 : vector<2x8x8xf32>
      %245 = arith.truncf %244 : vector<2x8x8xf32> to vector<2x8x8xbf16>
      "tpu.trace_start"() <{level = 10 : i32, message = "bst,btd->bsd"}> : () -> ()
      %cst_109 = arith.constant dense<0.000000e+00> : vector<2x8x8xf32>
      %246 = tpu.matmul %245, %238, %cst_109 {dimension_numbers = #tpu.dot_dimension_numbers<[2], [1], [1], [2], [0, 0, 0, 1, 1, 2], [0], [0]>} : vector<2x8x8xbf16>, vector<2x8x8xbf16>, vector<2x8x8xf32> -> vector<2x8x8xf32>
      "tpu.trace_stop"() : () -> ()
      %cst_110 = arith.constant dense<0.000000e+00> : vector<2x8xf32>
      %247 = vector.multi_reduction <add>, %244, %cst_110 [2] : vector<2x8x8xf32> to vector<2x8xf32>
      %248 = vector.shape_cast %247 : vector<2x8xf32> to vector<2x8x1xf32>
      %249 = tpu.reciprocal %248 {approx = true} : vector<2x8x1xf32> -> vector<2x8x1xf32>
      %250 = vector.broadcast %249 : vector<2x8x1xf32> to vector<2x8x8xf32>
      %251 = arith.mulf %246, %250 : vector<2x8x8xf32>
      %252 = vector.shape_cast %251 : vector<2x8x8xf32> to vector<16x8xf32>
      %253 = arith.truncf %252 : vector<16x8xf32> to vector<16x8xbf16>
      %254 = vector.extract_strided_slice %212 {offsets = [1, 0, 0], sizes = [1, 8, 32], strides = [1, 1, 1]} : vector<4x8x32xbf16> to vector<1x8x32xbf16>
      %255 = vector.shape_cast %254 : vector<1x8x32xbf16> to vector<8x32xbf16>
      %cst_111 = arith.constant dense<0.000000e+00> : vector<16x32xf32>
      %256 = tpu.matmul %253, %255, %cst_111 {dimension_numbers = #tpu.dot_dimension_numbers<[1], [0], [0], [1], [0, 0, 1, 1], [], []>} : vector<16x8xbf16>, vector<8x32xbf16>, vector<16x32xf32> -> vector<16x32xf32>
      %257 = arith.addf %235, %256 : vector<16x32xf32>
      %258 = vector.extract_strided_slice %209 {offsets = [0, 0, 16], sizes = [2, 8, 8], strides = [1, 1, 1]} : vector<2x8x96xbf16> to vector<2x8x8xbf16>
      %259 = vector.extract_strided_slice %209 {offsets = [0, 0, 48], sizes = [2, 8, 8], strides = [1, 1, 1]} : vector<2x8x96xbf16> to vector<2x8x8xbf16>
      %260 = vector.extract_strided_slice %209 {offsets = [0, 0, 80], sizes = [2, 8, 8], strides = [1, 1, 1]} : vector<2x8x96xbf16> to vector<2x8x8xbf16>
      "tpu.trace_start"() <{level = 10 : i32, message = "bsd,btd->bst"}> : () -> ()
      %cst_112 = arith.constant dense<0.000000e+00> : vector<2x8x8xf32>
      %261 = tpu.matmul %258, %259, %cst_112 {dimension_numbers = #tpu.dot_dimension_numbers<[2], [2], [1], [1], [0, 0, 0, 1, 1, 1], [0], [0]>} : vector<2x8x8xbf16>, vector<2x8x8xbf16>, vector<2x8x8xf32> -> vector<2x8x8xf32>
      "tpu.trace_stop"() : () -> ()
      %cst_113 = arith.constant dense<0xFF800000> : vector<2x8xf32>
      %262 = vector.multi_reduction <maximumf>, %261, %cst_113 [2] : vector<2x8x8xf32> to vector<2x8xf32>
      %263 = vector.shape_cast %262 : vector<2x8xf32> to vector<2x8x1xf32>
      %264 = vector.broadcast %263 : vector<2x8x1xf32> to vector<2x8x8xf32>
      %265 = arith.subf %261, %264 : vector<2x8x8xf32>
      %266 = math.exp %265 : vector<2x8x8xf32>
      %267 = arith.truncf %266 : vector<2x8x8xf32> to vector<2x8x8xbf16>
      "tpu.trace_start"() <{level = 10 : i32, message = "bst,btd->bsd"}> : () -> ()
      %cst_114 = arith.constant dense<0.000000e+00> : vector<2x8x8xf32>
      %268 = tpu.matmul %267, %260, %cst_114 {dimension_numbers = #tpu.dot_dimension_numbers<[2], [1], [1], [2], [0, 0, 0, 1, 1, 2], [0], [0]>} : vector<2x8x8xbf16>, vector<2x8x8xbf16>, vector<2x8x8xf32> -> vector<2x8x8xf32>
      "tpu.trace_stop"() : () -> ()
      %cst_115 = arith.constant dense<0.000000e+00> : vector<2x8xf32>
      %269 = vector.multi_reduction <add>, %266, %cst_115 [2] : vector<2x8x8xf32> to vector<2x8xf32>
      %270 = vector.shape_cast %269 : vector<2x8xf32> to vector<2x8x1xf32>
      %271 = tpu.reciprocal %270 {approx = true} : vector<2x8x1xf32> -> vector<2x8x1xf32>
      %272 = vector.broadcast %271 : vector<2x8x1xf32> to vector<2x8x8xf32>
      %273 = arith.mulf %268, %272 : vector<2x8x8xf32>
      %274 = vector.shape_cast %273 : vector<2x8x8xf32> to vector<16x8xf32>
      %275 = arith.truncf %274 : vector<16x8xf32> to vector<16x8xbf16>
      %276 = vector.extract_strided_slice %212 {offsets = [2, 0, 0], sizes = [1, 8, 32], strides = [1, 1, 1]} : vector<4x8x32xbf16> to vector<1x8x32xbf16>
      %277 = vector.shape_cast %276 : vector<1x8x32xbf16> to vector<8x32xbf16>
      %cst_116 = arith.constant dense<0.000000e+00> : vector<16x32xf32>
      %278 = tpu.matmul %275, %277, %cst_116 {dimension_numbers = #tpu.dot_dimension_numbers<[1], [0], [0], [1], [0, 0, 1, 1], [], []>} : vector<16x8xbf16>, vector<8x32xbf16>, vector<16x32xf32> -> vector<16x32xf32>
      %279 = arith.addf %257, %278 : vector<16x32xf32>
      %280 = vector.extract_strided_slice %209 {offsets = [0, 0, 24], sizes = [2, 8, 8], strides = [1, 1, 1]} : vector<2x8x96xbf16> to vector<2x8x8xbf16>
      %281 = vector.extract_strided_slice %209 {offsets = [0, 0, 56], sizes = [2, 8, 8], strides = [1, 1, 1]} : vector<2x8x96xbf16> to vector<2x8x8xbf16>
      %282 = vector.extract_strided_slice %209 {offsets = [0, 0, 88], sizes = [2, 8, 8], strides = [1, 1, 1]} : vector<2x8x96xbf16> to vector<2x8x8xbf16>
      "tpu.trace_start"() <{level = 10 : i32, message = "bsd,btd->bst"}> : () -> ()
      %cst_117 = arith.constant dense<0.000000e+00> : vector<2x8x8xf32>
      %283 = tpu.matmul %280, %281, %cst_117 {dimension_numbers = #tpu.dot_dimension_numbers<[2], [2], [1], [1], [0, 0, 0, 1, 1, 1], [0], [0]>} : vector<2x8x8xbf16>, vector<2x8x8xbf16>, vector<2x8x8xf32> -> vector<2x8x8xf32>
      "tpu.trace_stop"() : () -> ()
      %cst_118 = arith.constant dense<0xFF800000> : vector<2x8xf32>
      %284 = vector.multi_reduction <maximumf>, %283, %cst_118 [2] : vector<2x8x8xf32> to vector<2x8xf32>
      %285 = vector.shape_cast %284 : vector<2x8xf32> to vector<2x8x1xf32>
      %286 = vector.broadcast %285 : vector<2x8x1xf32> to vector<2x8x8xf32>
      %287 = arith.subf %283, %286 : vector<2x8x8xf32>
      %288 = math.exp %287 : vector<2x8x8xf32>
      %289 = arith.truncf %288 : vector<2x8x8xf32> to vector<2x8x8xbf16>
      "tpu.trace_start"() <{level = 10 : i32, message = "bst,btd->bsd"}> : () -> ()
      %cst_119 = arith.constant dense<0.000000e+00> : vector<2x8x8xf32>
      %290 = tpu.matmul %289, %282, %cst_119 {dimension_numbers = #tpu.dot_dimension_numbers<[2], [1], [1], [2], [0, 0, 0, 1, 1, 2], [0], [0]>} : vector<2x8x8xbf16>, vector<2x8x8xbf16>, vector<2x8x8xf32> -> vector<2x8x8xf32>
      "tpu.trace_stop"() : () -> ()
      %cst_120 = arith.constant dense<0.000000e+00> : vector<2x8xf32>
      %291 = vector.multi_reduction <add>, %288, %cst_120 [2] : vector<2x8x8xf32> to vector<2x8xf32>
      %292 = vector.shape_cast %291 : vector<2x8xf32> to vector<2x8x1xf32>
      %293 = tpu.reciprocal %292 {approx = true} : vector<2x8x1xf32> -> vector<2x8x1xf32>
      %294 = vector.broadcast %293 : vector<2x8x1xf32> to vector<2x8x8xf32>
      %295 = arith.mulf %290, %294 : vector<2x8x8xf32>
      %296 = vector.shape_cast %295 : vector<2x8x8xf32> to vector<16x8xf32>
      %297 = arith.truncf %296 : vector<16x8xf32> to vector<16x8xbf16>
      %298 = vector.extract_strided_slice %212 {offsets = [3, 0, 0], sizes = [1, 8, 32], strides = [1, 1, 1]} : vector<4x8x32xbf16> to vector<1x8x32xbf16>
      %299 = vector.shape_cast %298 : vector<1x8x32xbf16> to vector<8x32xbf16>
      %cst_121 = arith.constant dense<0.000000e+00> : vector<16x32xf32>
      %300 = tpu.matmul %297, %299, %cst_121 {dimension_numbers = #tpu.dot_dimension_numbers<[1], [0], [0], [1], [0, 0, 1, 1], [], []>} : vector<16x8xbf16>, vector<8x32xbf16>, vector<16x32xf32> -> vector<16x32xf32>
      %301 = arith.addf %279, %300 : vector<16x32xf32>
      %302 = arith.index_cast %arg38 : i32 to index
      %c0_122 = arith.constant 0 : index
      %c0_123 = arith.constant 0 : index
      %303 = vector.load %arg18[%302, %c0_122, %c0_123] : memref<2x1x32xf32, #tpu.memory_space<vmem>>, vector<1x1x32xf32>
      %304 = vector.shape_cast %303 : vector<1x1x32xf32> to vector<1x32xf32>
      %305 = vector.broadcast %304 : vector<1x32xf32> to vector<16x32xf32>
      %306 = arith.addf %301, %305 : vector<16x32xf32>
      %307 = arith.addf %arg39, %306 : vector<16x32xf32>
      %308 = arith.index_cast %arg38 : i32 to index
      %c0_124 = arith.constant 0 : index
      %c0_125 = arith.constant 0 : index
      %309 = vector.load %arg19[%308, %c0_124, %c0_125] : memref<2x1x32xf32, #tpu.memory_space<vmem>>, vector<1x1x32xf32>
      %310 = vector.shape_cast %309 : vector<1x1x32xf32> to vector<1x32xf32>
      %311 = arith.index_cast %arg38 : i32 to index
      %c0_126 = arith.constant 0 : index
      %c0_127 = arith.constant 0 : index
      %312 = vector.load %arg20[%311, %c0_126, %c0_127] : memref<2x1x32xf32, #tpu.memory_space<vmem>>, vector<1x1x32xf32>
      %313 = vector.shape_cast %312 : vector<1x1x32xf32> to vector<1x32xf32>
      %cst_128 = arith.constant dense<0.000000e+00> : vector<16xf32>
      %314 = vector.multi_reduction <add>, %307, %cst_128 [1] : vector<16x32xf32> to vector<16xf32>
      %315 = vector.shape_cast %314 : vector<16xf32> to vector<16x1xf32>
      %cst_129 = arith.constant 3.200000e+01 : f32
      %316 = vector.broadcast %cst_129 : f32 to vector<16x1xf32>
      %317 = arith.divf %315, %316 : vector<16x1xf32>
      %318 = vector.broadcast %317 : vector<16x1xf32> to vector<16x32xf32>
      %319 = arith.subf %307, %318 : vector<16x32xf32>
      %320 = arith.mulf %319, %319 : vector<16x32xf32>
      %cst_130 = arith.constant dense<0.000000e+00> : vector<16xf32>
      %321 = vector.multi_reduction <add>, %320, %cst_130 [1] : vector<16x32xf32> to vector<16xf32>
      %322 = vector.shape_cast %321 : vector<16xf32> to vector<16x1xf32>
      %cst_131 = arith.constant 3.200000e+01 : f32
      %323 = vector.broadcast %cst_131 : f32 to vector<16x1xf32>
      %324 = arith.divf %322, %323 : vector<16x1xf32>
      %325 = vector.broadcast %317 : vector<16x1xf32> to vector<16x32xf32>
      %326 = arith.subf %307, %325 : vector<16x32xf32>
      %cst_132 = arith.constant 9.99999974E-6 : f32
      %327 = vector.broadcast %cst_132 : f32 to vector<16x1xf32>
      %328 = arith.addf %324, %327 : vector<16x1xf32>
      %329 = math.rsqrt %328 : vector<16x1xf32>
      %330 = vector.broadcast %329 : vector<16x1xf32> to vector<16x32xf32>
      %331 = arith.mulf %326, %330 : vector<16x32xf32>
      %332 = vector.broadcast %310 : vector<1x32xf32> to vector<16x32xf32>
      %333 = arith.mulf %331, %332 : vector<16x32xf32>
      %334 = vector.broadcast %313 : vector<1x32xf32> to vector<16x32xf32>
      %335 = arith.addf %333, %334 : vector<16x32xf32>
      %336 = arith.index_cast %arg38 : i32 to index
      %c0_133 = arith.constant 0 : index
      %c0_134 = arith.constant 0 : index
      %337 = vector.load %arg21[%336, %c0_133, %c0_134] : memref<2x32x64xbf16, #tpu.memory_space<vmem>>, vector<1x32x64xbf16>
      %338 = vector.shape_cast %337 : vector<1x32x64xbf16> to vector<32x64xbf16>
      %339 = arith.index_cast %arg38 : i32 to index
      %c0_135 = arith.constant 0 : index
      %c0_136 = arith.constant 0 : index
      %340 = vector.load %arg22[%339, %c0_135, %c0_136] : memref<2x1x64xf32, #tpu.memory_space<vmem>>, vector<1x1x64xf32>
      %341 = vector.shape_cast %340 : vector<1x1x64xf32> to vector<1x64xf32>
      %342 = arith.truncf %335 : vector<16x32xf32> to vector<16x32xbf16>
      %cst_137 = arith.constant dense<0.000000e+00> : vector<16x64xf32>
      %343 = tpu.matmul %342, %338, %cst_137 {dimension_numbers = #tpu.dot_dimension_numbers<[1], [0], [0], [1], [0, 0, 1, 1], [], []>} : vector<16x32xbf16>, vector<32x64xbf16>, vector<16x64xf32> -> vector<16x64xf32>
      %344 = vector.broadcast %341 : vector<1x64xf32> to vector<16x64xf32>
      %345 = arith.addf %343, %344 : vector<16x64xf32>
      %cst_138 = arith.constant 0.000000e+00 : f32
      %346 = vector.broadcast %cst_138 : f32 to vector<16x64xf32>
      %347 = arith.maximumf %345, %346 : vector<16x64xf32>
      %348 = arith.index_cast %arg38 : i32 to index
      %c0_139 = arith.constant 0 : index
      %c0_140 = arith.constant 0 : index
      %349 = vector.load %arg23[%348, %c0_139, %c0_140] : memref<2x64x32xbf16, #tpu.memory_space<vmem>>, vector<1x64x32xbf16>
      %350 = vector.shape_cast %349 : vector<1x64x32xbf16> to vector<64x32xbf16>
      %351 = arith.index_cast %arg38 : i32 to index
      %c0_141 = arith.constant 0 : index
      %c0_142 = arith.constant 0 : index
      %352 = vector.load %arg24[%351, %c0_141, %c0_142] : memref<2x1x32xf32, #tpu.memory_space<vmem>>, vector<1x1x32xf32>
      %353 = vector.shape_cast %352 : vector<1x1x32xf32> to vector<1x32xf32>
      %354 = arith.truncf %347 : vector<16x64xf32> to vector<16x64xbf16>
      %cst_143 = arith.constant dense<0.000000e+00> : vector<16x32xf32>
      %355 = tpu.matmul %354, %350, %cst_143 {dimension_numbers = #tpu.dot_dimension_numbers<[1], [0], [0], [1], [0, 0, 1, 1], [], []>} : vector<16x64xbf16>, vector<64x32xbf16>, vector<16x32xf32> -> vector<16x32xf32>
      %356 = vector.broadcast %353 : vector<1x32xf32> to vector<16x32xf32>
      %357 = arith.addf %355, %356 : vector<16x32xf32>
      %358 = arith.addf %335, %357 : vector<16x32xf32>
      %359 = arith.index_cast %arg38 : i32 to index
      %c0_144 = arith.constant 0 : index
      %c0_145 = arith.constant 0 : index
      %360 = vector.load %arg25[%359, %c0_144, %c0_145] : memref<2x1x32xf32, #tpu.memory_space<vmem>>, vector<1x1x32xf32>
      %361 = vector.shape_cast %360 : vector<1x1x32xf32> to vector<1x32xf32>
      %362 = arith.index_cast %arg38 : i32 to index
      %c0_146 = arith.constant 0 : index
      %c0_147 = arith.constant 0 : index
      %363 = vector.load %arg26[%362, %c0_146, %c0_147] : memref<2x1x32xf32, #tpu.memory_space<vmem>>, vector<1x1x32xf32>
      %364 = vector.shape_cast %363 : vector<1x1x32xf32> to vector<1x32xf32>
      %cst_148 = arith.constant dense<0.000000e+00> : vector<16xf32>
      %365 = vector.multi_reduction <add>, %358, %cst_148 [1] : vector<16x32xf32> to vector<16xf32>
      %366 = vector.shape_cast %365 : vector<16xf32> to vector<16x1xf32>
      %cst_149 = arith.constant 3.200000e+01 : f32
      %367 = vector.broadcast %cst_149 : f32 to vector<16x1xf32>
      %368 = arith.divf %366, %367 : vector<16x1xf32>
      %369 = vector.broadcast %368 : vector<16x1xf32> to vector<16x32xf32>
      %370 = arith.subf %358, %369 : vector<16x32xf32>
      %371 = arith.mulf %370, %370 : vector<16x32xf32>
      %cst_150 = arith.constant dense<0.000000e+00> : vector<16xf32>
      %372 = vector.multi_reduction <add>, %371, %cst_150 [1] : vector<16x32xf32> to vector<16xf32>
      %373 = vector.shape_cast %372 : vector<16xf32> to vector<16x1xf32>
      %cst_151 = arith.constant 3.200000e+01 : f32
      %374 = vector.broadcast %cst_151 : f32 to vector<16x1xf32>
      %375 = arith.divf %373, %374 : vector<16x1xf32>
      %376 = vector.broadcast %368 : vector<16x1xf32> to vector<16x32xf32>
      %377 = arith.subf %358, %376 : vector<16x32xf32>
      %cst_152 = arith.constant 9.99999974E-6 : f32
      %378 = vector.broadcast %cst_152 : f32 to vector<16x1xf32>
      %379 = arith.addf %375, %378 : vector<16x1xf32>
      %380 = math.rsqrt %379 : vector<16x1xf32>
      %381 = vector.broadcast %380 : vector<16x1xf32> to vector<16x32xf32>
      %382 = arith.mulf %377, %381 : vector<16x32xf32>
      %383 = vector.broadcast %361 : vector<1x32xf32> to vector<16x32xf32>
      %384 = arith.mulf %382, %383 : vector<16x32xf32>
      %385 = vector.broadcast %364 : vector<1x32xf32> to vector<16x32xf32>
      %386 = arith.addf %384, %385 : vector<16x32xf32>
      scf.yield %386 : vector<16x32xf32>
    }
    %c2_i32_52 = arith.constant 2 : i32
    %118 = vector.shape_cast %117 : vector<16x32xf32> to vector<2x8x32xf32>
    %cst_53 = arith.constant dense<0.000000e+00> : vector<2x32xf32>
    %119 = vector.multi_reduction <add>, %118, %cst_53 [1] : vector<2x8x32xf32> to vector<2x32xf32>
    %cst_54 = arith.constant 8.000000e+00 : f32
    %120 = vector.broadcast %cst_54 : f32 to vector<2x32xf32>
    %121 = arith.divf %119, %120 : vector<2x32xf32>
    %122 = vector.extract_strided_slice %118 {offsets = [0, 7, 0], sizes = [2, 1, 32], strides = [1, 1, 1]} : vector<2x8x32xf32> to vector<2x1x32xf32>
    %123 = vector.shape_cast %122 : vector<2x1x32xf32> to vector<2x32xf32>
    %cst_55 = arith.constant 5.000000e-01 : f32
    %124 = vector.broadcast %cst_55 : f32 to vector<2x32xf32>
    %125 = arith.mulf %123, %124 : vector<2x32xf32>
    %126 = arith.addf %121, %125 : vector<2x32xf32>
    %c0_56 = arith.constant 0 : index
    %c0_57 = arith.constant 0 : index
    %127 = vector.load %arg27[%c0_56, %c0_57] : memref<32x64xbf16, #tpu.memory_space<vmem>>, vector<32x64xbf16>
    %c0_58 = arith.constant 0 : index
    %c0_59 = arith.constant 0 : index
    %128 = vector.load %arg28[%c0_58, %c0_59] : memref<1x64xf32, #tpu.memory_space<vmem>>, vector<1x64xf32>
    %129 = arith.truncf %126 : vector<2x32xf32> to vector<2x32xbf16>
    %cst_60 = arith.constant dense<0.000000e+00> : vector<2x64xf32>
    %130 = tpu.matmul %129, %127, %cst_60 {dimension_numbers = #tpu.dot_dimension_numbers<[1], [0], [0], [1], [0, 0, 1, 1], [], []>} : vector<2x32xbf16>, vector<32x64xbf16>, vector<2x64xf32> -> vector<2x64xf32>
    %131 = vector.broadcast %128 : vector<1x64xf32> to vector<2x64xf32>
    %132 = arith.addf %130, %131 : vector<2x64xf32>
    %c0_61 = arith.constant 0 : index
    %c0_62 = arith.constant 0 : index
    %133 = vector.load %arg29[%c0_61, %c0_62] : memref<1x64xf32, #tpu.memory_space<vmem>>, vector<1x64xf32>
    %c0_63 = arith.constant 0 : index
    %c0_64 = arith.constant 0 : index
    %134 = vector.load %arg30[%c0_63, %c0_64] : memref<1x64xf32, #tpu.memory_space<vmem>>, vector<1x64xf32>
    %cst_65 = arith.constant dense<0.000000e+00> : vector<2xf32>
    %135 = vector.multi_reduction <add>, %132, %cst_65 [1] : vector<2x64xf32> to vector<2xf32>
    %136 = vector.shape_cast %135 : vector<2xf32> to vector<2x1xf32>
    %cst_66 = arith.constant 6.400000e+01 : f32
    %137 = vector.broadcast %cst_66 : f32 to vector<2x1xf32>
    %138 = arith.divf %136, %137 : vector<2x1xf32>
    %139 = vector.broadcast %138 : vector<2x1xf32> to vector<2x64xf32>
    %140 = arith.subf %132, %139 : vector<2x64xf32>
    %141 = arith.mulf %140, %140 : vector<2x64xf32>
    %cst_67 = arith.constant dense<0.000000e+00> : vector<2xf32>
    %142 = vector.multi_reduction <add>, %141, %cst_67 [1] : vector<2x64xf32> to vector<2xf32>
    %143 = vector.shape_cast %142 : vector<2xf32> to vector<2x1xf32>
    %cst_68 = arith.constant 6.400000e+01 : f32
    %144 = vector.broadcast %cst_68 : f32 to vector<2x1xf32>
    %145 = arith.divf %143, %144 : vector<2x1xf32>
    %146 = vector.broadcast %138 : vector<2x1xf32> to vector<2x64xf32>
    %147 = arith.subf %132, %146 : vector<2x64xf32>
    %cst_69 = arith.constant 9.99999974E-6 : f32
    %148 = vector.broadcast %cst_69 : f32 to vector<2x1xf32>
    %149 = arith.addf %145, %148 : vector<2x1xf32>
    %150 = math.rsqrt %149 : vector<2x1xf32>
    %151 = vector.broadcast %150 : vector<2x1xf32> to vector<2x64xf32>
    %152 = arith.mulf %147, %151 : vector<2x64xf32>
    %153 = vector.broadcast %133 : vector<1x64xf32> to vector<2x64xf32>
    %154 = arith.mulf %152, %153 : vector<2x64xf32>
    %155 = vector.broadcast %134 : vector<1x64xf32> to vector<2x64xf32>
    %156 = arith.addf %154, %155 : vector<2x64xf32>
    %cst_70 = arith.constant 0.000000e+00 : f32
    %157 = vector.broadcast %cst_70 : f32 to vector<2x64xf32>
    %158 = arith.maximumf %156, %157 : vector<2x64xf32>
    %c0_71 = arith.constant 0 : index
    %c0_72 = arith.constant 0 : index
    %159 = vector.load %arg31[%c0_71, %c0_72] : memref<64x32xbf16, #tpu.memory_space<vmem>>, vector<64x32xbf16>
    %c0_73 = arith.constant 0 : index
    %c0_74 = arith.constant 0 : index
    %160 = vector.load %arg32[%c0_73, %c0_74] : memref<1x32xf32, #tpu.memory_space<vmem>>, vector<1x32xf32>
    %161 = arith.truncf %158 : vector<2x64xf32> to vector<2x64xbf16>
    %cst_75 = arith.constant dense<0.000000e+00> : vector<2x32xf32>
    %162 = tpu.matmul %161, %159, %cst_75 {dimension_numbers = #tpu.dot_dimension_numbers<[1], [0], [0], [1], [0, 0, 1, 1], [], []>} : vector<2x64xbf16>, vector<64x32xbf16>, vector<2x32xf32> -> vector<2x32xf32>
    %163 = vector.broadcast %160 : vector<1x32xf32> to vector<2x32xf32>
    %164 = arith.addf %162, %163 : vector<2x32xf32>
    %c0_76 = arith.constant 0 : index
    %c0_77 = arith.constant 0 : index
    %165 = vector.load %arg33[%c0_76, %c0_77] : memref<1x32xf32, #tpu.memory_space<vmem>>, vector<1x32xf32>
    %c0_78 = arith.constant 0 : index
    %c0_79 = arith.constant 0 : index
    %166 = vector.load %arg34[%c0_78, %c0_79] : memref<1x32xf32, #tpu.memory_space<vmem>>, vector<1x32xf32>
    %cst_80 = arith.constant dense<0.000000e+00> : vector<2xf32>
    %167 = vector.multi_reduction <add>, %164, %cst_80 [1] : vector<2x32xf32> to vector<2xf32>
    %168 = vector.shape_cast %167 : vector<2xf32> to vector<2x1xf32>
    %cst_81 = arith.constant 3.200000e+01 : f32
    %169 = vector.broadcast %cst_81 : f32 to vector<2x1xf32>
    %170 = arith.divf %168, %169 : vector<2x1xf32>
    %171 = vector.broadcast %170 : vector<2x1xf32> to vector<2x32xf32>
    %172 = arith.subf %164, %171 : vector<2x32xf32>
    %173 = arith.mulf %172, %172 : vector<2x32xf32>
    %cst_82 = arith.constant dense<0.000000e+00> : vector<2xf32>
    %174 = vector.multi_reduction <add>, %173, %cst_82 [1] : vector<2x32xf32> to vector<2xf32>
    %175 = vector.shape_cast %174 : vector<2xf32> to vector<2x1xf32>
    %cst_83 = arith.constant 3.200000e+01 : f32
    %176 = vector.broadcast %cst_83 : f32 to vector<2x1xf32>
    %177 = arith.divf %175, %176 : vector<2x1xf32>
    %178 = vector.broadcast %170 : vector<2x1xf32> to vector<2x32xf32>
    %179 = arith.subf %164, %178 : vector<2x32xf32>
    %cst_84 = arith.constant 9.99999974E-6 : f32
    %180 = vector.broadcast %cst_84 : f32 to vector<2x1xf32>
    %181 = arith.addf %177, %180 : vector<2x1xf32>
    %182 = math.rsqrt %181 : vector<2x1xf32>
    %183 = vector.broadcast %182 : vector<2x1xf32> to vector<2x32xf32>
    %184 = arith.mulf %179, %183 : vector<2x32xf32>
    %185 = vector.broadcast %165 : vector<1x32xf32> to vector<2x32xf32>
    %186 = arith.mulf %184, %185 : vector<2x32xf32>
    %187 = vector.broadcast %166 : vector<1x32xf32> to vector<2x32xf32>
    %188 = arith.addf %186, %187 : vector<2x32xf32>
    %cst_85 = arith.constant 0.000000e+00 : f32
    %189 = vector.broadcast %cst_85 : f32 to vector<2x32xf32>
    %190 = arith.maximumf %188, %189 : vector<2x32xf32>
    %c0_86 = arith.constant 0 : index
    %c0_87 = arith.constant 0 : index
    %191 = vector.load %arg35[%c0_86, %c0_87] : memref<32x128xbf16, #tpu.memory_space<vmem>>, vector<32x128xbf16>
    %c0_88 = arith.constant 0 : index
    %c0_89 = arith.constant 0 : index
    %192 = vector.load %arg36[%c0_88, %c0_89] : memref<1x128xf32, #tpu.memory_space<vmem>>, vector<1x128xf32>
    %193 = arith.truncf %190 : vector<2x32xf32> to vector<2x32xbf16>
    %cst_90 = arith.constant dense<0.000000e+00> : vector<2x128xf32>
    %194 = tpu.matmul %193, %191, %cst_90 {dimension_numbers = #tpu.dot_dimension_numbers<[1], [0], [0], [1], [0, 0, 1, 1], [], []>} : vector<2x32xbf16>, vector<32x128xbf16>, vector<2x128xf32> -> vector<2x128xf32>
    %195 = vector.broadcast %192 : vector<1x128xf32> to vector<2x128xf32>
    %196 = arith.addf %194, %195 : vector<2x128xf32>
    %c0_91 = arith.constant 0 : index
    %c0_92 = arith.constant 0 : index
    %197 = vector.load %arg37[%c0_91, %c0_92] : memref<2x128xf32, #tpu.memory_space<vmem>>, vector<2x128xf32>
    tpu.vector_store %arg37[%c0_91, %c0_92], %196 {strides = array<i32>} : memref<2x128xf32, #tpu.memory_space<vmem>>, vector<2x128xf32>,
    return
  }
  func.func @transform_0(%arg0: i32) -> (i32, i32, i32) {
    %c0_i32 = arith.constant 0 : i32
    %c0_i32_0 = arith.constant 0 : i32
    %c0_i32_1 = arith.constant 0 : i32
    return %arg0, %c0_i32, %c0_i32_0 : i32, i32, i32
  }
  func.func @transform_1(%arg0: i32) -> (i32, i32) {
    %c0_i32 = arith.constant 0 : i32
    %c0_i32_0 = arith.constant 0 : i32
    %c0_i32_1 = arith.constant 0 : i32
    return %c0_i32, %c0_i32_0 : i32, i32
  }
  func.func @transform_2(%arg0: i32) -> (i32, i32) {
    %c0_i32 = arith.constant 0 : i32
    %c0_i32_0 = arith.constant 0 : i32
    %c0_i32_1 = arith.constant 0 : i32
    return %c0_i32, %c0_i32_0 : i32, i32
  }
  func.func @transform_3(%arg0: i32) -> (i32, i32) {
    %c0_i32 = arith.constant 0 : i32
    %c0_i32_0 = arith.constant 0 : i32
    %c0_i32_1 = arith.constant 0 : i32
    return %c0_i32, %c0_i32_0 : i32, i32
  }
  func.func @transform_4(%arg0: i32) -> (i32, i32) {
    %c0_i32 = arith.constant 0 : i32
    %c0_i32_0 = arith.constant 0 : i32
    %c0_i32_1 = arith.constant 0 : i32
    return %c0_i32, %c0_i32_0 : i32, i32
  }
  func.func @transform_5(%arg0: i32) -> (i32, i32) {
    %c0_i32 = arith.constant 0 : i32
    %c0_i32_0 = arith.constant 0 : i32
    %c0_i32_1 = arith.constant 0 : i32
    return %c0_i32, %c0_i32_0 : i32, i32
  }
  func.func @transform_6(%arg0: i32) -> (i32, i32) {
    %c0_i32 = arith.constant 0 : i32
    %c0_i32_0 = arith.constant 0 : i32
    %c0_i32_1 = arith.constant 0 : i32
    return %c0_i32, %c0_i32_0 : i32, i32
  }
  func.func @transform_7(%arg0: i32) -> (i32, i32) {
    %c0_i32 = arith.constant 0 : i32
    %c0_i32_0 = arith.constant 0 : i32
    %c0_i32_1 = arith.constant 0 : i32
    return %c0_i32, %c0_i32_0 : i32, i32
  }
  func.func @transform_8(%arg0: i32) -> (i32, i32) {
    %c0_i32 = arith.constant 0 : i32
    %c0_i32_0 = arith.constant 0 : i32
    %c0_i32_1 = arith.constant 0 : i32
    return %c0_i32, %c0_i32_0 : i32, i32
  }
  func.func @transform_9(%arg0: i32) -> (i32, i32) {
    %c0_i32 = arith.constant 0 : i32
    %c0_i32_0 = arith.constant 0 : i32
    %c0_i32_1 = arith.constant 0 : i32
    return %c0_i32, %c0_i32_0 : i32, i32
  }
  func.func @transform_10(%arg0: i32) -> (i32, i32) {
    %c0_i32 = arith.constant 0 : i32
    %c0_i32_0 = arith.constant 0 : i32
    %c0_i32_1 = arith.constant 0 : i32
    return %c0_i32, %c0_i32_0 : i32, i32
  }
  func.func @transform_11(%arg0: i32) -> (i32, i32) {
    %c0_i32 = arith.constant 0 : i32
    %c0_i32_0 = arith.constant 0 : i32
    %c0_i32_1 = arith.constant 0 : i32
    return %c0_i32, %c0_i32_0 : i32, i32
  }
  func.func @transform_12(%arg0: i32) -> (i32, i32) {
    %c0_i32 = arith.constant 0 : i32
    %c0_i32_0 = arith.constant 0 : i32
    %c0_i32_1 = arith.constant 0 : i32
    return %c0_i32, %c0_i32_0 : i32, i32
  }
  func.func @transform_13(%arg0: i32) -> (i32, i32) {
    %c0_i32 = arith.constant 0 : i32
    %c0_i32_0 = arith.constant 0 : i32
    %c0_i32_1 = arith.constant 0 : i32
    return %c0_i32, %c0_i32_0 : i32, i32
  }
  func.func @transform_14(%arg0: i32) -> (i32, i32, i32) {
    %c0_i32 = arith.constant 0 : i32
    %c0_i32_0 = arith.constant 0 : i32
    %c0_i32_1 = arith.constant 0 : i32
    %c0_i32_2 = arith.constant 0 : i32
    return %c0_i32, %c0_i32_0, %c0_i32_1 : i32, i32, i32
  }
  func.func @transform_15(%arg0: i32) -> (i32, i32, i32) {
    %c0_i32 = arith.constant 0 : i32
    %c0_i32_0 = arith.constant 0 : i32
    %c0_i32_1 = arith.constant 0 : i32
    %c0_i32_2 = arith.constant 0 : i32
    return %c0_i32, %c0_i32_0, %c0_i32_1 : i32, i32, i32
  }
  func.func @transform_16(%arg0: i32) -> (i32, i32, i32, i32) {
    %c0_i32 = arith.constant 0 : i32
    %c0_i32_0 = arith.constant 0 : i32
    %c0_i32_1 = arith.constant 0 : i32
    %c0_i32_2 = arith.constant 0 : i32
    %c0_i32_3 = arith.constant 0 : i32
    return %c0_i32, %c0_i32_0, %c0_i32_1, %c0_i32_2 : i32, i32, i32, i32
  }
  func.func @transform_17(%arg0: i32) -> (i32, i32, i32) {
    %c0_i32 = arith.constant 0 : i32
    %c0_i32_0 = arith.constant 0 : i32
    %c0_i32_1 = arith.constant 0 : i32
    %c0_i32_2 = arith.constant 0 : i32
    return %c0_i32, %c0_i32_0, %c0_i32_1 : i32, i32, i32
  }
  func.func @transform_18(%arg0: i32) -> (i32, i32, i32) {
    %c0_i32 = arith.constant 0 : i32
    %c0_i32_0 = arith.constant 0 : i32
    %c0_i32_1 = arith.constant 0 : i32
    %c0_i32_2 = arith.constant 0 : i32
    return %c0_i32, %c0_i32_0, %c0_i32_1 : i32, i32, i32
  }
  func.func @transform_19(%arg0: i32) -> (i32, i32, i32) {
    %c0_i32 = arith.constant 0 : i32
    %c0_i32_0 = arith.constant 0 : i32
    %c0_i32_1 = arith.constant 0 : i32
    %c0_i32_2 = arith.constant 0 : i32
    return %c0_i32, %c0_i32_0, %c0_i32_1 : i32, i32, i32
  }
  func.func @transform_20(%arg0: i32) -> (i32, i32, i32) {
    %c0_i32 = arith.constant 0 : i32
    %c0_i32_0 = arith.constant 0 : i32
    %c0_i32_1 = arith.constant 0 : i32
    %c0_i32_2 = arith.constant 0 : i32
    return %c0_i32, %c0_i32_0, %c0_i32_1 : i32, i32, i32
  }
  func.func @transform_21(%arg0: i32) -> (i32, i32, i32) {
    %c0_i32 = arith.constant 0 : i32
    %c0_i32_0 = arith.constant 0 : i32
    %c0_i32_1 = arith.constant 0 : i32
    %c0_i32_2 = arith.constant 0 : i32
    return %c0_i32, %c0_i32_0, %c0_i32_1 : i32, i32, i32
  }
  func.func @transform_22(%arg0: i32) -> (i32, i32, i32) {
    %c0_i32 = arith.constant 0 : i32
    %c0_i32_0 = arith.constant 0 : i32
    %c0_i32_1 = arith.constant 0 : i32
    %c0_i32_2 = arith.constant 0 : i32
    return %c0_i32, %c0_i32_0, %c0_i32_1 : i32, i32, i32
  }
  func.func @transform_23(%arg0: i32) -> (i32, i32, i32) {
    %c0_i32 = arith.constant 0 : i32
    %c0_i32_0 = arith.constant 0 : i32
    %c0_i32_1 = arith.constant 0 : i32
    %c0_i32_2 = arith.constant 0 : i32
    return %c0_i32, %c0_i32_0, %c0_i32_1 : i32, i32, i32
  }
  func.func @transform_24(%arg0: i32) -> (i32, i32, i32) {
    %c0_i32 = arith.constant 0 : i32
    %c0_i32_0 = arith.constant 0 : i32
    %c0_i32_1 = arith.constant 0 : i32
    %c0_i32_2 = arith.constant 0 : i32
    return %c0_i32, %c0_i32_0, %c0_i32_1 : i32, i32, i32
  }
  func.func @transform_25(%arg0: i32) -> (i32, i32, i32) {
    %c0_i32 = arith.constant 0 : i32
    %c0_i32_0 = arith.constant 0 : i32
    %c0_i32_1 = arith.constant 0 : i32
    %c0_i32_2 = arith.constant 0 : i32
    return %c0_i32, %c0_i32_0, %c0_i32_1 : i32, i32, i32
  }
  func.func @transform_26(%arg0: i32) -> (i32, i32) {
    %c0_i32 = arith.constant 0 : i32
    %c0_i32_0 = arith.constant 0 : i32
    %c0_i32_1 = arith.constant 0 : i32
    return %c0_i32, %c0_i32_0 : i32, i32
  }
  func.func @transform_27(%arg0: i32) -> (i32, i32) {
    %c0_i32 = arith.constant 0 : i32
    %c0_i32_0 = arith.constant 0 : i32
    %c0_i32_1 = arith.constant 0 : i32
    return %c0_i32, %c0_i32_0 : i32, i32
  }
  func.func @transform_28(%arg0: i32) -> (i32, i32) {
    %c0_i32 = arith.constant 0 : i32
    %c0_i32_0 = arith.constant 0 : i32
    %c0_i32_1 = arith.constant 0 : i32
    return %c0_i32, %c0_i32_0 : i32, i32
  }
  func.func @transform_29(%arg0: i32) -> (i32, i32) {
    %c0_i32 = arith.constant 0 : i32
    %c0_i32_0 = arith.constant 0 : i32
    %c0_i32_1 = arith.constant 0 : i32
    return %c0_i32, %c0_i32_0 : i32, i32
  }
  func.func @transform_30(%arg0: i32) -> (i32, i32) {
    %c0_i32 = arith.constant 0 : i32
    %c0_i32_0 = arith.constant 0 : i32
    %c0_i32_1 = arith.constant 0 : i32
    return %c0_i32, %c0_i32_0 : i32, i32
  }
  func.func @transform_31(%arg0: i32) -> (i32, i32) {
    %c0_i32 = arith.constant 0 : i32
    %c0_i32_0 = arith.constant 0 : i32
    %c0_i32_1 = arith.constant 0 : i32
    return %c0_i32, %c0_i32_0 : i32, i32
  }
  func.func @transform_32(%arg0: i32) -> (i32, i32) {
    %c0_i32 = arith.constant 0 : i32
    %c0_i32_0 = arith.constant 0 : i32
    %c0_i32_1 = arith.constant 0 : i32
    return %c0_i32, %c0_i32_0 : i32, i32
  }
  func.func @transform_33(%arg0: i32) -> (i32, i32) {
    %c0_i32 = arith.constant 0 : i32
    %c0_i32_0 = arith.constant 0 : i32
    %c0_i32_1 = arith.constant 0 : i32
    return %c0_i32, %c0_i32_0 : i32, i32
  }
  func.func @transform_34(%arg0: i32) -> (i32, i32) {
    %c0_i32 = arith.constant 0 : i32
    %c0_i32_0 = arith.constant 0 : i32
    %c0_i32_1 = arith.constant 0 : i32
    return %c0_i32, %c0_i32_0 : i32, i32
  }
  func.func @transform_35(%arg0: i32) -> (i32, i32) {
    %c0_i32 = arith.constant 0 : i32
    %c0_i32_0 = arith.constant 0 : i32
    %c0_i32_1 = arith.constant 0 : i32
    return %c0_i32, %c0_i32_0 : i32, i32
  }
  func.func @transform_36(%arg0: i32) -> (i32, i32) {
    %c0_i32 = arith.constant 0 : i32
    %c0_i32_0 = arith.constant 0 : i32
    return %arg0, %c0_i32 : i32, i32
  }
}

</mosaic_0001>

<llo_original>
// kernel: tpu_custom_call.1
$region0: #{tpu_custom_call.1}
  #allocation0 [shape = 'u32[]', space=smem, size = 0x4, offset = 0x4, fixed_abs, tag = 'smem constant byte address 0x4 - core index']
  #allocation1 [shape = 'u32[144,128]{1,0:T(1,128)}', space=vmem, size = 0x12000, scoped, tag = 'internal scratch']
  %s0 = inlined_call_operand.smem [shape: u32[37], index: -1, kind: input, shape index: {}]
  %s1 = sld [smem:[%s0]]
  %s2 = scalar_lea.smem %s0, 1
  %s3 = sld [smem:[%s2]]
  %s4 = scalar_lea.smem %s0, 2
  %s5 = sld [smem:[%s4]]
  %s6 = scalar_lea.smem %s0, 3
  %s7 = sld [smem:[%s6]]
  %s8 = scalar_lea.smem %s0, 4
  %s9 = sld [smem:[%s8]]
  %s10 = scalar_lea.smem %s0, 5
  %s11 = sld [smem:[%s10]]
  %s12 = scalar_lea.smem %s0, 6
  %s13 = sld [smem:[%s12]]
  %s14 = scalar_lea.smem %s0, 7
  %s15 = sld [smem:[%s14]]
  %s16 = scalar_lea.smem %s0, 8
  %s17 = sld [smem:[%s16]]
  %s18 = scalar_lea.smem %s0, 9
  %s19 = sld [smem:[%s18]]
  %s20 = scalar_lea.smem %s0, 10
  %s21 = sld [smem:[%s20]]
  %s22 = scalar_lea.smem %s0, 11
  %s23 = sld [smem:[%s22]]
  %s24 = scalar_lea.smem %s0, 12
  %s25 = sld [smem:[%s24]]
  %s26 = scalar_lea.smem %s0, 13
  %s27 = sld [smem:[%s26]]
  %s28 = scalar_lea.smem %s0, 14
  %s29 = sld [smem:[%s28]]
  %s30 = scalar_lea.smem %s0, 15
  %s31 = sld [smem:[%s30]]
  %s32 = scalar_lea.smem %s0, 16
  %s33 = sld [smem:[%s32]]
  %s34 = scalar_lea.smem %s0, 17
  %s35 = sld [smem:[%s34]]
  %s36 = scalar_lea.smem %s0, 18
  %s37 = sld [smem:[%s36]]
  %s38 = scalar_lea.smem %s0, 19
  %s39 = sld [smem:[%s38]]
  %s40 = scalar_lea.smem %s0, 20
  %s41 = sld [smem:[%s40]]
  %s42 = scalar_lea.smem %s0, 21
  %s43 = sld [smem:[%s42]]
  %s44 = scalar_lea.smem %s0, 22
  %s45 = sld [smem:[%s44]]
  %s46 = scalar_lea.smem %s0, 23
  %s47 = sld [smem:[%s46]]
  %s48 = scalar_lea.smem %s0, 24
  %s49 = sld [smem:[%s48]]
  %s50 = scalar_lea.smem %s0, 25
  %s51 = sld [smem:[%s50]]
  %s52 = scalar_lea.smem %s0, 26
  %s53 = sld [smem:[%s52]]
  %s54 = scalar_lea.smem %s0, 27
  %s55 = sld [smem:[%s54]]
  %s56 = scalar_lea.smem %s0, 28
  %s57 = sld [smem:[%s56]]
  %s58 = scalar_lea.smem %s0, 29
  %s59 = sld [smem:[%s58]]
  %s60 = scalar_lea.smem %s0, 30
  %s61 = sld [smem:[%s60]]
  %s62 = scalar_lea.smem %s0, 31
  %s63 = sld [smem:[%s62]]
  %s64 = scalar_lea.smem %s0, 32
  %s65 = sld [smem:[%s64]]
  %s66 = scalar_lea.smem %s0, 33
  %s67 = sld [smem:[%s66]]
  %s68 = scalar_lea.smem %s0, 34
  %s69 = sld [smem:[%s68]]
  %s70 = scalar_lea.smem %s0, 35
  %s71 = sld [smem:[%s70]]
  %s72 = scalar_lea.smem %s0, 36
  %s73 = sld [smem:[%s72]]
  %s74 = sld [smem:[#allocation0]]
  $region205: #{tpu_custom_call.1} parent=0
    _
  %s76 = ssub.s32 1, %s74
  %s77 = scalar_select 0, %s76, %s74
  $region1: #{tpu_custom_call.1} parent=0
    #allocation2 [shape = 'u8[1024]{0}', space=vmem, size = 0x400, scoped, tag = 'input window, operand 1, single buffered']
    #allocation3 [shape = 's32[1]{0}', space=sflag, size = 0x4, scoped, tag = 'scoped memory for tpu_custom_call.1']
    #allocation4 [shape = 's32[1]{0}', space=sflag, size = 0x4, scoped, tag = 'scoped memory for tpu_custom_call.1']
    #allocation5 [shape = 'u8[512]{0}', space=vmem, size = 0x400, scoped, tag = 'input window, operand 2, single buffered']
    #allocation6 [shape = 's32[1]{0}', space=sflag, size = 0x4, scoped, tag = 'scoped memory for tpu_custom_call.1']
    #allocation7 [shape = 'u8[512]{0}', space=vmem, size = 0x400, scoped, tag = 'input window, operand 3, single buffered']
    #allocation8 [shape = 'u8[512]{0}', space=vmem, size = 0x400, scoped, tag = 'input window, operand 4, single buffered']
    #allocation9 [shape = 's32[1]{0}', space=sflag, size = 0x4, scoped, tag = 'scoped memory for tpu_custom_call.1']
    #allocation10 [shape = 'u8[512]{0}', space=vmem, size = 0x400, scoped, tag = 'input window, operand 6, single buffered']
    #allocation11 [shape = 'u8[512]{0}', space=vmem, size = 0x400, scoped, tag = 'input window, operand 7, single buffered']
    #allocation12 [shape = 's32[1]{0}', space=sflag, size = 0x4, scoped, tag = 'scoped memory for tpu_custom_call.1']
    #allocation13 [shape = 'u8[512]{0}', space=vmem, size = 0x400, scoped, tag = 'input window, operand 8, single buffered']
    #allocation14 [shape = 'u8[4096]{0}', space=vmem, size = 0x1000, scoped, tag = 'input window, operand 9, single buffered']
    #allocation15 [shape = 's32[1]{0}', space=sflag, size = 0x4, scoped, tag = 'scoped memory for tpu_custom_call.1']
    #allocation16 [shape = 'u8[512]{0}', space=vmem, size = 0x400, scoped, tag = 'input window, operand 11, single buffered']
    #allocation17 [shape = 'u8[512]{0}', space=vmem, size = 0x400, scoped, tag = 'input window, operand 12, single buffered']
    #allocation18 [shape = 's32[1]{0}', space=sflag, size = 0x4, scoped, tag = 'scoped memory for tpu_custom_call.1']
    #allocation19 [shape = 'u8[512]{0}', space=vmem, size = 0x400, scoped, tag = 'input window, operand 13, single buffered']
    #allocation20 [shape = 'u8[1024]{0}', space=vmem, size = 0x400, scoped, tag = 'output window, operand 0, single buffered']
    %78 = vsyncpa [#allocation3], 0
    %79 = vsyncpa [#allocation6], 0
    %80 = vsyncpa [#allocation9], 0
    %81 = vsyncpa [#allocation12], 0
    %82 = vsyncpa [#allocation15], 0
    %83 = vsyncpa [#allocation18], 0
    %84 = vsyncpa [#allocation4], 0
    // Predicated region
    $region2: #{tpu_custom_call.1} parent=1 // pred_check
      _
    $region3: #{tpu_custom_call.1} parent=1 // pred_check_branch
      %86 = sbr.rel (0) target = $region5
    $region4: #{tpu_custom_call.1} parent=1 // pred_region
      _
    $region5: #{tpu_custom_call.1} parent=1 // pred_fallthru
      _
    // Predicated region
    $region6: #{tpu_custom_call.1} parent=1 // pred_check
      _
    $region7: #{tpu_custom_call.1} parent=1 // pred_check_branch
      %88 = sbr.rel (0) target = $region9
    $region8: #{tpu_custom_call.1} parent=1 // pred_region
      %s90 = ssub.s32 32, 32
      %91 = vsyncadd [#allocation3], %s90
      %s93 = sshll.u32 [#allocation2], 4
      %s94 = int_to_ptr.vmem [resolvable:$true] %s93
      %96 = dma.hbm_to_vmem [thread:$0]  %s3, 32, %s94, [#allocation3]
    $region9: #{tpu_custom_call.1} parent=1 // pred_fallthru
      _
    // Predicated region
    $region10: #{tpu_custom_call.1} parent=1 // pred_check
      _
    $region11: #{tpu_custom_call.1} parent=1 // pred_check_branch
      %98 = sbr.rel (0) target = $region13
    $region12: #{tpu_custom_call.1} parent=1 // pred_region
      %s100 = ssub.s32 16, 16
      %101 = vsyncadd [#allocation6], %s100
      %s103 = sshll.u32 [#allocation5], 4
      %s104 = int_to_ptr.vmem [resolvable:$true] %s103
      %106 = dma.hbm_to_vmem [thread:$0]  %s5, 16, %s104, [#allocation6]
    $region13: #{tpu_custom_call.1} parent=1 // pred_fallthru
      _
    // Predicated region
    $region14: #{tpu_custom_call.1} parent=1 // pred_check
      _
    $region15: #{tpu_custom_call.1} parent=1 // pred_check_branch
      %108 = sbr.rel (0) target = $region17
    $region16: #{tpu_custom_call.1} parent=1 // pred_region
      %s110 = ssub.s32 16, 16
      %111 = vsyncadd [#allocation6], %s110
      %s113 = sshll.u32 [#allocation7], 4
      %s114 = int_to_ptr.vmem [resolvable:$true] %s113
      %116 = dma.hbm_to_vmem [thread:$0]  %s7, 16, %s114, [#allocation6]
    $region17: #{tpu_custom_call.1} parent=1 // pred_fallthru
      _
    // Predicated region
    $region18: #{tpu_custom_call.1} parent=1 // pred_check
      _
    $region19: #{tpu_custom_call.1} parent=1 // pred_check_branch
      %118 = sbr.rel (0) target = $region21
    $region20: #{tpu_custom_call.1} parent=1 // pred_region
      %s120 = ssub.s32 16, 16
      %121 = vsyncadd [#allocation9], %s120
      %s123 = sshll.u32 [#allocation8], 4
      %s124 = int_to_ptr.vmem [resolvable:$true] %s123
      %126 = dma.hbm_to_vmem [thread:$0]  %s9, 16, %s124, [#allocation9]
    $region21: #{tpu_custom_call.1} parent=1 // pred_fallthru
      _
    // Predicated region
    $region22: #{tpu_custom_call.1} parent=1 // pred_check
      _
    $region23: #{tpu_custom_call.1} parent=1 // pred_check_branch
      %128 = sbr.rel (0) target = $region25
    $region24: #{tpu_custom_call.1} parent=1 // pred_region
      _
    $region25: #{tpu_custom_call.1} parent=1 // pred_fallthru
      _
    // Predicated region
    $region26: #{tpu_custom_call.1} parent=1 // pred_check
      _
    $region27: #{tpu_custom_call.1} parent=1 // pred_check_branch
      %130 = sbr.rel (0) target = $region29
    $region28: #{tpu_custom_call.1} parent=1 // pred_region
      %s132 = ssub.s32 16, 16
      %133 = vsyncadd [#allocation9], %s132
      %s135 = sshll.u32 [#allocation10], 4
      %s136 = int_to_ptr.vmem [resolvable:$true] %s135
      %138 = dma.hbm_to_vmem [thread:$0]  %s13, 16, %s136, [#allocation9]
    $region29: #{tpu_custom_call.1} parent=1 // pred_fallthru
      _
    // Predicated region
    $region30: #{tpu_custom_call.1} parent=1 // pred_check
      _
    $region31: #{tpu_custom_call.1} parent=1 // pred_check_branch
      %140 = sbr.rel (0) target = $region33
    $region32: #{tpu_custom_call.1} parent=1 // pred_region
      %s142 = ssub.s32 16, 16
      %143 = vsyncadd [#allocation12], %s142
      %s145 = sshll.u32 [#allocation11], 4
      %s146 = int_to_ptr.vmem [resolvable:$true] %s145
      %148 = dma.hbm_to_vmem [thread:$0]  %s15, 16, %s146, [#allocation12]
    $region33: #{tpu_custom_call.1} parent=1 // pred_fallthru
      _
    // Predicated region
    $region34: #{tpu_custom_call.1} parent=1 // pred_check
      _
    $region35: #{tpu_custom_call.1} parent=1 // pred_check_branch
      %150 = sbr.rel (0) target = $region37
    $region36: #{tpu_custom_call.1} parent=1 // pred_region
      %s152 = ssub.s32 16, 16
      %153 = vsyncadd [#allocation12], %s152
      %s155 = sshll.u32 [#allocation13], 4
      %s156 = int_to_ptr.vmem [resolvable:$true] %s155
      %158 = dma.hbm_to_vmem [thread:$0]  %s17, 16, %s156, [#allocation12]
    $region37: #{tpu_custom_call.1} parent=1 // pred_fallthru
      _
    // Predicated region
    $region38: #{tpu_custom_call.1} parent=1 // pred_check
      _
    $region39: #{tpu_custom_call.1} parent=1 // pred_check_branch
      %160 = sbr.rel (0) target = $region41
    $region40: #{tpu_custom_call.1} parent=1 // pred_region
      %s162 = ssub.s32 128, 128
      %163 = vsyncadd [#allocation15], %s162
      %s165 = sshll.u32 [#allocation14], 4
      %s166 = int_to_ptr.vmem [resolvable:$true] %s165
      %168 = dma.hbm_to_vmem [thread:$0]  %s19, 128, %s166, [#allocation15]
    $region41: #{tpu_custom_call.1} parent=1 // pred_fallthru
      _
    // Predicated region
    $region42: #{tpu_custom_call.1} parent=1 // pred_check
      _
    $region43: #{tpu_custom_call.1} parent=1 // pred_check_branch
      %170 = sbr.rel (0) target = $region45
    $region44: #{tpu_custom_call.1} parent=1 // pred_region
      _
    $region45: #{tpu_custom_call.1} parent=1 // pred_fallthru
      _
    // Predicated region
    $region46: #{tpu_custom_call.1} parent=1 // pred_check
      _
    $region47: #{tpu_custom_call.1} parent=1 // pred_check_branch
      %172 = sbr.rel (0) target = $region49
    $region48: #{tpu_custom_call.1} parent=1 // pred_region
      %s174 = ssub.s32 16, 16
      %175 = vsyncadd [#allocation15], %s174
      %s177 = sshll.u32 [#allocation16], 4
      %s178 = int_to_ptr.vmem [resolvable:$true] %s177
      %180 = dma.hbm_to_vmem [thread:$0]  %s23, 16, %s178, [#allocation15]
    $region49: #{tpu_custom_call.1} parent=1 // pred_fallthru
      _
    // Predicated region
    $region50: #{tpu_custom_call.1} parent=1 // pred_check
      _
    $region51: #{tpu_custom_call.1} parent=1 // pred_check_branch
      %182 = sbr.rel (0) target = $region53
    $region52: #{tpu_custom_call.1} parent=1 // pred_region
      %s184 = ssub.s32 16, 16
      %185 = vsyncadd [#allocation18], %s184
      %s187 = sshll.u32 [#allocation17], 4
      %s188 = int_to_ptr.vmem [resolvable:$true] %s187
      %190 = dma.hbm_to_vmem [thread:$0]  %s25, 16, %s188, [#allocation18]
    $region53: #{tpu_custom_call.1} parent=1 // pred_fallthru
      _
    // Predicated region
    $region54: #{tpu_custom_call.1} parent=1 // pred_check
      _
    $region55: #{tpu_custom_call.1} parent=1 // pred_check_branch
      %192 = sbr.rel (0) target = $region57
    $region56: #{tpu_custom_call.1} parent=1 // pred_region
      %s194 = ssub.s32 16, 16
      %195 = vsyncadd [#allocation18], %s194
      %s197 = sshll.u32 [#allocation19], 4
      %s198 = int_to_ptr.vmem [resolvable:$true] %s197
      %200 = dma.hbm_to_vmem [thread:$0]  %s27, 16, %s198, [#allocation18]
    $region57: #{tpu_custom_call.1} parent=1 // pred_fallthru
      _
    // Predicated region
    $region58: #{tpu_custom_call.1} parent=1 // pred_check
      _
    $region59: #{tpu_custom_call.1} parent=1 // pred_check_branch
      %202 = sbr.rel (0) target = $region61
    $region60: #{tpu_custom_call.1} parent=1 // pred_region
      _
    $region61: #{tpu_custom_call.1} parent=1 // pred_fallthru
      _
    // Predicated region
    $region62: #{tpu_custom_call.1} parent=1 // pred_check
      _
    $region63: #{tpu_custom_call.1} parent=1 // pred_check_branch
      %204 = sbr.rel (0) target = $region65
    $region64: #{tpu_custom_call.1} parent=1 // pred_region
      _
    $region65: #{tpu_custom_call.1} parent=1 // pred_fallthru
      _
    // Predicated region
    $region66: #{tpu_custom_call.1} parent=1 // pred_check
      _
    $region67: #{tpu_custom_call.1} parent=1 // pred_check_branch
      %206 = sbr.rel (0) target = $region69
    $region68: #{tpu_custom_call.1} parent=1 // pred_region
      _
    $region69: #{tpu_custom_call.1} parent=1 // pred_fallthru
      _
    // Predicated region
    $region70: #{tpu_custom_call.1} parent=1 // pred_check
      _
    $region71: #{tpu_custom_call.1} parent=1 // pred_check_branch
      %208 = sbr.rel (0) target = $region73
    $region72: #{tpu_custom_call.1} parent=1 // pred_region
      _
    $region73: #{tpu_custom_call.1} parent=1 // pred_fallthru
      _
    // Predicated region
    $region74: #{tpu_custom_call.1} parent=1 // pred_check
      _
    $region75: #{tpu_custom_call.1} parent=1 // pred_check_branch
      %210 = sbr.rel (0) target = $region77
    $region76: #{tpu_custom_call.1} parent=1 // pred_region
      _
    $region77: #{tpu_custom_call.1} parent=1 // pred_fallthru
      _
    // Predicated region
    $region78: #{tpu_custom_call.1} parent=1 // pred_check
      _
    $region79: #{tpu_custom_call.1} parent=1 // pred_check_branch
      %212 = sbr.rel (0) target = $region81
    $region80: #{tpu_custom_call.1} parent=1 // pred_region
      _
    $region81: #{tpu_custom_call.1} parent=1 // pred_fallthru
      _
    // Predicated region
    $region82: #{tpu_custom_call.1} parent=1 // pred_check
      _
    $region83: #{tpu_custom_call.1} parent=1 // pred_check_branch
      %214 = sbr.rel (0) target = $region85
    $region84: #{tpu_custom_call.1} parent=1 // pred_region
      _
    $region85: #{tpu_custom_call.1} parent=1 // pred_fallthru
      _
    // Predicated region
    $region86: #{tpu_custom_call.1} parent=1 // pred_check
      _
    $region87: #{tpu_custom_call.1} parent=1 // pred_check_branch
      %216 = sbr.rel (0) target = $region89
    $region88: #{tpu_custom_call.1} parent=1 // pred_region
      _
    $region89: #{tpu_custom_call.1} parent=1 // pred_fallthru
      _
    // Predicated region
    $region90: #{tpu_custom_call.1} parent=1 // pred_check
      _
    $region91: #{tpu_custom_call.1} parent=1 // pred_check_branch
      %218 = sbr.rel (0) target = $region93
    $region92: #{tpu_custom_call.1} parent=1 // pred_region
      _
    $region93: #{tpu_custom_call.1} parent=1 // pred_fallthru
      _
    // Predicated region
    $region94: #{tpu_custom_call.1} parent=1 // pred_check
      _
    $region95: #{tpu_custom_call.1} parent=1 // pred_check_branch
      %220 = sbr.rel (0) target = $region97
    $region96: #{tpu_custom_call.1} parent=1 // pred_region
      _
    $region97: #{tpu_custom_call.1} parent=1 // pred_fallthru
      _
    // Predicated region
    $region98: #{tpu_custom_call.1} parent=1 // pred_check
      _
    $region99: #{tpu_custom_call.1} parent=1 // pred_check_branch
      %222 = sbr.rel (0) target = $region101
    $region100: #{tpu_custom_call.1} parent=1 // pred_region
      _
    $region101: #{tpu_custom_call.1} parent=1 // pred_fallthru
      _
    // Predicated region
    $region102: #{tpu_custom_call.1} parent=1 // pred_check
      _
    $region103: #{tpu_custom_call.1} parent=1 // pred_check_branch
      %224 = sbr.rel (0) target = $region105
    $region104: #{tpu_custom_call.1} parent=1 // pred_region
      _
    $region105: #{tpu_custom_call.1} parent=1 // pred_fallthru
      _
    // Predicated region
    $region106: #{tpu_custom_call.1} parent=1 // pred_check
      _
    $region107: #{tpu_custom_call.1} parent=1 // pred_check_branch
      %226 = sbr.rel (0) target = $region109
    $region108: #{tpu_custom_call.1} parent=1 // pred_region
      _
    $region109: #{tpu_custom_call.1} parent=1 // pred_fallthru
      _
    // Predicated region
    $region110: #{tpu_custom_call.1} parent=1 // pred_check
      _
    $region111: #{tpu_custom_call.1} parent=1 // pred_check_branch
      %228 = sbr.rel (0) target = $region113
    $region112: #{tpu_custom_call.1} parent=1 // pred_region
      _
    $region113: #{tpu_custom_call.1} parent=1 // pred_fallthru
      _
    // Predicated region
    $region114: #{tpu_custom_call.1} parent=1 // pred_check
      _
    $region115: #{tpu_custom_call.1} parent=1 // pred_check_branch
      %230 = sbr.rel (0) target = $region117
    $region116: #{tpu_custom_call.1} parent=1 // pred_region
      _
    $region117: #{tpu_custom_call.1} parent=1 // pred_fallthru
      _
    // Predicated region
    $region118: #{tpu_custom_call.1} parent=1 // pred_check
      _
    $region119: #{tpu_custom_call.1} parent=1 // pred_check_branch
      %232 = sbr.rel (0) target = $region121
    $region120: #{tpu_custom_call.1} parent=1 // pred_region
      _
    $region121: #{tpu_custom_call.1} parent=1 // pred_fallthru
      _
    // Predicated region
    $region122: #{tpu_custom_call.1} parent=1 // pred_check
      _
    $region123: #{tpu_custom_call.1} parent=1 // pred_check_branch
      %234 = sbr.rel (0) target = $region125
    $region124: #{tpu_custom_call.1} parent=1 // pred_region
      _
    $region125: #{tpu_custom_call.1} parent=1 // pred_fallthru
      _
    // Predicated region
    $region126: #{tpu_custom_call.1} parent=1 // pred_check
      _
    $region127: #{tpu_custom_call.1} parent=1 // pred_check_branch
      %236 = sbr.rel (0) target = $region129
    $region128: #{tpu_custom_call.1} parent=1 // pred_region
      _
    $region129: #{tpu_custom_call.1} parent=1 // pred_fallthru
      _
    // Predicated region
    $region130: #{tpu_custom_call.1} parent=1 // pred_check
      _
    $region131: #{tpu_custom_call.1} parent=1 // pred_check_branch
      %238 = sbr.rel (0) target = $region133
    $region132: #{tpu_custom_call.1} parent=1 // pred_region
      _
    $region133: #{tpu_custom_call.1} parent=1 // pred_fallthru
      _
    // Predicated region
    $region134: #{tpu_custom_call.1} parent=1 // pred_check
      _
    $region135: #{tpu_custom_call.1} parent=1 // pred_check_branch
      %240 = sbr.rel (0) target = $region137
    $region136: #{tpu_custom_call.1} parent=1 // pred_region
      _
    $region137: #{tpu_custom_call.1} parent=1 // pred_fallthru
      _
    // Predicated region
    $region138: #{tpu_custom_call.1} parent=1 // pred_check
      _
    $region139: #{tpu_custom_call.1} parent=1 // pred_check_branch
      %242 = sbr.rel (0) target = $region141
    $region140: #{tpu_custom_call.1} parent=1 // pred_region
      _
    $region141: #{tpu_custom_call.1} parent=1 // pred_fallthru
      _
    // Predicated region
    $region142: #{tpu_custom_call.1} parent=1 // pred_check
      _
    $region143: #{tpu_custom_call.1} parent=1 // pred_check_branch
      %244 = sbr.rel (0) target = $region145
    $region144: #{tpu_custom_call.1} parent=1 // pred_region
      _
    $region145: #{tpu_custom_call.1} parent=1 // pred_fallthru
      _
    // Predicated region
    $region146: #{tpu_custom_call.1} parent=1 // pred_check
      _
    $region147: #{tpu_custom_call.1} parent=1 // pred_check_branch
      %246 = sbr.rel (0) target = $region149
    $region148: #{tpu_custom_call.1} parent=1 // pred_region
      %247 = dma.done [#allocation3], 32
    $region149: #{tpu_custom_call.1} parent=1 // pred_fallthru
      _
    // Predicated region
    $region150: #{tpu_custom_call.1} parent=1 // pred_check
      _
    $region151: #{tpu_custom_call.1} parent=1 // pred_check_branch
      %249 = sbr.rel (0) target = $region153
    $region152: #{tpu_custom_call.1} parent=1 // pred_region
      %250 = dma.done [#allocation6], 16
    $region153: #{tpu_custom_call.1} parent=1 // pred_fallthru
      _
    // Predicated region
    $region154: #{tpu_custom_call.1} parent=1 // pred_check
      _
    $region155: #{tpu_custom_call.1} parent=1 // pred_check_branch
      %252 = sbr.rel (0) target = $region157
    $region156: #{tpu_custom_call.1} parent=1 // pred_region
      %253 = dma.done [#allocation6], 16
    $region157: #{tpu_custom_call.1} parent=1 // pred_fallthru
      _
    // Predicated region
    $region158: #{tpu_custom_call.1} parent=1 // pred_check
      _
    $region159: #{tpu_custom_call.1} parent=1 // pred_check_branch
      %255 = sbr.rel (0) target = $region161
    $region160: #{tpu_custom_call.1} parent=1 // pred_region
      %256 = dma.done [#allocation9], 16
    $region161: #{tpu_custom_call.1} parent=1 // pred_fallthru
      _
    // Predicated region
    $region162: #{tpu_custom_call.1} parent=1 // pred_check
      _
    $region163: #{tpu_custom_call.1} parent=1 // pred_check_branch
      %258 = sbr.rel (0) target = $region165
    $region164: #{tpu_custom_call.1} parent=1 // pred_region
      %259 = dma.done [#allocation9], 16
    $region165: #{tpu_custom_call.1} parent=1 // pred_fallthru
      _
    // Predicated region
    $region166: #{tpu_custom_call.1} parent=1 // pred_check
      _
    $region167: #{tpu_custom_call.1} parent=1 // pred_check_branch
      %261 = sbr.rel (0) target = $region169
    $region168: #{tpu_custom_call.1} parent=1 // pred_region
      %262 = dma.done [#allocation12], 16
    $region169: #{tpu_custom_call.1} parent=1 // pred_fallthru
      _
    // Predicated region
    $region170: #{tpu_custom_call.1} parent=1 // pred_check
      _
    $region171: #{tpu_custom_call.1} parent=1 // pred_check_branch
      %264 = sbr.rel (0) target = $region173
    $region172: #{tpu_custom_call.1} parent=1 // pred_region
      %265 = dma.done [#allocation12], 16
    $region173: #{tpu_custom_call.1} parent=1 // pred_fallthru
      _
    // Predicated region
    $region174: #{tpu_custom_call.1} parent=1 // pred_check
      _
    $region175: #{tpu_custom_call.1} parent=1 // pred_check_branch
      %267 = sbr.rel (0) target = $region177
    $region176: #{tpu_custom_call.1} parent=1 // pred_region
      %268 = dma.done [#allocation15], 128
    $region177: #{tpu_custom_call.1} parent=1 // pred_fallthru
      _
    // Predicated region
    $region178: #{tpu_custom_call.1} parent=1 // pred_check
      _
    $region179: #{tpu_custom_call.1} parent=1 // pred_check_branch
      %270 = sbr.rel (0) target = $region181
    $region180: #{tpu_custom_call.1} parent=1 // pred_region
      %271 = dma.done [#allocation15], 16
    $region181: #{tpu_custom_call.1} parent=1 // pred_fallthru
      _
    // Predicated region
    $region182: #{tpu_custom_call.1} parent=1 // pred_check
      _
    $region183: #{tpu_custom_call.1} parent=1 // pred_check_branch
      %273 = sbr.rel (0) target = $region185
    $region184: #{tpu_custom_call.1} parent=1 // pred_region
      %274 = dma.done [#allocation18], 16
    $region185: #{tpu_custom_call.1} parent=1 // pred_fallthru
      _
    // Predicated region
    $region186: #{tpu_custom_call.1} parent=1 // pred_check
      _
    $region187: #{tpu_custom_call.1} parent=1 // pred_check_branch
      %276 = sbr.rel (0) target = $region189
    $region188: #{tpu_custom_call.1} parent=1 // pred_region
      %277 = dma.done [#allocation18], 16
    $region189: #{tpu_custom_call.1} parent=1 // pred_fallthru
      _
    %v279 = vld [vmem:[%s1] sm:$0xff]
    %v280 = vld [vmem:[%s1 + $0x8] sm:$0xff]
    %v281 = vld [vmem:[#allocation2] sm:$0x3]
    %v282 = vld [vmem:[#allocation5] sm:$0x1]
    %v283 = vpack.c.bf16 %v280, %v279
    %v285 = vlaneseq
    %v286 = vshrl.u32 %v285, 7
    %v287 = vsub.s32 0, %v286
    %v288 = vrot.slane %v282, %v287
    %vm290 = vcmask 31744
    %v292 = vsel %vm290, %v283, 0
    %vm294 = vcmask 1041408
    %v296 = vsel %vm294, %v281, 0
    %298 = vmatprep.subr.bf16.mxu0 0
    %299 = vmatpush1.bf16.msra.mxu0 %v296
    %300 = vmatprep.subr.bf16.mxu0 0
    %301 = vmatpush1.bf16.msra.mxu0 0
    %302 = vmatprep.subr.bf16.mxu0 0
    %303 = vmatpush1.bf16.msra.mxu0 0
    %304 = vmatprep.subr.bf16.mxu0 0
    %305 = vmatpush1.bf16.msra.mxu0 0
    %306 = vmatprep.subr.bf16.mxu0 0
    %307 = vmatpush1.bf16.msra.mxu0 0
    %308 = vmatprep.subr.bf16.mxu0 0
    %309 = vmatpush1.bf16.msra.mxu0 0
    %310 = vmatprep.subr.bf16.mxu0 0
    %311 = vmatpush1.bf16.msra.mxu0 0
    %312 = vmatprep.subr.bf16.mxu0 0
    %313 = vmatpush1.bf16.msra.mxu0 0
    %314 = vmatprep.subr.bf16.mxu0 0
    %315 = vmatpush1.bf16.msra.mxu0 0
    %316 = vmatprep.subr.bf16.mxu0 0
    %317 = vmatpush1.bf16.msra.mxu0 0
    %318 = vmatprep.subr.bf16.mxu0 0
    %319 = vmatpush1.bf16.msra.mxu0 0
    %320 = vmatprep.subr.bf16.mxu0 0
    %321 = vmatpush1.bf16.msra.mxu0 0
    %322 = vmatprep.subr.bf16.mxu0 0
    %323 = vmatpush1.bf16.msra.mxu0 0
    %324 = vmatprep.subr.bf16.mxu0 0
    %325 = vmatpush1.bf16.msra.mxu0 0
    %326 = vmatprep.subr.bf16.mxu0 0
    %327 = vmatpush1.bf16.msra.mxu0 0
    %328 = vmatprep.subr.bf16.mxu0 0
    %329 = vmatpush1.bf16.msra.mxu0 0
    %330 = vmatprep.mubr.bf16.mxu0 0
    %331 = vmatmul.mubr.bf16.gmra.mrb[0].mxu0 %v292
    %v332 = vpop.f32.mrb[0].mxu0
    %v333 = vadd.f32 %v288, %v332
    %v334 = vpop.f32.mrb[0].mxu0
    %v335 = vpop.f32.mrb[0].mxu0
    %v336 = vadd.f32 %v288, %v335
    %v337 = vpop.f32.mrb[0].mxu0
    %338 = vdwg.mxu0
    %v339 = vld [vmem:[#allocation7] sm:$0x1]
    %v340 = vld [vmem:[#allocation8] sm:$0x1]
    %vm341 = vcmask 261120
    %v342 = vsel %vm341, %v333, 0.0
    %343 = vadd.xlane.f32.xlu0 %v342
    %v344 = vpop.xlane.xlu0 %343
    %v345 = vsel %vm341, %v336, 0.0
    %346 = vadd.xlane.f32.xlu0 %v345
    %v347 = vpop.xlane.xlu0 %346
    %v348 = vrcp.pop 32.0
    %v349 = vmul.f32 %v344, %v348
    %v350 = vmul.f32 %v347, %v348
    %v351 = vsub.f32 %v333, %v349
    %v352 = vsub.f32 %v336, %v350
    %v353 = vmul.f32 %v351, %v351
    %v354 = vmul.f32 %v352, %v352
    %v355 = vsel %vm341, %v353, 0.0
    %356 = vadd.xlane.f32.xlu0 %v355
    %v357 = vpop.xlane.xlu0 %356
    %v358 = vsel %vm341, %v354, 0.0
    %359 = vadd.xlane.f32.xlu0 %v358
    %v360 = vpop.xlane.xlu0 %359
    %v361 = vmul.f32 %v357, %v348
    %v362 = vmul.f32 %v360, %v348
    %v363 = vadd.f32 %v361, 1e-05
    %v364 = vadd.f32 %v362, 1e-05
    %v365 = vrsqrt.pop %v363
    %v366 = vrsqrt.pop %v364
    %v367 = vmul.f32 %v351, %v365
    %v368 = vmul.f32 %v352, %v366
    %v370 = vlaneseq
    %v371 = vshrl.u32 %v370, 7
    %v372 = vsub.s32 0, %v371
    %v373 = vrot.slane %v339, %v372
    %v375 = vmul.f32 %v367, %v373
    %v376 = vmul.f32 %v368, %v373
    %v378 = vlaneseq
    %v379 = vshrl.u32 %v378, 7
    %v380 = vsub.s32 0, %v379
    %v381 = vrot.slane %v340, %v380
    %v383 = vadd.f32 %v375, %v381
    %v384 = vadd.f32 %v376, %v381
    %v385 = vsel %vm341, %v383, 0.0
    %v386 = vrot.slane %v385, 4
    %v387 = vadd.f32 %v385, %v386
    %v388 = vrot.slane %v387, 2
    %v389 = vadd.f32 %v387, %v388
    %v390 = vrot.slane %v389, 1
    %v391 = vadd.f32 %v389, %v390
    %v392 = vsel %vm341, %v384, 0.0
    %v393 = vrot.slane %v392, 4
    %v394 = vadd.f32 %v392, %v393
    %v395 = vrot.slane %v394, 2
    %v396 = vadd.f32 %v394, %v395
    %v397 = vrot.slane %v396, 1
    %v398 = vadd.f32 %v396, %v397
    %v399 = vrcp.pop 8.0
    %v400 = vmul.f32 %v391, %v399
    %v401 = vmul.f32 %v398, %v399
    %v402 = vld [vmem:[%s11] sm:$0xf]
    %v403 = vld [vmem:[%s11 + $0x4] sm:$0xf]
    %v404 = vld [vmem:[%s11 + $0x8] sm:$0xf]
    %v405 = vld [vmem:[%s11 + $0xc] sm:$0xf]
    %v406 = vld [vmem:[#allocation10] sm:$0x1]
    %v407 = vpack.c.bf16 %v400, %v400
    %v408 = vpack.c.bf16 %v401, %v401
    %v410 = vlaneseq
    %v411 = vshrl.u32 %v410, 7
    %v412 = vsub.s32 0, %v411
    %v413 = vrot.slane %v406, %v412
    %v417 = vunpack.c.l.b16 %v407
    %v418 = vunpack.c.l.b16 %v408
    %vm419 = vcmask 1041409
    %v420 = vsel %vm419, %v418, %v417
    %v421 = vpack.c.b16 %v420, %v420
    %v426 = vunpack.c.l.b16 %v402
    %v427 = vunpack.c.l.b16 %v403
    %v428 = vunpack.c.l.b16 %v404
    %v429 = vunpack.c.l.b16 %v405
    %v430 = vpack.c.b16 %v427, %v426
    %v431 = vpack.c.b16 %v429, %v428
    %v435 = vsel %vm341, %v421, 0
    %437 = vmatprep.subr.bf16.mxu0 0
    %438 = vmatpush1.bf16.msra.mxu0 %v430
    %439 = vmatprep.subr.bf16.mxu0 0
    %440 = vmatpush1.bf16.msra.mxu0 %v431
    %441 = vmatprep.subr.bf16.mxu0 0
    %442 = vmatpush1.bf16.msra.mxu0 0
    %443 = vmatprep.subr.bf16.mxu0 0
    %444 = vmatpush1.bf16.msra.mxu0 0
    %445 = vmatprep.subr.bf16.mxu0 0
    %446 = vmatpush1.bf16.msra.mxu0 0
    %447 = vmatprep.subr.bf16.mxu0 0
    %448 = vmatpush1.bf16.msra.mxu0 0
    %449 = vmatprep.subr.bf16.mxu0 0
    %450 = vmatpush1.bf16.msra.mxu0 0
    %451 = vmatprep.subr.bf16.mxu0 0
    %452 = vmatpush1.bf16.msra.mxu0 0
    %453 = vmatprep.subr.bf16.mxu0 0
    %454 = vmatpush1.bf16.msra.mxu0 0
    %455 = vmatprep.subr.bf16.mxu0 0
    %456 = vmatpush1.bf16.msra.mxu0 0
    %457 = vmatprep.subr.bf16.mxu0 0
    %458 = vmatpush1.bf16.msra.mxu0 0
    %459 = vmatprep.subr.bf16.mxu0 0
    %460 = vmatpush1.bf16.msra.mxu0 0
    %461 = vmatprep.subr.bf16.mxu0 0
    %462 = vmatpush1.bf16.msra.mxu0 0
    %463 = vmatprep.subr.bf16.mxu0 0
    %464 = vmatpush1.bf16.msra.mxu0 0
    %465 = vmatprep.subr.bf16.mxu0 0
    %466 = vmatpush1.bf16.msra.mxu0 0
    %467 = vmatprep.subr.bf16.mxu0 0
    %468 = vmatpush1.bf16.msra.mxu0 0
    %469 = vmatprep.mubr.bf16.mxu0 0
    %470 = vmatmul.mubr.bf16.gmra.mrb[0].mxu0 %v435
    %v471 = vpop.f32.mrb[0].mxu0
    %v472 = vadd.f32 %v413, %v471
    %v473 = vpop.f32.mrb[0].mxu0
    %v474 = vpop.f32.mrb[0].mxu0
    %v475 = vpop.f32.mrb[0].mxu0
    %476 = vdwg.mxu0
    %v477 = vld [vmem:[#allocation11] sm:$0x1]
    %v478 = vld [vmem:[#allocation13] sm:$0x1]
    %vm479 = vcmask 254976
    %v480 = vsel %vm479, %v472, 0.0
    %481 = vadd.xlane.f32.xlu0 %v480
    %v482 = vpop.xlane.xlu0 %481
    %v483 = vmul.f32 %v482, %v348
    %v484 = vsub.f32 %v472, %v483
    %v485 = vmul.f32 %v484, %v484
    %v486 = vsel %vm479, %v485, 0.0
    %487 = vadd.xlane.f32.xlu0 %v486
    %v488 = vpop.xlane.xlu0 %487
    %v489 = vmul.f32 %v488, %v348
    %v490 = vadd.f32 %v489, 1e-05
    %v491 = vrsqrt.pop %v490
    %v492 = vmul.f32 %v484, %v491
    %v494 = vlaneseq
    %v495 = vshrl.u32 %v494, 7
    %v496 = vsub.s32 0, %v495
    %v497 = vrot.slane %v477, %v496
    %v499 = vmul.f32 %v492, %v497
    %v501 = vlaneseq
    %v502 = vshrl.u32 %v501, 7
    %v503 = vsub.s32 0, %v502
    %v504 = vrot.slane %v478, %v503
    %v506 = vadd.f32 %v499, %v504
    %v507 = vmax.f32 %v506, 0.0
    %v510 = vunpack.c.l.s4 1966171168
    %v511 = vunpack.c.0.s8 %v510
    %v512 = vlaneseq
    %v513 = vshrl.u32 %v512, 7
    %v514 = vsub.s32 %v511, %v513
    %v515 = vrot.slane %v507, %v514
    %v516 = vcombine.high %v515, %v515
    %v518 = vunpack.c.l.s4 1966171168
    %v519 = vunpack.c.0.s8 %v518
    %v520 = vlaneseq
    %v521 = vshrl.u32 %v520, 7
    %v522 = vsub.s32 %v519, %v521
    %v523 = vrot.slane %v515, %v522
    %v525 = vunpack.c.l.s4 1966171168
    %v526 = vunpack.c.0.s8 %v525
    %v527 = vlaneseq
    %v528 = vshrl.u32 %v527, 7
    %v529 = vsub.s32 %v526, %v528
    %v530 = vrot.slane %v516, %v529
    %v533 = vmul.f32 %v523, 0.1
    %v534 = vmul.f32 %v530, 0.1
    %v537 = vlaneseq
    %v538 = vshrl.u32 %v537, 7
    %v539 = vsub.s32 0, %v538
    %v540 = vrot.slane %v533, %v539
    %v541 = vlaneseq
    %v542 = vshrl.u32 %v541, 7
    %v543 = vsub.s32 0, %v542
    %v544 = vrot.slane %v534, %v543
    %v547 = vadd.f32 %v383, %v540
    %v548 = vadd.f32 %v384, %v544
    %v549 = vld [vmem:[#allocation14] sm:$0xff]
    %v550 = vadd.f32 %v547, %v549
    %v551 = vadd.f32 %v548, %v549
    %v552 = vld [vmem:[%s21] sm:$0xf]
    %v553 = vld [vmem:[%s21 + $0x4] sm:$0xf]
    %v554 = vld [vmem:[%s21 + $0x8] sm:$0xf]
    %v555 = vld [vmem:[%s21 + $0xc] sm:$0xf]
    %v556 = vld [vmem:[#allocation16] sm:$0x1]
    %v557 = vpack.c.bf16 %v551, %v550
    %v559 = vlaneseq
    %v560 = vshrl.u32 %v559, 7
    %v561 = vsub.s32 0, %v560
    %v562 = vrot.slane %v556, %v561
    %v568 = vunpack.c.l.b16 %v552
    %v569 = vunpack.c.l.b16 %v553
    %v570 = vunpack.c.l.b16 %v554
    %v571 = vunpack.c.l.b16 %v555
    %v572 = vpack.c.b16 %v569, %v568
    %v573 = vpack.c.b16 %v571, %v570
    %v577 = vsel %vm341, %v557, 0
    %579 = vmatprep.subr.bf16.mxu0 0
    %580 = vmatpush1.bf16.msra.mxu0 %v572
    %581 = vmatprep.subr.bf16.mxu0 0
    %582 = vmatpush1.bf16.msra.mxu0 %v573
    %583 = vmatprep.subr.bf16.mxu0 0
    %584 = vmatpush1.bf16.msra.mxu0 0
    %585 = vmatprep.subr.bf16.mxu0 0
    %586 = vmatpush1.bf16.msra.mxu0 0
    %587 = vmatprep.subr.bf16.mxu0 0
    %588 = vmatpush1.bf16.msra.mxu0 0
    %589 = vmatprep.subr.bf16.mxu0 0
    %590 = vmatpush1.bf16.msra.mxu0 0
    %591 = vmatprep.subr.bf16.mxu0 0
    %592 = vmatpush1.bf16.msra.mxu0 0
    %593 = vmatprep.subr.bf16.mxu0 0
    %594 = vmatpush1.bf16.msra.mxu0 0
    %595 = vmatprep.subr.bf16.mxu0 0
    %596 = vmatpush1.bf16.msra.mxu0 0
    %597 = vmatprep.subr.bf16.mxu0 0
    %598 = vmatpush1.bf16.msra.mxu0 0
    %599 = vmatprep.subr.bf16.mxu0 0
    %600 = vmatpush1.bf16.msra.mxu0 0
    %601 = vmatprep.subr.bf16.mxu0 0
    %602 = vmatpush1.bf16.msra.mxu0 0
    %603 = vmatprep.subr.bf16.mxu0 0
    %604 = vmatpush1.bf16.msra.mxu0 0
    %605 = vmatprep.subr.bf16.mxu0 0
    %606 = vmatpush1.bf16.msra.mxu0 0
    %607 = vmatprep.subr.bf16.mxu0 0
    %608 = vmatpush1.bf16.msra.mxu0 0
    %609 = vmatprep.subr.bf16.mxu0 0
    %610 = vmatpush1.bf16.msra.mxu0 0
    %611 = vmatprep.mubr.bf16.mxu0 0
    %612 = vmatmul.mubr.bf16.gmra.mrb[0].mxu0 %v577
    %v613 = vpop.f32.mrb[0].mxu0
    %v614 = vadd.f32 %v562, %v613
    %v615 = vpop.f32.mrb[0].mxu0
    %v616 = vpop.f32.mrb[0].mxu0
    %v617 = vadd.f32 %v562, %v616
    %v618 = vpop.f32.mrb[0].mxu0
    %619 = vdwg.mxu0
    %v620 = vld [vmem:[#allocation17] sm:$0x1]
    %v621 = vld [vmem:[#allocation19] sm:$0x1]
    %v622 = vsel %vm341, %v614, 0.0
    %623 = vadd.xlane.f32.xlu0 %v622
    %v624 = vpop.xlane.xlu0 %623
    %v625 = vsel %vm341, %v617, 0.0
    %626 = vadd.xlane.f32.xlu0 %v625
    %v627 = vpop.xlane.xlu0 %626
    %v628 = vmul.f32 %v624, %v348
    %v629 = vmul.f32 %v627, %v348
    %v630 = vsub.f32 %v614, %v628
    %v631 = vsub.f32 %v617, %v629
    %v632 = vmul.f32 %v630, %v630
    %v633 = vmul.f32 %v631, %v631
    %v634 = vsel %vm341, %v632, 0.0
    %635 = vadd.xlane.f32.xlu0 %v634
    %v636 = vpop.xlane.xlu0 %635
    %v637 = vsel %vm341, %v633, 0.0
    %638 = vadd.xlane.f32.xlu0 %v637
    %v639 = vpop.xlane.xlu0 %638
    %v640 = vmul.f32 %v636, %v348
    %v641 = vmul.f32 %v639, %v348
    %v642 = vadd.f32 %v640, 1e-05
    %v643 = vadd.f32 %v641, 1e-05
    %v644 = vrsqrt.pop %v642
    %v645 = vrsqrt.pop %v643
    %v646 = vmul.f32 %v630, %v644
    %v647 = vmul.f32 %v631, %v645
    %v649 = vlaneseq
    %v650 = vshrl.u32 %v649, 7
    %v651 = vsub.s32 0, %v650
    %v652 = vrot.slane %v620, %v651
    %v654 = vmul.f32 %v646, %v652
    %v655 = vmul.f32 %v647, %v652
    %v657 = vlaneseq
    %v658 = vshrl.u32 %v657, 7
    %v659 = vsub.s32 0, %v658
    %v660 = vrot.slane %v621, %v659
    %v662 = vadd.f32 %v654, %v660
    %v663 = vadd.f32 %v655, %v660
    %v664 = vmul.f32 %v662, 0.5
    %v665 = vmul.f32 %v663, 0.5
    %v666 = vmul.f32 %v662, 0.70710677
    %v667 = vmul.f32 %v663, 0.70710677
    %v668 = verf.f32.pop %v666
    %v669 = verf.f32.pop %v667
    %v670 = vadd.f32 %v668, 1.0
    %v671 = vadd.f32 %v669, 1.0
    %v672 = vmul.f32 %v664, %v670
    %v673 = vmul.f32 %v665, %v671
    loop: start=0, step=1, limit=2
    $region190: #{tpu_custom_call.1} parent=1 // loop_pre_header
      _
    $region191: #{tpu_custom_call.1} parent=1 // loop_header
      %s675 = sphi 0, %s679
      %p676 = scmp.ge.s32.totalorder %s675, 2
      %v680 = vphi %v672, %v2106
      %v681 = vphi %v673, %v2107
    $region192: #{tpu_custom_call.1} parent=1 // loop_header_branch
      %678 = sbr.rel (%p676) target = $region196
    $region193: #{tpu_custom_call.1} parent=1 // loop_body
      %s682 = smul.u32 %s675, 4
      %s683 = smul.addr %s682, 4
      %s684 = scalar_lea.vmem %s29, %s683
      %v685 = vld [vmem:[%s684] sm:$0xf]
      %v686 = vld [vmem:[%s684 + $0x4] sm:$0xf]
      %v687 = vld [vmem:[%s684 + $0x8] sm:$0xf]
      %v688 = vld [vmem:[%s684 + $0xc] sm:$0xf]
      %s689 = scalar_lea.vmem %s31, %s675
      %v690 = vld [vmem:[%s689] sm:$0x1]
      %v691 = vpack.c.bf16 %v681, %v680
      %v693 = vlaneseq
      %v694 = vshrl.u32 %v693, 7
      %v695 = vsub.s32 0, %v694
      %v696 = vrot.slane %v690, %v695
      %v702 = vunpack.c.l.b16 %v685
      %v703 = vunpack.c.l.b16 %v686
      %v704 = vunpack.c.l.b16 %v687
      %v705 = vunpack.c.l.b16 %v688
      %v706 = vpack.c.b16 %v703, %v702
      %v707 = vpack.c.b16 %v705, %v704
      %v711 = vsel %vm341, %v691, 0
      %713 = vmatprep.subr.bf16.mxu0 0
      %714 = vmatpush1.bf16.msra.mxu0 %v706
      %715 = vmatprep.subr.bf16.mxu0 0
      %716 = vmatpush1.bf16.msra.mxu0 %v707
      %717 = vmatprep.subr.bf16.mxu0 0
      %718 = vmatpush1.bf16.msra.mxu0 0
      %719 = vmatprep.subr.bf16.mxu0 0
      %720 = vmatpush1.bf16.msra.mxu0 0
      %721 = vmatprep.subr.bf16.mxu0 0
      %722 = vmatpush1.bf16.msra.mxu0 0
      %723 = vmatprep.subr.bf16.mxu0 0
      %724 = vmatpush1.bf16.msra.mxu0 0
      %725 = vmatprep.subr.bf16.mxu0 0
      %726 = vmatpush1.bf16.msra.mxu0 0
      %727 = vmatprep.subr.bf16.mxu0 0
      %728 = vmatpush1.bf16.msra.mxu0 0
      %729 = vmatprep.subr.bf16.mxu0 0
      %730 = vmatpush1.bf16.msra.mxu0 0
      %731 = vmatprep.subr.bf16.mxu0 0
      %732 = vmatpush1.bf16.msra.mxu0 0
      %733 = vmatprep.subr.bf16.mxu0 0
      %734 = vmatpush1.bf16.msra.mxu0 0
      %735 = vmatprep.subr.bf16.mxu0 0
      %736 = vmatpush1.bf16.msra.mxu0 0
      %737 = vmatprep.subr.bf16.mxu0 0
      %738 = vmatpush1.bf16.msra.mxu0 0
      %739 = vmatprep.subr.bf16.mxu0 0
      %740 = vmatpush1.bf16.msra.mxu0 0
      %741 = vmatprep.subr.bf16.mxu0 0
      %742 = vmatpush1.bf16.msra.mxu0 0
      %743 = vmatprep.subr.bf16.mxu0 0
      %744 = vmatpush1.bf16.msra.mxu0 0
      %745 = vmatprep.mubr.bf16.mxu0 0
      %746 = vmatmul.mubr.bf16.gmra.mrb[0].mxu0 %v711
      %v747 = vpop.f32.mrb[0].mxu0
      %v748 = vadd.f32 %v696, %v747
      %v749 = vpop.f32.mrb[0].mxu0
      %v750 = vpop.f32.mrb[0].mxu0
      %v751 = vadd.f32 %v696, %v750
      %v752 = vpop.f32.mrb[0].mxu0
      %753 = vdwg.mxu0
      %v754 = vpack.c.bf16 %v751, %v748
      %v756 = vunpack.c.l.b16 %v754
      %v757 = vunpack.c.h.b16 %v754
      %v758 = vpack.c.b16 %v756, %v756
      %v759 = vpack.c.b16 %v757, %v757
      %s760 = smul.addr %s682, 4
      %s761 = scalar_lea.vmem %s33, %s760
      %v762 = vld [vmem:[%s761] sm:$0xf]
      %v763 = vld [vmem:[%s761 + $0x4] sm:$0xf]
      %v764 = vld [vmem:[%s761 + $0x8] sm:$0xf]
      %v765 = vld [vmem:[%s761 + $0xc] sm:$0xf]
      %766 = vrot.lane.b32.xlu0 %v758, 96
      %v767 = vpop.permute.xlu0 %766
      %vm768 = vcmask 64512
      %v770 = vsel %vm768, %v758, 0
      %v773 = vsel %vm768, %v767, 0
      %775 = vmatprep.subr.bf16.mxu0 0
      %776 = vmatpush1.bf16.xpose.msra.mxu0 %v773
      %777 = vmatprep.subr.bf16.mxu0 0
      %778 = vmatpush1.bf16.xpose.msra.mxu0 0
      %779 = vmatprep.subr.bf16.mxu0 0
      %780 = vmatpush1.bf16.xpose.msra.mxu0 0
      %781 = vmatprep.subr.bf16.mxu0 0
      %782 = vmatpush1.bf16.xpose.msra.mxu0 0
      %783 = vmatprep.subr.bf16.mxu0 0
      %784 = vmatpush1.bf16.xpose.msra.mxu0 0
      %785 = vmatprep.subr.bf16.mxu0 0
      %786 = vmatpush1.bf16.xpose.msra.mxu0 0
      %787 = vmatprep.subr.bf16.mxu0 0
      %788 = vmatpush1.bf16.xpose.msra.mxu0 0
      %789 = vmatprep.subr.bf16.mxu0 0
      %790 = vmatpush1.bf16.xpose.msra.mxu0 0
      %791 = vmatprep.subr.bf16.mxu0 0
      %792 = vmatpush1.bf16.xpose.msra.mxu0 0
      %793 = vmatprep.subr.bf16.mxu0 0
      %794 = vmatpush1.bf16.xpose.msra.mxu0 0
      %795 = vmatprep.subr.bf16.mxu0 0
      %796 = vmatpush1.bf16.xpose.msra.mxu0 0
      %797 = vmatprep.subr.bf16.mxu0 0
      %798 = vmatpush1.bf16.xpose.msra.mxu0 0
      %799 = vmatprep.subr.bf16.mxu0 0
      %800 = vmatpush1.bf16.xpose.msra.mxu0 0
      %801 = vmatprep.subr.bf16.mxu0 0
      %802 = vmatpush1.bf16.xpose.msra.mxu0 0
      %803 = vmatprep.subr.bf16.mxu0 0
      %804 = vmatpush1.bf16.xpose.msra.mxu0 0
      %805 = vmatprep.subr.bf16.mxu0 0
      %806 = vmatpush1.bf16.xpose.msra.mxu0 0
      %807 = vmatprep.mubr.bf16.mxu0 0
      %808 = vmatmul.mubr.bf16.gmra.mrb[0].mxu0 %v770
      %v809 = vpop.f32.mrb[0].mxu0
      %v810 = vadd.f32 0.0, %v809
      %v811 = vpop.f32.mrb[0].mxu0
      %v812 = vpop.f32.mrb[0].mxu0
      %v813 = vpop.f32.mrb[0].mxu0
      %814 = vdwg.mxu0
      %815 = vrot.lane.b32.xlu0 %v759, 96
      %v816 = vpop.permute.xlu0 %815
      %v818 = vsel %vm768, %v759, 0
      %v821 = vsel %vm768, %v816, 0
      %823 = vmatprep.subr.bf16.mxu0 0
      %824 = vmatpush1.bf16.xpose.msra.mxu0 %v821
      %825 = vmatprep.subr.bf16.mxu0 0
      %826 = vmatpush1.bf16.xpose.msra.mxu0 0
      %827 = vmatprep.subr.bf16.mxu0 0
      %828 = vmatpush1.bf16.xpose.msra.mxu0 0
      %829 = vmatprep.subr.bf16.mxu0 0
      %830 = vmatpush1.bf16.xpose.msra.mxu0 0
      %831 = vmatprep.subr.bf16.mxu0 0
      %832 = vmatpush1.bf16.xpose.msra.mxu0 0
      %833 = vmatprep.subr.bf16.mxu0 0
      %834 = vmatpush1.bf16.xpose.msra.mxu0 0
      %835 = vmatprep.subr.bf16.mxu0 0
      %836 = vmatpush1.bf16.xpose.msra.mxu0 0
      %837 = vmatprep.subr.bf16.mxu0 0
      %838 = vmatpush1.bf16.xpose.msra.mxu0 0
      %839 = vmatprep.subr.bf16.mxu0 0
      %840 = vmatpush1.bf16.xpose.msra.mxu0 0
      %841 = vmatprep.subr.bf16.mxu0 0
      %842 = vmatpush1.bf16.xpose.msra.mxu0 0
      %843 = vmatprep.subr.bf16.mxu0 0
      %844 = vmatpush1.bf16.xpose.msra.mxu0 0
      %845 = vmatprep.subr.bf16.mxu0 0
      %846 = vmatpush1.bf16.xpose.msra.mxu0 0
      %847 = vmatprep.subr.bf16.mxu0 0
      %848 = vmatpush1.bf16.xpose.msra.mxu0 0
      %849 = vmatprep.subr.bf16.mxu0 0
      %850 = vmatpush1.bf16.xpose.msra.mxu0 0
      %851 = vmatprep.subr.bf16.mxu0 0
      %852 = vmatpush1.bf16.xpose.msra.mxu0 0
      %853 = vmatprep.subr.bf16.mxu0 0
      %854 = vmatpush1.bf16.xpose.msra.mxu0 0
      %855 = vmatprep.mubr.bf16.mxu0 0
      %856 = vmatmul.mubr.bf16.gmra.mrb[0].mxu0 %v818
      %v857 = vpop.f32.mrb[0].mxu0
      %v858 = vadd.f32 0.0, %v857
      %v859 = vpop.f32.mrb[0].mxu0
      %v860 = vpop.f32.mrb[0].mxu0
      %v861 = vpop.f32.mrb[0].mxu0
      %862 = vdwg.mxu0
      %v863 = vsel %vm768, %v810, -inf
      %864 = vmax.xlane.f32.xlu0 %v863
      %v865 = vpop.xlane.xlu0 %864
      %v866 = vsel %vm768, %v858, -inf
      %867 = vmax.xlane.f32.xlu0 %v866
      %v868 = vpop.xlane.xlu0 %867
      %v869 = vsub.f32 %v810, %v865
      %v870 = vsub.f32 %v858, %v868
      %v871 = vmul.f32 %v869, 1.442695
      %v872 = vpow.pop %v871
      %v873 = vmul.f32 %v870, 1.442695
      %v874 = vpow.pop %v873
      %v875 = vpack.c.bf16 %v872, %v872
      %v876 = vpack.c.bf16 %v874, %v874
      %877 = vrot.lane.b32.xlu0 %v758, 64
      %v878 = vpop.permute.xlu0 %877
      %v880 = vsel %vm768, %v875, 0
      %vm882 = vcmask 1043456
      %v884 = vsel %vm882, %v878, 0
      %886 = vmatprep.subr.bf16.mxu0 0
      %887 = vmatpush1.bf16.msra.mxu0 %v884
      %888 = vmatprep.subr.bf16.mxu0 0
      %889 = vmatpush1.bf16.msra.mxu0 0
      %890 = vmatprep.subr.bf16.mxu0 0
      %891 = vmatpush1.bf16.msra.mxu0 0
      %892 = vmatprep.subr.bf16.mxu0 0
      %893 = vmatpush1.bf16.msra.mxu0 0
      %894 = vmatprep.subr.bf16.mxu0 0
      %895 = vmatpush1.bf16.msra.mxu0 0
      %896 = vmatprep.subr.bf16.mxu0 0
      %897 = vmatpush1.bf16.msra.mxu0 0
      %898 = vmatprep.subr.bf16.mxu0 0
      %899 = vmatpush1.bf16.msra.mxu0 0
      %900 = vmatprep.subr.bf16.mxu0 0
      %901 = vmatpush1.bf16.msra.mxu0 0
      %902 = vmatprep.subr.bf16.mxu0 0
      %903 = vmatpush1.bf16.msra.mxu0 0
      %904 = vmatprep.subr.bf16.mxu0 0
      %905 = vmatpush1.bf16.msra.mxu0 0
      %906 = vmatprep.subr.bf16.mxu0 0
      %907 = vmatpush1.bf16.msra.mxu0 0
      %908 = vmatprep.subr.bf16.mxu0 0
      %909 = vmatpush1.bf16.msra.mxu0 0
      %910 = vmatprep.subr.bf16.mxu0 0
      %911 = vmatpush1.bf16.msra.mxu0 0
      %912 = vmatprep.subr.bf16.mxu0 0
      %913 = vmatpush1.bf16.msra.mxu0 0
      %914 = vmatprep.subr.bf16.mxu0 0
      %915 = vmatpush1.bf16.msra.mxu0 0
      %916 = vmatprep.subr.bf16.mxu0 0
      %917 = vmatpush1.bf16.msra.mxu0 0
      %918 = vmatprep.mubr.bf16.mxu0 0
      %919 = vmatmul.mubr.bf16.gmra.mrb[0].mxu0 %v880
      %v920 = vpop.f32.mrb[0].mxu0
      %v921 = vadd.f32 0.0, %v920
      %v922 = vpop.f32.mrb[0].mxu0
      %v923 = vpop.f32.mrb[0].mxu0
      %v924 = vpop.f32.mrb[0].mxu0
      %925 = vdwg.mxu0
      %926 = vrot.lane.b32.xlu0 %v759, 64
      %v927 = vpop.permute.xlu0 %926
      %v929 = vsel %vm768, %v876, 0
      %v932 = vsel %vm882, %v927, 0
      %934 = vmatprep.subr.bf16.mxu0 0
      %935 = vmatpush1.bf16.msra.mxu0 %v932
      %936 = vmatprep.subr.bf16.mxu0 0
      %937 = vmatpush1.bf16.msra.mxu0 0
      %938 = vmatprep.subr.bf16.mxu0 0
      %939 = vmatpush1.bf16.msra.mxu0 0
      %940 = vmatprep.subr.bf16.mxu0 0
      %941 = vmatpush1.bf16.msra.mxu0 0
      %942 = vmatprep.subr.bf16.mxu0 0
      %943 = vmatpush1.bf16.msra.mxu0 0
      %944 = vmatprep.subr.bf16.mxu0 0
      %945 = vmatpush1.bf16.msra.mxu0 0
      %946 = vmatprep.subr.bf16.mxu0 0
      %947 = vmatpush1.bf16.msra.mxu0 0
      %948 = vmatprep.subr.bf16.mxu0 0
      %949 = vmatpush1.bf16.msra.mxu0 0
      %950 = vmatprep.subr.bf16.mxu0 0
      %951 = vmatpush1.bf16.msra.mxu0 0
      %952 = vmatprep.subr.bf16.mxu0 0
      %953 = vmatpush1.bf16.msra.mxu0 0
      %954 = vmatprep.subr.bf16.mxu0 0
      %955 = vmatpush1.bf16.msra.mxu0 0
      %956 = vmatprep.subr.bf16.mxu0 0
      %957 = vmatpush1.bf16.msra.mxu0 0
      %958 = vmatprep.subr.bf16.mxu0 0
      %959 = vmatpush1.bf16.msra.mxu0 0
      %960 = vmatprep.subr.bf16.mxu0 0
      %961 = vmatpush1.bf16.msra.mxu0 0
      %962 = vmatprep.subr.bf16.mxu0 0
      %963 = vmatpush1.bf16.msra.mxu0 0
      %964 = vmatprep.subr.bf16.mxu0 0
      %965 = vmatpush1.bf16.msra.mxu0 0
      %966 = vmatprep.mubr.bf16.mxu0 0
      %967 = vmatmul.mubr.bf16.gmra.mrb[0].mxu0 %v929
      %v968 = vpop.f32.mrb[0].mxu0
      %v969 = vadd.f32 0.0, %v968
      %v970 = vpop.f32.mrb[0].mxu0
      %v971 = vpop.f32.mrb[0].mxu0
      %v972 = vpop.f32.mrb[0].mxu0
      %973 = vdwg.mxu0
      %v974 = vsel %vm768, %v872, 0.0
      %975 = vadd.xlane.f32.xlu0 %v974
      %v976 = vpop.xlane.xlu0 %975
      %v977 = vsel %vm768, %v874, 0.0
      %978 = vadd.xlane.f32.xlu0 %v977
      %v979 = vpop.xlane.xlu0 %978
      %v980 = vrcp.pop %v976
      %v981 = vrcp.pop %v979
      %v982 = vmul.f32 %v921, %v980
      %v983 = vmul.f32 %v969, %v981
      %v984 = vpack.c.bf16 %v983, %v982
      %985 = vrot.lane.b32.xlu0 %v758, 120
      %v986 = vpop.permute.xlu0 %985
      %987 = vrot.lane.b32.xlu0 %v758, 88
      %v988 = vpop.permute.xlu0 %987
      %v990 = vsel %vm768, %v986, 0
      %v993 = vsel %vm768, %v988, 0
      %995 = vmatprep.subr.bf16.mxu0 0
      %996 = vmatpush1.bf16.xpose.msra.mxu0 %v993
      %997 = vmatprep.subr.bf16.mxu0 0
      %998 = vmatpush1.bf16.xpose.msra.mxu0 0
      %999 = vmatprep.subr.bf16.mxu0 0
      %1000 = vmatpush1.bf16.xpose.msra.mxu0 0
      %1001 = vmatprep.subr.bf16.mxu0 0
      %1002 = vmatpush1.bf16.xpose.msra.mxu0 0
      %1003 = vmatprep.subr.bf16.mxu0 0
      %1004 = vmatpush1.bf16.xpose.msra.mxu0 0
      %1005 = vmatprep.subr.bf16.mxu0 0
      %1006 = vmatpush1.bf16.xpose.msra.mxu0 0
      %1007 = vmatprep.subr.bf16.mxu0 0
      %1008 = vmatpush1.bf16.xpose.msra.mxu0 0
      %1009 = vmatprep.subr.bf16.mxu0 0
      %1010 = vmatpush1.bf16.xpose.msra.mxu0 0
      %1011 = vmatprep.subr.bf16.mxu0 0
      %1012 = vmatpush1.bf16.xpose.msra.mxu0 0
      %1013 = vmatprep.subr.bf16.mxu0 0
      %1014 = vmatpush1.bf16.xpose.msra.mxu0 0
      %1015 = vmatprep.subr.bf16.mxu0 0
      %1016 = vmatpush1.bf16.xpose.msra.mxu0 0
      %1017 = vmatprep.subr.bf16.mxu0 0
      %1018 = vmatpush1.bf16.xpose.msra.mxu0 0
      %1019 = vmatprep.subr.bf16.mxu0 0
      %1020 = vmatpush1.bf16.xpose.msra.mxu0 0
      %1021 = vmatprep.subr.bf16.mxu0 0
      %1022 = vmatpush1.bf16.xpose.msra.mxu0 0
      %1023 = vmatprep.subr.bf16.mxu0 0
      %1024 = vmatpush1.bf16.xpose.msra.mxu0 0
      %1025 = vmatprep.subr.bf16.mxu0 0
      %1026 = vmatpush1.bf16.xpose.msra.mxu0 0
      %1027 = vmatprep.mubr.bf16.mxu0 0
      %1028 = vmatmul.mubr.bf16.gmra.mrb[0].mxu0 %v990
      %v1029 = vpop.f32.mrb[0].mxu0
      %v1030 = vadd.f32 0.0, %v1029
      %v1031 = vpop.f32.mrb[0].mxu0
      %v1032 = vpop.f32.mrb[0].mxu0
      %v1033 = vpop.f32.mrb[0].mxu0
      %1034 = vdwg.mxu0
      %1035 = vrot.lane.b32.xlu0 %v759, 120
      %v1036 = vpop.permute.xlu0 %1035
      %1037 = vrot.lane.b32.xlu0 %v759, 88
      %v1038 = vpop.permute.xlu0 %1037
      %v1040 = vsel %vm768, %v1036, 0
      %v1043 = vsel %vm768, %v1038, 0
      %1045 = vmatprep.subr.bf16.mxu0 0
      %1046 = vmatpush1.bf16.xpose.msra.mxu0 %v1043
      %1047 = vmatprep.subr.bf16.mxu0 0
      %1048 = vmatpush1.bf16.xpose.msra.mxu0 0
      %1049 = vmatprep.subr.bf16.mxu0 0
      %1050 = vmatpush1.bf16.xpose.msra.mxu0 0
      %1051 = vmatprep.subr.bf16.mxu0 0
      %1052 = vmatpush1.bf16.xpose.msra.mxu0 0
      %1053 = vmatprep.subr.bf16.mxu0 0
      %1054 = vmatpush1.bf16.xpose.msra.mxu0 0
      %1055 = vmatprep.subr.bf16.mxu0 0
      %1056 = vmatpush1.bf16.xpose.msra.mxu0 0
      %1057 = vmatprep.subr.bf16.mxu0 0
      %1058 = vmatpush1.bf16.xpose.msra.mxu0 0
      %1059 = vmatprep.subr.bf16.mxu0 0
      %1060 = vmatpush1.bf16.xpose.msra.mxu0 0
      %1061 = vmatprep.subr.bf16.mxu0 0
      %1062 = vmatpush1.bf16.xpose.msra.mxu0 0
      %1063 = vmatprep.subr.bf16.mxu0 0
      %1064 = vmatpush1.bf16.xpose.msra.mxu0 0
      %1065 = vmatprep.subr.bf16.mxu0 0
      %1066 = vmatpush1.bf16.xpose.msra.mxu0 0
      %1067 = vmatprep.subr.bf16.mxu0 0
      %1068 = vmatpush1.bf16.xpose.msra.mxu0 0
      %1069 = vmatprep.subr.bf16.mxu0 0
      %1070 = vmatpush1.bf16.xpose.msra.mxu0 0
      %1071 = vmatprep.subr.bf16.mxu0 0
      %1072 = vmatpush1.bf16.xpose.msra.mxu0 0
      %1073 = vmatprep.subr.bf16.mxu0 0
      %1074 = vmatpush1.bf16.xpose.msra.mxu0 0
      %1075 = vmatprep.subr.bf16.mxu0 0
      %1076 = vmatpush1.bf16.xpose.msra.mxu0 0
      %1077 = vmatprep.mubr.bf16.mxu0 0
      %1078 = vmatmul.mubr.bf16.gmra.mrb[0].mxu0 %v1040
      %v1079 = vpop.f32.mrb[0].mxu0
      %v1080 = vadd.f32 0.0, %v1079
      %v1081 = vpop.f32.mrb[0].mxu0
      %v1082 = vpop.f32.mrb[0].mxu0
      %v1083 = vpop.f32.mrb[0].mxu0
      %1084 = vdwg.mxu0
      %v1085 = vsel %vm768, %v1030, -inf
      %1086 = vmax.xlane.f32.xlu0 %v1085
      %v1087 = vpop.xlane.xlu0 %1086
      %v1088 = vsel %vm768, %v1080, -inf
      %1089 = vmax.xlane.f32.xlu0 %v1088
      %v1090 = vpop.xlane.xlu0 %1089
      %v1091 = vsub.f32 %v1030, %v1087
      %v1092 = vsub.f32 %v1080, %v1090
      %v1093 = vmul.f32 %v1091, 1.442695
      %v1094 = vpow.pop %v1093
      %v1095 = vmul.f32 %v1092, 1.442695
      %v1096 = vpow.pop %v1095
      %v1097 = vpack.c.bf16 %v1094, %v1094
      %v1098 = vpack.c.bf16 %v1096, %v1096
      %1099 = vrot.lane.b32.xlu0 %v758, 56
      %v1100 = vpop.permute.xlu0 %1099
      %v1102 = vsel %vm768, %v1097, 0
      %v1105 = vsel %vm882, %v1100, 0
      %1107 = vmatprep.subr.bf16.mxu0 0
      %1108 = vmatpush1.bf16.msra.mxu0 %v1105
      %1109 = vmatprep.subr.bf16.mxu0 0
      %1110 = vmatpush1.bf16.msra.mxu0 0
      %1111 = vmatprep.subr.bf16.mxu0 0
      %1112 = vmatpush1.bf16.msra.mxu0 0
      %1113 = vmatprep.subr.bf16.mxu0 0
      %1114 = vmatpush1.bf16.msra.mxu0 0
      %1115 = vmatprep.subr.bf16.mxu0 0
      %1116 = vmatpush1.bf16.msra.mxu0 0
      %1117 = vmatprep.subr.bf16.mxu0 0
      %1118 = vmatpush1.bf16.msra.mxu0 0
      %1119 = vmatprep.subr.bf16.mxu0 0
      %1120 = vmatpush1.bf16.msra.mxu0 0
      %1121 = vmatprep.subr.bf16.mxu0 0
      %1122 = vmatpush1.bf16.msra.mxu0 0
      %1123 = vmatprep.subr.bf16.mxu0 0
      %1124 = vmatpush1.bf16.msra.mxu0 0
      %1125 = vmatprep.subr.bf16.mxu0 0
      %1126 = vmatpush1.bf16.msra.mxu0 0
      %1127 = vmatprep.subr.bf16.mxu0 0
      %1128 = vmatpush1.bf16.msra.mxu0 0
      %1129 = vmatprep.subr.bf16.mxu0 0
      %1130 = vmatpush1.bf16.msra.mxu0 0
      %1131 = vmatprep.subr.bf16.mxu0 0
      %1132 = vmatpush1.bf16.msra.mxu0 0
      %1133 = vmatprep.subr.bf16.mxu0 0
      %1134 = vmatpush1.bf16.msra.mxu0 0
      %1135 = vmatprep.subr.bf16.mxu0 0
      %1136 = vmatpush1.bf16.msra.mxu0 0
      %1137 = vmatprep.subr.bf16.mxu0 0
      %1138 = vmatpush1.bf16.msra.mxu0 0
      %1139 = vmatprep.mubr.bf16.mxu0 0
      %1140 = vmatmul.mubr.bf16.gmra.mrb[0].mxu0 %v1102
      %v1141 = vpop.f32.mrb[0].mxu0
      %v1142 = vadd.f32 0.0, %v1141
      %v1143 = vpop.f32.mrb[0].mxu0
      %v1144 = vpop.f32.mrb[0].mxu0
      %v1145 = vpop.f32.mrb[0].mxu0
      %1146 = vdwg.mxu0
      %1147 = vrot.lane.b32.xlu0 %v759, 56
      %v1148 = vpop.permute.xlu0 %1147
      %v1150 = vsel %vm768, %v1098, 0
      %v1153 = vsel %vm882, %v1148, 0
      %1155 = vmatprep.subr.bf16.mxu0 0
      %1156 = vmatpush1.bf16.msra.mxu0 %v1153
      %1157 = vmatprep.subr.bf16.mxu0 0
      %1158 = vmatpush1.bf16.msra.mxu0 0
      %1159 = vmatprep.subr.bf16.mxu0 0
      %1160 = vmatpush1.bf16.msra.mxu0 0
      %1161 = vmatprep.subr.bf16.mxu0 0
      %1162 = vmatpush1.bf16.msra.mxu0 0
      %1163 = vmatprep.subr.bf16.mxu0 0
      %1164 = vmatpush1.bf16.msra.mxu0 0
      %1165 = vmatprep.subr.bf16.mxu0 0
      %1166 = vmatpush1.bf16.msra.mxu0 0
      %1167 = vmatprep.subr.bf16.mxu0 0
      %1168 = vmatpush1.bf16.msra.mxu0 0
      %1169 = vmatprep.subr.bf16.mxu0 0
      %1170 = vmatpush1.bf16.msra.mxu0 0
      %1171 = vmatprep.subr.bf16.mxu0 0
      %1172 = vmatpush1.bf16.msra.mxu0 0
      %1173 = vmatprep.subr.bf16.mxu0 0
      %1174 = vmatpush1.bf16.msra.mxu0 0
      %1175 = vmatprep.subr.bf16.mxu0 0
      %1176 = vmatpush1.bf16.msra.mxu0 0
      %1177 = vmatprep.subr.bf16.mxu0 0
      %1178 = vmatpush1.bf16.msra.mxu0 0
      %1179 = vmatprep.subr.bf16.mxu0 0
      %1180 = vmatpush1.bf16.msra.mxu0 0
      %1181 = vmatprep.subr.bf16.mxu0 0
      %1182 = vmatpush1.bf16.msra.mxu0 0
      %1183 = vmatprep.subr.bf16.mxu0 0
      %1184 = vmatpush1.bf16.msra.mxu0 0
      %1185 = vmatprep.subr.bf16.mxu0 0
      %1186 = vmatpush1.bf16.msra.mxu0 0
      %1187 = vmatprep.mubr.bf16.mxu0 0
      %1188 = vmatmul.mubr.bf16.gmra.mrb[0].mxu0 %v1150
      %v1189 = vpop.f32.mrb[0].mxu0
      %v1190 = vadd.f32 0.0, %v1189
      %v1191 = vpop.f32.mrb[0].mxu0
      %v1192 = vpop.f32.mrb[0].mxu0
      %v1193 = vpop.f32.mrb[0].mxu0
      %1194 = vdwg.mxu0
      %v1195 = vsel %vm768, %v1094, 0.0
      %1196 = vadd.xlane.f32.xlu0 %v1195
      %v1197 = vpop.xlane.xlu0 %1196
      %v1198 = vsel %vm768, %v1096, 0.0
      %1199 = vadd.xlane.f32.xlu0 %v1198
      %v1200 = vpop.xlane.xlu0 %1199
      %v1201 = vrcp.pop %v1197
      %v1202 = vrcp.pop %v1200
      %v1203 = vmul.f32 %v1142, %v1201
      %v1204 = vmul.f32 %v1190, %v1202
      %v1205 = vpack.c.bf16 %v1204, %v1203
      %v1207 = vsel %vm768, %v1205, 0
      %v1210 = vsel %vm882, %v763, 0
      %1212 = vmatprep.subr.bf16.mxu0 0
      %1213 = vmatpush1.bf16.msra.mxu0 %v1210
      %1214 = vmatprep.subr.bf16.mxu0 0
      %1215 = vmatpush1.bf16.msra.mxu0 0
      %1216 = vmatprep.subr.bf16.mxu0 0
      %1217 = vmatpush1.bf16.msra.mxu0 0
      %1218 = vmatprep.subr.bf16.mxu0 0
      %1219 = vmatpush1.bf16.msra.mxu0 0
      %1220 = vmatprep.subr.bf16.mxu0 0
      %1221 = vmatpush1.bf16.msra.mxu0 0
      %1222 = vmatprep.subr.bf16.mxu0 0
      %1223 = vmatpush1.bf16.msra.mxu0 0
      %1224 = vmatprep.subr.bf16.mxu0 0
      %1225 = vmatpush1.bf16.msra.mxu0 0
      %1226 = vmatprep.subr.bf16.mxu0 0
      %1227 = vmatpush1.bf16.msra.mxu0 0
      %1228 = vmatprep.subr.bf16.mxu0 0
      %1229 = vmatpush1.bf16.msra.mxu0 0
      %1230 = vmatprep.subr.bf16.mxu0 0
      %1231 = vmatpush1.bf16.msra.mxu0 0
      %1232 = vmatprep.subr.bf16.mxu0 0
      %1233 = vmatpush1.bf16.msra.mxu0 0
      %1234 = vmatprep.subr.bf16.mxu0 0
      %1235 = vmatpush1.bf16.msra.mxu0 0
      %1236 = vmatprep.subr.bf16.mxu0 0
      %1237 = vmatpush1.bf16.msra.mxu0 0
      %1238 = vmatprep.subr.bf16.mxu0 0
      %1239 = vmatpush1.bf16.msra.mxu0 0
      %1240 = vmatprep.subr.bf16.mxu0 0
      %1241 = vmatpush1.bf16.msra.mxu0 0
      %1242 = vmatprep.subr.bf16.mxu0 0
      %1243 = vmatpush1.bf16.msra.mxu0 0
      %1244 = vmatprep.mubr.bf16.mxu0 0
      %1245 = vmatmul.mubr.bf16.gmra.mrb[0].mxu0 %v1207
      %v1246 = vpop.f32.mrb[0].mxu0
      %v1247 = vadd.f32 0.0, %v1246
      %v1248 = vpop.f32.mrb[0].mxu0
      %v1249 = vpop.f32.mrb[0].mxu0
      %v1250 = vadd.f32 0.0, %v1249
      %v1251 = vpop.f32.mrb[0].mxu0
      %1252 = vdwg.mxu0
      %v1254 = vsel %vm768, %v984, 0
      %v1257 = vsel %vm882, %v762, 0
      %1259 = vmatprep.subr.bf16.mxu0 0
      %1260 = vmatpush1.bf16.msra.mxu0 %v1257
      %1261 = vmatprep.subr.bf16.mxu0 0
      %1262 = vmatpush1.bf16.msra.mxu0 0
      %1263 = vmatprep.subr.bf16.mxu0 0
      %1264 = vmatpush1.bf16.msra.mxu0 0
      %1265 = vmatprep.subr.bf16.mxu0 0
      %1266 = vmatpush1.bf16.msra.mxu0 0
      %1267 = vmatprep.subr.bf16.mxu0 0
      %1268 = vmatpush1.bf16.msra.mxu0 0
      %1269 = vmatprep.subr.bf16.mxu0 0
      %1270 = vmatpush1.bf16.msra.mxu0 0
      %1271 = vmatprep.subr.bf16.mxu0 0
      %1272 = vmatpush1.bf16.msra.mxu0 0
      %1273 = vmatprep.subr.bf16.mxu0 0
      %1274 = vmatpush1.bf16.msra.mxu0 0
      %1275 = vmatprep.subr.bf16.mxu0 0
      %1276 = vmatpush1.bf16.msra.mxu0 0
      %1277 = vmatprep.subr.bf16.mxu0 0
      %1278 = vmatpush1.bf16.msra.mxu0 0
      %1279 = vmatprep.subr.bf16.mxu0 0
      %1280 = vmatpush1.bf16.msra.mxu0 0
      %1281 = vmatprep.subr.bf16.mxu0 0
      %1282 = vmatpush1.bf16.msra.mxu0 0
      %1283 = vmatprep.subr.bf16.mxu0 0
      %1284 = vmatpush1.bf16.msra.mxu0 0
      %1285 = vmatprep.subr.bf16.mxu0 0
      %1286 = vmatpush1.bf16.msra.mxu0 0
      %1287 = vmatprep.subr.bf16.mxu0 0
      %1288 = vmatpush1.bf16.msra.mxu0 0
      %1289 = vmatprep.subr.bf16.mxu0 0
      %1290 = vmatpush1.bf16.msra.mxu0 0
      %1291 = vmatprep.mubr.bf16.mxu0 0
      %1292 = vmatmul.mubr.bf16.gmra.mrb[0].mxu0 %v1254
      %v1293 = vpop.f32.mrb[0].mxu0
      %v1294 = vadd.f32 %v1247, %v1293
      %v1295 = vpop.f32.mrb[0].mxu0
      %v1296 = vpop.f32.mrb[0].mxu0
      %v1297 = vadd.f32 %v1250, %v1296
      %v1298 = vpop.f32.mrb[0].mxu0
      %1299 = vdwg.mxu0
      %1300 = vrot.lane.b32.xlu0 %v758, 112
      %v1301 = vpop.permute.xlu0 %1300
      %1302 = vrot.lane.b32.xlu0 %v758, 80
      %v1303 = vpop.permute.xlu0 %1302
      %v1305 = vsel %vm768, %v1301, 0
      %v1308 = vsel %vm768, %v1303, 0
      %1310 = vmatprep.subr.bf16.mxu0 0
      %1311 = vmatpush1.bf16.xpose.msra.mxu0 %v1308
      %1312 = vmatprep.subr.bf16.mxu0 0
      %1313 = vmatpush1.bf16.xpose.msra.mxu0 0
      %1314 = vmatprep.subr.bf16.mxu0 0
      %1315 = vmatpush1.bf16.xpose.msra.mxu0 0
      %1316 = vmatprep.subr.bf16.mxu0 0
      %1317 = vmatpush1.bf16.xpose.msra.mxu0 0
      %1318 = vmatprep.subr.bf16.mxu0 0
      %1319 = vmatpush1.bf16.xpose.msra.mxu0 0
      %1320 = vmatprep.subr.bf16.mxu0 0
      %1321 = vmatpush1.bf16.xpose.msra.mxu0 0
      %1322 = vmatprep.subr.bf16.mxu0 0
      %1323 = vmatpush1.bf16.xpose.msra.mxu0 0
      %1324 = vmatprep.subr.bf16.mxu0 0
      %1325 = vmatpush1.bf16.xpose.msra.mxu0 0
      %1326 = vmatprep.subr.bf16.mxu0 0
      %1327 = vmatpush1.bf16.xpose.msra.mxu0 0
      %1328 = vmatprep.subr.bf16.mxu0 0
      %1329 = vmatpush1.bf16.xpose.msra.mxu0 0
      %1330 = vmatprep.subr.bf16.mxu0 0
      %1331 = vmatpush1.bf16.xpose.msra.mxu0 0
      %1332 = vmatprep.subr.bf16.mxu0 0
      %1333 = vmatpush1.bf16.xpose.msra.mxu0 0
      %1334 = vmatprep.subr.bf16.mxu0 0
      %1335 = vmatpush1.bf16.xpose.msra.mxu0 0
      %1336 = vmatprep.subr.bf16.mxu0 0
      %1337 = vmatpush1.bf16.xpose.msra.mxu0 0
      %1338 = vmatprep.subr.bf16.mxu0 0
      %1339 = vmatpush1.bf16.xpose.msra.mxu0 0
      %1340 = vmatprep.subr.bf16.mxu0 0
      %1341 = vmatpush1.bf16.xpose.msra.mxu0 0
      %1342 = vmatprep.mubr.bf16.mxu0 0
      %1343 = vmatmul.mubr.bf16.gmra.mrb[0].mxu0 %v1305
      %v1344 = vpop.f32.mrb[0].mxu0
      %v1345 = vadd.f32 0.0, %v1344
      %v1346 = vpop.f32.mrb[0].mxu0
      %v1347 = vpop.f32.mrb[0].mxu0
      %v1348 = vpop.f32.mrb[0].mxu0
      %1349 = vdwg.mxu0
      %1350 = vrot.lane.b32.xlu0 %v759, 112
      %v1351 = vpop.permute.xlu0 %1350
      %1352 = vrot.lane.b32.xlu0 %v759, 80
      %v1353 = vpop.permute.xlu0 %1352
      %v1355 = vsel %vm768, %v1351, 0
      %v1358 = vsel %vm768, %v1353, 0
      %1360 = vmatprep.subr.bf16.mxu0 0
      %1361 = vmatpush1.bf16.xpose.msra.mxu0 %v1358
      %1362 = vmatprep.subr.bf16.mxu0 0
      %1363 = vmatpush1.bf16.xpose.msra.mxu0 0
      %1364 = vmatprep.subr.bf16.mxu0 0
      %1365 = vmatpush1.bf16.xpose.msra.mxu0 0
      %1366 = vmatprep.subr.bf16.mxu0 0
      %1367 = vmatpush1.bf16.xpose.msra.mxu0 0
      %1368 = vmatprep.subr.bf16.mxu0 0
      %1369 = vmatpush1.bf16.xpose.msra.mxu0 0
      %1370 = vmatprep.subr.bf16.mxu0 0
      %1371 = vmatpush1.bf16.xpose.msra.mxu0 0
      %1372 = vmatprep.subr.bf16.mxu0 0
      %1373 = vmatpush1.bf16.xpose.msra.mxu0 0
      %1374 = vmatprep.subr.bf16.mxu0 0
      %1375 = vmatpush1.bf16.xpose.msra.mxu0 0
      %1376 = vmatprep.subr.bf16.mxu0 0
      %1377 = vmatpush1.bf16.xpose.msra.mxu0 0
      %1378 = vmatprep.subr.bf16.mxu0 0
      %1379 = vmatpush1.bf16.xpose.msra.mxu0 0
      %1380 = vmatprep.subr.bf16.mxu0 0
      %1381 = vmatpush1.bf16.xpose.msra.mxu0 0
      %1382 = vmatprep.subr.bf16.mxu0 0
      %1383 = vmatpush1.bf16.xpose.msra.mxu0 0
      %1384 = vmatprep.subr.bf16.mxu0 0
      %1385 = vmatpush1.bf16.xpose.msra.mxu0 0
      %1386 = vmatprep.subr.bf16.mxu0 0
      %1387 = vmatpush1.bf16.xpose.msra.mxu0 0
      %1388 = vmatprep.subr.bf16.mxu0 0
      %1389 = vmatpush1.bf16.xpose.msra.mxu0 0
      %1390 = vmatprep.subr.bf16.mxu0 0
      %1391 = vmatpush1.bf16.xpose.msra.mxu0 0
      %1392 = vmatprep.mubr.bf16.mxu0 0
      %1393 = vmatmul.mubr.bf16.gmra.mrb[0].mxu0 %v1355
      %v1394 = vpop.f32.mrb[0].mxu0
      %v1395 = vadd.f32 0.0, %v1394
      %v1396 = vpop.f32.mrb[0].mxu0
      %v1397 = vpop.f32.mrb[0].mxu0
      %v1398 = vpop.f32.mrb[0].mxu0
      %1399 = vdwg.mxu0
      %v1400 = vsel %vm768, %v1345, -inf
      %1401 = vmax.xlane.f32.xlu0 %v1400
      %v1402 = vpop.xlane.xlu0 %1401
      %v1403 = vsel %vm768, %v1395, -inf
      %1404 = vmax.xlane.f32.xlu0 %v1403
      %v1405 = vpop.xlane.xlu0 %1404
      %v1406 = vsub.f32 %v1345, %v1402
      %v1407 = vsub.f32 %v1395, %v1405
      %v1408 = vmul.f32 %v1406, 1.442695
      %v1409 = vpow.pop %v1408
      %v1410 = vmul.f32 %v1407, 1.442695
      %v1411 = vpow.pop %v1410
      %v1412 = vpack.c.bf16 %v1409, %v1409
      %v1413 = vpack.c.bf16 %v1411, %v1411
      %1414 = vrot.lane.b32.xlu0 %v758, 48
      %v1415 = vpop.permute.xlu0 %1414
      %v1417 = vsel %vm768, %v1412, 0
      %v1420 = vsel %vm882, %v1415, 0
      %1422 = vmatprep.subr.bf16.mxu0 0
      %1423 = vmatpush1.bf16.msra.mxu0 %v1420
      %1424 = vmatprep.subr.bf16.mxu0 0
      %1425 = vmatpush1.bf16.msra.mxu0 0
      %1426 = vmatprep.subr.bf16.mxu0 0
      %1427 = vmatpush1.bf16.msra.mxu0 0
      %1428 = vmatprep.subr.bf16.mxu0 0
      %1429 = vmatpush1.bf16.msra.mxu0 0
      %1430 = vmatprep.subr.bf16.mxu0 0
      %1431 = vmatpush1.bf16.msra.mxu0 0
      %1432 = vmatprep.subr.bf16.mxu0 0
      %1433 = vmatpush1.bf16.msra.mxu0 0
      %1434 = vmatprep.subr.bf16.mxu0 0
      %1435 = vmatpush1.bf16.msra.mxu0 0
      %1436 = vmatprep.subr.bf16.mxu0 0
      %1437 = vmatpush1.bf16.msra.mxu0 0
      %1438 = vmatprep.subr.bf16.mxu0 0
      %1439 = vmatpush1.bf16.msra.mxu0 0
      %1440 = vmatprep.subr.bf16.mxu0 0
      %1441 = vmatpush1.bf16.msra.mxu0 0
      %1442 = vmatprep.subr.bf16.mxu0 0
      %1443 = vmatpush1.bf16.msra.mxu0 0
      %1444 = vmatprep.subr.bf16.mxu0 0
      %1445 = vmatpush1.bf16.msra.mxu0 0
      %1446 = vmatprep.subr.bf16.mxu0 0
      %1447 = vmatpush1.bf16.msra.mxu0 0
      %1448 = vmatprep.subr.bf16.mxu0 0
      %1449 = vmatpush1.bf16.msra.mxu0 0
      %1450 = vmatprep.subr.bf16.mxu0 0
      %1451 = vmatpush1.bf16.msra.mxu0 0
      %1452 = vmatprep.subr.bf16.mxu0 0
      %1453 = vmatpush1.bf16.msra.mxu0 0
      %1454 = vmatprep.mubr.bf16.mxu0 0
      %1455 = vmatmul.mubr.bf16.gmra.mrb[0].mxu0 %v1417
      %v1456 = vpop.f32.mrb[0].mxu0
      %v1457 = vadd.f32 0.0, %v1456
      %v1458 = vpop.f32.mrb[0].mxu0
      %v1459 = vpop.f32.mrb[0].mxu0
      %v1460 = vpop.f32.mrb[0].mxu0
      %1461 = vdwg.mxu0
      %1462 = vrot.lane.b32.xlu0 %v759, 48
      %v1463 = vpop.permute.xlu0 %1462
      %v1465 = vsel %vm768, %v1413, 0
      %v1468 = vsel %vm882, %v1463, 0
      %1470 = vmatprep.subr.bf16.mxu0 0
      %1471 = vmatpush1.bf16.msra.mxu0 %v1468
      %1472 = vmatprep.subr.bf16.mxu0 0
      %1473 = vmatpush1.bf16.msra.mxu0 0
      %1474 = vmatprep.subr.bf16.mxu0 0
      %1475 = vmatpush1.bf16.msra.mxu0 0
      %1476 = vmatprep.subr.bf16.mxu0 0
      %1477 = vmatpush1.bf16.msra.mxu0 0
      %1478 = vmatprep.subr.bf16.mxu0 0
      %1479 = vmatpush1.bf16.msra.mxu0 0
      %1480 = vmatprep.subr.bf16.mxu0 0
      %1481 = vmatpush1.bf16.msra.mxu0 0
      %1482 = vmatprep.subr.bf16.mxu0 0
      %1483 = vmatpush1.bf16.msra.mxu0 0
      %1484 = vmatprep.subr.bf16.mxu0 0
      %1485 = vmatpush1.bf16.msra.mxu0 0
      %1486 = vmatprep.subr.bf16.mxu0 0
      %1487 = vmatpush1.bf16.msra.mxu0 0
      %1488 = vmatprep.subr.bf16.mxu0 0
      %1489 = vmatpush1.bf16.msra.mxu0 0
      %1490 = vmatprep.subr.bf16.mxu0 0
      %1491 = vmatpush1.bf16.msra.mxu0 0
      %1492 = vmatprep.subr.bf16.mxu0 0
      %1493 = vmatpush1.bf16.msra.mxu0 0
      %1494 = vmatprep.subr.bf16.mxu0 0
      %1495 = vmatpush1.bf16.msra.mxu0 0
      %1496 = vmatprep.subr.bf16.mxu0 0
      %1497 = vmatpush1.bf16.msra.mxu0 0
      %1498 = vmatprep.subr.bf16.mxu0 0
      %1499 = vmatpush1.bf16.msra.mxu0 0
      %1500 = vmatprep.subr.bf16.mxu0 0
      %1501 = vmatpush1.bf16.msra.mxu0 0
      %1502 = vmatprep.mubr.bf16.mxu0 0
      %1503 = vmatmul.mubr.bf16.gmra.mrb[0].mxu0 %v1465
      %v1504 = vpop.f32.mrb[0].mxu0
      %v1505 = vadd.f32 0.0, %v1504
      %v1506 = vpop.f32.mrb[0].mxu0
      %v1507 = vpop.f32.mrb[0].mxu0
      %v1508 = vpop.f32.mrb[0].mxu0
      %1509 = vdwg.mxu0
      %v1510 = vsel %vm768, %v1409, 0.0
      %1511 = vadd.xlane.f32.xlu0 %v1510
      %v1512 = vpop.xlane.xlu0 %1511
      %v1513 = vsel %vm768, %v1411, 0.0
      %1514 = vadd.xlane.f32.xlu0 %v1513
      %v1515 = vpop.xlane.xlu0 %1514
      %v1516 = vrcp.pop %v1512
      %v1517 = vrcp.pop %v1515
      %v1518 = vmul.f32 %v1457, %v1516
      %v1519 = vmul.f32 %v1505, %v1517
      %v1520 = vpack.c.bf16 %v1519, %v1518
      %v1522 = vsel %vm768, %v1520, 0
      %v1525 = vsel %vm882, %v764, 0
      %1527 = vmatprep.subr.bf16.mxu0 0
      %1528 = vmatpush1.bf16.msra.mxu0 %v1525
      %1529 = vmatprep.subr.bf16.mxu0 0
      %1530 = vmatpush1.bf16.msra.mxu0 0
      %1531 = vmatprep.subr.bf16.mxu0 0
      %1532 = vmatpush1.bf16.msra.mxu0 0
      %1533 = vmatprep.subr.bf16.mxu0 0
      %1534 = vmatpush1.bf16.msra.mxu0 0
      %1535 = vmatprep.subr.bf16.mxu0 0
      %1536 = vmatpush1.bf16.msra.mxu0 0
      %1537 = vmatprep.subr.bf16.mxu0 0
      %1538 = vmatpush1.bf16.msra.mxu0 0
      %1539 = vmatprep.subr.bf16.mxu0 0
      %1540 = vmatpush1.bf16.msra.mxu0 0
      %1541 = vmatprep.subr.bf16.mxu0 0
      %1542 = vmatpush1.bf16.msra.mxu0 0
      %1543 = vmatprep.subr.bf16.mxu0 0
      %1544 = vmatpush1.bf16.msra.mxu0 0
      %1545 = vmatprep.subr.bf16.mxu0 0
      %1546 = vmatpush1.bf16.msra.mxu0 0
      %1547 = vmatprep.subr.bf16.mxu0 0
      %1548 = vmatpush1.bf16.msra.mxu0 0
      %1549 = vmatprep.subr.bf16.mxu0 0
      %1550 = vmatpush1.bf16.msra.mxu0 0
      %1551 = vmatprep.subr.bf16.mxu0 0
      %1552 = vmatpush1.bf16.msra.mxu0 0
      %1553 = vmatprep.subr.bf16.mxu0 0
      %1554 = vmatpush1.bf16.msra.mxu0 0
      %1555 = vmatprep.subr.bf16.mxu0 0
      %1556 = vmatpush1.bf16.msra.mxu0 0
      %1557 = vmatprep.subr.bf16.mxu0 0
      %1558 = vmatpush1.bf16.msra.mxu0 0
      %1559 = vmatprep.mubr.bf16.mxu0 0
      %1560 = vmatmul.mubr.bf16.gmra.mrb[0].mxu0 %v1522
      %v1561 = vpop.f32.mrb[0].mxu0
      %v1562 = vadd.f32 0.0, %v1561
      %v1563 = vpop.f32.mrb[0].mxu0
      %v1564 = vpop.f32.mrb[0].mxu0
      %v1565 = vadd.f32 0.0, %v1564
      %v1566 = vpop.f32.mrb[0].mxu0
      %1567 = vdwg.mxu0
      %v1568 = vadd.f32 %v1294, %v1562
      %v1569 = vadd.f32 %v1297, %v1565
      %1570 = vrot.lane.b32.xlu0 %v758, 104
      %v1571 = vpop.permute.xlu0 %1570
      %1572 = vrot.lane.b32.xlu0 %v758, 72
      %v1573 = vpop.permute.xlu0 %1572
      %v1575 = vsel %vm768, %v1571, 0
      %v1578 = vsel %vm768, %v1573, 0
      %1580 = vmatprep.subr.bf16.mxu0 0
      %1581 = vmatpush1.bf16.xpose.msra.mxu0 %v1578
      %1582 = vmatprep.subr.bf16.mxu0 0
      %1583 = vmatpush1.bf16.xpose.msra.mxu0 0
      %1584 = vmatprep.subr.bf16.mxu0 0
      %1585 = vmatpush1.bf16.xpose.msra.mxu0 0
      %1586 = vmatprep.subr.bf16.mxu0 0
      %1587 = vmatpush1.bf16.xpose.msra.mxu0 0
      %1588 = vmatprep.subr.bf16.mxu0 0
      %1589 = vmatpush1.bf16.xpose.msra.mxu0 0
      %1590 = vmatprep.subr.bf16.mxu0 0
      %1591 = vmatpush1.bf16.xpose.msra.mxu0 0
      %1592 = vmatprep.subr.bf16.mxu0 0
      %1593 = vmatpush1.bf16.xpose.msra.mxu0 0
      %1594 = vmatprep.subr.bf16.mxu0 0
      %1595 = vmatpush1.bf16.xpose.msra.mxu0 0
      %1596 = vmatprep.subr.bf16.mxu0 0
      %1597 = vmatpush1.bf16.xpose.msra.mxu0 0
      %1598 = vmatprep.subr.bf16.mxu0 0
      %1599 = vmatpush1.bf16.xpose.msra.mxu0 0
      %1600 = vmatprep.subr.bf16.mxu0 0
      %1601 = vmatpush1.bf16.xpose.msra.mxu0 0
      %1602 = vmatprep.subr.bf16.mxu0 0
      %1603 = vmatpush1.bf16.xpose.msra.mxu0 0
      %1604 = vmatprep.subr.bf16.mxu0 0
      %1605 = vmatpush1.bf16.xpose.msra.mxu0 0
      %1606 = vmatprep.subr.bf16.mxu0 0
      %1607 = vmatpush1.bf16.xpose.msra.mxu0 0
      %1608 = vmatprep.subr.bf16.mxu0 0
      %1609 = vmatpush1.bf16.xpose.msra.mxu0 0
      %1610 = vmatprep.subr.bf16.mxu0 0
      %1611 = vmatpush1.bf16.xpose.msra.mxu0 0
      %1612 = vmatprep.mubr.bf16.mxu0 0
      %1613 = vmatmul.mubr.bf16.gmra.mrb[0].mxu0 %v1575
      %v1614 = vpop.f32.mrb[0].mxu0
      %v1615 = vadd.f32 0.0, %v1614
      %v1616 = vpop.f32.mrb[0].mxu0
      %v1617 = vpop.f32.mrb[0].mxu0
      %v1618 = vpop.f32.mrb[0].mxu0
      %1619 = vdwg.mxu0
      %1620 = vrot.lane.b32.xlu0 %v759, 104
      %v1621 = vpop.permute.xlu0 %1620
      %1622 = vrot.lane.b32.xlu0 %v759, 72
      %v1623 = vpop.permute.xlu0 %1622
      %v1625 = vsel %vm768, %v1621, 0
      %v1628 = vsel %vm768, %v1623, 0
      %1630 = vmatprep.subr.bf16.mxu0 0
      %1631 = vmatpush1.bf16.xpose.msra.mxu0 %v1628
      %1632 = vmatprep.subr.bf16.mxu0 0
      %1633 = vmatpush1.bf16.xpose.msra.mxu0 0
      %1634 = vmatprep.subr.bf16.mxu0 0
      %1635 = vmatpush1.bf16.xpose.msra.mxu0 0
      %1636 = vmatprep.subr.bf16.mxu0 0
      %1637 = vmatpush1.bf16.xpose.msra.mxu0 0
      %1638 = vmatprep.subr.bf16.mxu0 0
      %1639 = vmatpush1.bf16.xpose.msra.mxu0 0
      %1640 = vmatprep.subr.bf16.mxu0 0
      %1641 = vmatpush1.bf16.xpose.msra.mxu0 0
      %1642 = vmatprep.subr.bf16.mxu0 0
      %1643 = vmatpush1.bf16.xpose.msra.mxu0 0
      %1644 = vmatprep.subr.bf16.mxu0 0
      %1645 = vmatpush1.bf16.xpose.msra.mxu0 0
      %1646 = vmatprep.subr.bf16.mxu0 0
      %1647 = vmatpush1.bf16.xpose.msra.mxu0 0
      %1648 = vmatprep.subr.bf16.mxu0 0
      %1649 = vmatpush1.bf16.xpose.msra.mxu0 0
      %1650 = vmatprep.subr.bf16.mxu0 0
      %1651 = vmatpush1.bf16.xpose.msra.mxu0 0
      %1652 = vmatprep.subr.bf16.mxu0 0
      %1653 = vmatpush1.bf16.xpose.msra.mxu0 0
      %1654 = vmatprep.subr.bf16.mxu0 0
      %1655 = vmatpush1.bf16.xpose.msra.mxu0 0
      %1656 = vmatprep.subr.bf16.mxu0 0
      %1657 = vmatpush1.bf16.xpose.msra.mxu0 0
      %1658 = vmatprep.subr.bf16.mxu0 0
      %1659 = vmatpush1.bf16.xpose.msra.mxu0 0
      %1660 = vmatprep.subr.bf16.mxu0 0
      %1661 = vmatpush1.bf16.xpose.msra.mxu0 0
      %1662 = vmatprep.mubr.bf16.mxu0 0
      %1663 = vmatmul.mubr.bf16.gmra.mrb[0].mxu0 %v1625
      %v1664 = vpop.f32.mrb[0].mxu0
      %v1665 = vadd.f32 0.0, %v1664
      %v1666 = vpop.f32.mrb[0].mxu0
      %v1667 = vpop.f32.mrb[0].mxu0
      %v1668 = vpop.f32.mrb[0].mxu0
      %1669 = vdwg.mxu0
      %v1670 = vsel %vm768, %v1615, -inf
      %1671 = vmax.xlane.f32.xlu0 %v1670
      %v1672 = vpop.xlane.xlu0 %1671
      %v1673 = vsel %vm768, %v1665, -inf
      %1674 = vmax.xlane.f32.xlu0 %v1673
      %v1675 = vpop.xlane.xlu0 %1674
      %v1676 = vsub.f32 %v1615, %v1672
      %v1677 = vsub.f32 %v1665, %v1675
      %v1678 = vmul.f32 %v1676, 1.442695
      %v1679 = vpow.pop %v1678
      %v1680 = vmul.f32 %v1677, 1.442695
      %v1681 = vpow.pop %v1680
      %v1682 = vpack.c.bf16 %v1679, %v1679
      %v1683 = vpack.c.bf16 %v1681, %v1681
      %1684 = vrot.lane.b32.xlu0 %v758, 40
      %v1685 = vpop.permute.xlu0 %1684
      %v1687 = vsel %vm768, %v1682, 0
      %v1690 = vsel %vm882, %v1685, 0
      %1692 = vmatprep.subr.bf16.mxu0 0
      %1693 = vmatpush1.bf16.msra.mxu0 %v1690
      %1694 = vmatprep.subr.bf16.mxu0 0
      %1695 = vmatpush1.bf16.msra.mxu0 0
      %1696 = vmatprep.subr.bf16.mxu0 0
      %1697 = vmatpush1.bf16.msra.mxu0 0
      %1698 = vmatprep.subr.bf16.mxu0 0
      %1699 = vmatpush1.bf16.msra.mxu0 0
      %1700 = vmatprep.subr.bf16.mxu0 0
      %1701 = vmatpush1.bf16.msra.mxu0 0
      %1702 = vmatprep.subr.bf16.mxu0 0
      %1703 = vmatpush1.bf16.msra.mxu0 0
      %1704 = vmatprep.subr.bf16.mxu0 0
      %1705 = vmatpush1.bf16.msra.mxu0 0
      %1706 = vmatprep.subr.bf16.mxu0 0
      %1707 = vmatpush1.bf16.msra.mxu0 0
      %1708 = vmatprep.subr.bf16.mxu0 0
      %1709 = vmatpush1.bf16.msra.mxu0 0
      %1710 = vmatprep.subr.bf16.mxu0 0
      %1711 = vmatpush1.bf16.msra.mxu0 0
      %1712 = vmatprep.subr.bf16.mxu0 0
      %1713 = vmatpush1.bf16.msra.mxu0 0
      %1714 = vmatprep.subr.bf16.mxu0 0
      %1715 = vmatpush1.bf16.msra.mxu0 0
      %1716 = vmatprep.subr.bf16.mxu0 0
      %1717 = vmatpush1.bf16.msra.mxu0 0
      %1718 = vmatprep.subr.bf16.mxu0 0
      %1719 = vmatpush1.bf16.msra.mxu0 0
      %1720 = vmatprep.subr.bf16.mxu0 0
      %1721 = vmatpush1.bf16.msra.mxu0 0
      %1722 = vmatprep.subr.bf16.mxu0 0
      %1723 = vmatpush1.bf16.msra.mxu0 0
      %1724 = vmatprep.mubr.bf16.mxu0 0
      %1725 = vmatmul.mubr.bf16.gmra.mrb[0].mxu0 %v1687
      %v1726 = vpop.f32.mrb[0].mxu0
      %v1727 = vadd.f32 0.0, %v1726
      %v1728 = vpop.f32.mrb[0].mxu0
      %v1729 = vpop.f32.mrb[0].mxu0
      %v1730 = vpop.f32.mrb[0].mxu0
      %1731 = vdwg.mxu0
      %1732 = vrot.lane.b32.xlu0 %v759, 40
      %v1733 = vpop.permute.xlu0 %1732
      %v1735 = vsel %vm768, %v1683, 0
      %v1738 = vsel %vm882, %v1733, 0
      %1740 = vmatprep.subr.bf16.mxu0 0
      %1741 = vmatpush1.bf16.msra.mxu0 %v1738
      %1742 = vmatprep.subr.bf16.mxu0 0
      %1743 = vmatpush1.bf16.msra.mxu0 0
      %1744 = vmatprep.subr.bf16.mxu0 0
      %1745 = vmatpush1.bf16.msra.mxu0 0
      %1746 = vmatprep.subr.bf16.mxu0 0
      %1747 = vmatpush1.bf16.msra.mxu0 0
      %1748 = vmatprep.subr.bf16.mxu0 0
      %1749 = vmatpush1.bf16.msra.mxu0 0
      %1750 = vmatprep.subr.bf16.mxu0 0
      %1751 = vmatpush1.bf16.msra.mxu0 0
      %1752 = vmatprep.subr.bf16.mxu0 0
      %1753 = vmatpush1.bf16.msra.mxu0 0
      %1754 = vmatprep.subr.bf16.mxu0 0
      %1755 = vmatpush1.bf16.msra.mxu0 0
      %1756 = vmatprep.subr.bf16.mxu0 0
      %1757 = vmatpush1.bf16.msra.mxu0 0
      %1758 = vmatprep.subr.bf16.mxu0 0
      %1759 = vmatpush1.bf16.msra.mxu0 0
      %1760 = vmatprep.subr.bf16.mxu0 0
      %1761 = vmatpush1.bf16.msra.mxu0 0
      %1762 = vmatprep.subr.bf16.mxu0 0
      %1763 = vmatpush1.bf16.msra.mxu0 0
      %1764 = vmatprep.subr.bf16.mxu0 0
      %1765 = vmatpush1.bf16.msra.mxu0 0
      %1766 = vmatprep.subr.bf16.mxu0 0
      %1767 = vmatpush1.bf16.msra.mxu0 0
      %1768 = vmatprep.subr.bf16.mxu0 0
      %1769 = vmatpush1.bf16.msra.mxu0 0
      %1770 = vmatprep.subr.bf16.mxu0 0
      %1771 = vmatpush1.bf16.msra.mxu0 0
      %1772 = vmatprep.mubr.bf16.mxu0 0
      %1773 = vmatmul.mubr.bf16.gmra.mrb[0].mxu0 %v1735
      %v1774 = vpop.f32.mrb[0].mxu0
      %v1775 = vadd.f32 0.0, %v1774
      %v1776 = vpop.f32.mrb[0].mxu0
      %v1777 = vpop.f32.mrb[0].mxu0
      %v1778 = vpop.f32.mrb[0].mxu0
      %1779 = vdwg.mxu0
      %v1780 = vsel %vm768, %v1679, 0.0
      %1781 = vadd.xlane.f32.xlu0 %v1780
      %v1782 = vpop.xlane.xlu0 %1781
      %v1783 = vsel %vm768, %v1681, 0.0
      %1784 = vadd.xlane.f32.xlu0 %v1783
      %v1785 = vpop.xlane.xlu0 %1784
      %v1786 = vrcp.pop %v1782
      %v1787 = vrcp.pop %v1785
      %v1788 = vmul.f32 %v1727, %v1786
      %v1789 = vmul.f32 %v1775, %v1787
      %v1790 = vpack.c.bf16 %v1789, %v1788
      %v1792 = vsel %vm768, %v1790, 0
      %v1795 = vsel %vm882, %v765, 0
      %1797 = vmatprep.subr.bf16.mxu0 0
      %1798 = vmatpush1.bf16.msra.mxu0 %v1795
      %1799 = vmatprep.subr.bf16.mxu0 0
      %1800 = vmatpush1.bf16.msra.mxu0 0
      %1801 = vmatprep.subr.bf16.mxu0 0
      %1802 = vmatpush1.bf16.msra.mxu0 0
      %1803 = vmatprep.subr.bf16.mxu0 0
      %1804 = vmatpush1.bf16.msra.mxu0 0
      %1805 = vmatprep.subr.bf16.mxu0 0
      %1806 = vmatpush1.bf16.msra.mxu0 0
      %1807 = vmatprep.subr.bf16.mxu0 0
      %1808 = vmatpush1.bf16.msra.mxu0 0
      %1809 = vmatprep.subr.bf16.mxu0 0
      %1810 = vmatpush1.bf16.msra.mxu0 0
      %1811 = vmatprep.subr.bf16.mxu0 0
      %1812 = vmatpush1.bf16.msra.mxu0 0
      %1813 = vmatprep.subr.bf16.mxu0 0
      %1814 = vmatpush1.bf16.msra.mxu0 0
      %1815 = vmatprep.subr.bf16.mxu0 0
      %1816 = vmatpush1.bf16.msra.mxu0 0
      %1817 = vmatprep.subr.bf16.mxu0 0
      %1818 = vmatpush1.bf16.msra.mxu0 0
      %1819 = vmatprep.subr.bf16.mxu0 0
      %1820 = vmatpush1.bf16.msra.mxu0 0
      %1821 = vmatprep.subr.bf16.mxu0 0
      %1822 = vmatpush1.bf16.msra.mxu0 0
      %1823 = vmatprep.subr.bf16.mxu0 0
      %1824 = vmatpush1.bf16.msra.mxu0 0
      %1825 = vmatprep.subr.bf16.mxu0 0
      %1826 = vmatpush1.bf16.msra.mxu0 0
      %1827 = vmatprep.subr.bf16.mxu0 0
      %1828 = vmatpush1.bf16.msra.mxu0 0
      %1829 = vmatprep.mubr.bf16.mxu0 0
      %1830 = vmatmul.mubr.bf16.gmra.mrb[0].mxu0 %v1792
      %v1831 = vpop.f32.mrb[0].mxu0
      %v1832 = vadd.f32 0.0, %v1831
      %v1833 = vpop.f32.mrb[0].mxu0
      %v1834 = vpop.f32.mrb[0].mxu0
      %v1835 = vadd.f32 0.0, %v1834
      %v1836 = vpop.f32.mrb[0].mxu0
      %1837 = vdwg.mxu0
      %v1838 = vadd.f32 %v1568, %v1832
      %v1839 = vadd.f32 %v1569, %v1835
      %s1840 = scalar_lea.vmem %s35, %s675
      %v1841 = vld [vmem:[%s1840] sm:$0x1]
      %v1843 = vlaneseq
      %v1844 = vshrl.u32 %v1843, 7
      %v1845 = vsub.s32 0, %v1844
      %v1846 = vrot.slane %v1841, %v1845
      %v1848 = vadd.f32 %v1838, %v1846
      %v1849 = vadd.f32 %v1839, %v1846
      %v1850 = vadd.f32 %v680, %v1848
      %v1851 = vadd.f32 %v681, %v1849
      %s1852 = scalar_lea.vmem %s37, %s675
      %v1853 = vld [vmem:[%s1852] sm:$0x1]
      %s1854 = scalar_lea.vmem %s39, %s675
      %v1855 = vld [vmem:[%s1854] sm:$0x1]
      %v1856 = vsel %vm341, %v1850, 0.0
      %1857 = vadd.xlane.f32.xlu0 %v1856
      %v1858 = vpop.xlane.xlu0 %1857
      %v1859 = vsel %vm341, %v1851, 0.0
      %1860 = vadd.xlane.f32.xlu0 %v1859
      %v1861 = vpop.xlane.xlu0 %1860
      %v1862 = vmul.f32 %v1858, %v348
      %v1863 = vmul.f32 %v1861, %v348
      %v1864 = vsub.f32 %v1850, %v1862
      %v1865 = vsub.f32 %v1851, %v1863
      %v1866 = vmul.f32 %v1864, %v1864
      %v1867 = vmul.f32 %v1865, %v1865
      %v1868 = vsel %vm341, %v1866, 0.0
      %1869 = vadd.xlane.f32.xlu0 %v1868
      %v1870 = vpop.xlane.xlu0 %1869
      %v1871 = vsel %vm341, %v1867, 0.0
      %1872 = vadd.xlane.f32.xlu0 %v1871
      %v1873 = vpop.xlane.xlu0 %1872
      %v1874 = vmul.f32 %v1870, %v348
      %v1875 = vmul.f32 %v1873, %v348
      %v1876 = vadd.f32 %v1874, 1e-05
      %v1877 = vadd.f32 %v1875, 1e-05
      %v1878 = vrsqrt.pop %v1876
      %v1879 = vrsqrt.pop %v1877
      %v1880 = vmul.f32 %v1864, %v1878
      %v1881 = vmul.f32 %v1865, %v1879
      %v1883 = vlaneseq
      %v1884 = vshrl.u32 %v1883, 7
      %v1885 = vsub.s32 0, %v1884
      %v1886 = vrot.slane %v1853, %v1885
      %v1888 = vmul.f32 %v1880, %v1886
      %v1889 = vmul.f32 %v1881, %v1886
      %v1891 = vlaneseq
      %v1892 = vshrl.u32 %v1891, 7
      %v1893 = vsub.s32 0, %v1892
      %v1894 = vrot.slane %v1855, %v1893
      %v1896 = vadd.f32 %v1888, %v1894
      %v1897 = vadd.f32 %v1889, %v1894
      %s1898 = smul.addr %s682, 4
      %s1899 = scalar_lea.vmem %s41, %s1898
      %v1900 = vld [vmem:[%s1899] sm:$0xf]
      %v1901 = vld [vmem:[%s1899 + $0x4] sm:$0xf]
      %v1902 = vld [vmem:[%s1899 + $0x8] sm:$0xf]
      %v1903 = vld [vmem:[%s1899 + $0xc] sm:$0xf]
      %s1904 = scalar_lea.vmem %s43, %s675
      %v1905 = vld [vmem:[%s1904] sm:$0x1]
      %v1906 = vpack.c.bf16 %v1897, %v1896
      %v1908 = vlaneseq
      %v1909 = vshrl.u32 %v1908, 7
      %v1910 = vsub.s32 0, %v1909
      %v1911 = vrot.slane %v1905, %v1910
      %v1917 = vunpack.c.l.b16 %v1900
      %v1918 = vunpack.c.l.b16 %v1901
      %v1919 = vunpack.c.l.b16 %v1902
      %v1920 = vunpack.c.l.b16 %v1903
      %v1921 = vpack.c.b16 %v1918, %v1917
      %v1922 = vpack.c.b16 %v1920, %v1919
      %v1926 = vsel %vm341, %v1906, 0
      %1928 = vmatprep.subr.bf16.mxu0 0
      %1929 = vmatpush1.bf16.msra.mxu0 %v1921
      %1930 = vmatprep.subr.bf16.mxu0 0
      %1931 = vmatpush1.bf16.msra.mxu0 %v1922
      %1932 = vmatprep.subr.bf16.mxu0 0
      %1933 = vmatpush1.bf16.msra.mxu0 0
      %1934 = vmatprep.subr.bf16.mxu0 0
      %1935 = vmatpush1.bf16.msra.mxu0 0
      %1936 = vmatprep.subr.bf16.mxu0 0
      %1937 = vmatpush1.bf16.msra.mxu0 0
      %1938 = vmatprep.subr.bf16.mxu0 0
      %1939 = vmatpush1.bf16.msra.mxu0 0
      %1940 = vmatprep.subr.bf16.mxu0 0
      %1941 = vmatpush1.bf16.msra.mxu0 0
      %1942 = vmatprep.subr.bf16.mxu0 0
      %1943 = vmatpush1.bf16.msra.mxu0 0
      %1944 = vmatprep.subr.bf16.mxu0 0
      %1945 = vmatpush1.bf16.msra.mxu0 0
      %1946 = vmatprep.subr.bf16.mxu0 0
      %1947 = vmatpush1.bf16.msra.mxu0 0
      %1948 = vmatprep.subr.bf16.mxu0 0
      %1949 = vmatpush1.bf16.msra.mxu0 0
      %1950 = vmatprep.subr.bf16.mxu0 0
      %1951 = vmatpush1.bf16.msra.mxu0 0
      %1952 = vmatprep.subr.bf16.mxu0 0
      %1953 = vmatpush1.bf16.msra.mxu0 0
      %1954 = vmatprep.subr.bf16.mxu0 0
      %1955 = vmatpush1.bf16.msra.mxu0 0
      %1956 = vmatprep.subr.bf16.mxu0 0
      %1957 = vmatpush1.bf16.msra.mxu0 0
      %1958 = vmatprep.subr.bf16.mxu0 0
      %1959 = vmatpush1.bf16.msra.mxu0 0
      %1960 = vmatprep.mubr.bf16.mxu0 0
      %1961 = vmatmul.mubr.bf16.gmra.mrb[0].mxu0 %v1926
      %v1962 = vpop.f32.mrb[0].mxu0
      %v1963 = vadd.f32 %v1911, %v1962
      %v1964 = vpop.f32.mrb[0].mxu0
      %v1965 = vpop.f32.mrb[0].mxu0
      %v1966 = vadd.f32 %v1911, %v1965
      %v1967 = vpop.f32.mrb[0].mxu0
      %1968 = vdwg.mxu0
      %v1969 = vmax.f32 %v1963, 0.0
      %v1970 = vmax.f32 %v1966, 0.0
      %s1971 = smul.u32 %s675, 8
      %s1972 = smul.addr %s1971, 4
      %s1973 = scalar_lea.vmem %s45, %s1972
      %v1974 = vld [vmem:[%s1973] sm:$0xf]
      %v1975 = vld [vmem:[%s1973 + $0x4] sm:$0xf]
      %v1976 = vld [vmem:[%s1973 + $0x8] sm:$0xf]
      %v1977 = vld [vmem:[%s1973 + $0xc] sm:$0xf]
      %v1978 = vld [vmem:[%s1973 + $0x10] sm:$0xf]
      %v1979 = vld [vmem:[%s1973 + $0x14] sm:$0xf]
      %v1980 = vld [vmem:[%s1973 + $0x18] sm:$0xf]
      %v1981 = vld [vmem:[%s1973 + $0x1c] sm:$0xf]
      %s1982 = scalar_lea.vmem %s47, %s675
      %v1983 = vld [vmem:[%s1982] sm:$0x1]
      %v1984 = vpack.c.bf16 %v1970, %v1969
      %v1986 = vlaneseq
      %v1987 = vshrl.u32 %v1986, 7
      %v1988 = vsub.s32 0, %v1987
      %v1989 = vrot.slane %v1983, %v1988
      %v1999 = vunpack.c.l.b16 %v1974
      %v2000 = vunpack.c.l.b16 %v1975
      %v2001 = vunpack.c.l.b16 %v1976
      %v2002 = vunpack.c.l.b16 %v1977
      %v2003 = vunpack.c.l.b16 %v1978
      %v2004 = vunpack.c.l.b16 %v1979
      %v2005 = vunpack.c.l.b16 %v1980
      %v2006 = vunpack.c.l.b16 %v1981
      %v2007 = vpack.c.b16 %v2000, %v1999
      %v2008 = vpack.c.b16 %v2002, %v2001
      %v2009 = vpack.c.b16 %v2004, %v2003
      %v2010 = vpack.c.b16 %v2006, %v2005
      %vm2015 = vcmask 523264
      %v2017 = vsel %vm2015, %v1984, 0
      %2019 = vmatprep.subr.bf16.mxu0 0
      %2020 = vmatpush1.bf16.msra.mxu0 %v2007
      %2021 = vmatprep.subr.bf16.mxu0 0
      %2022 = vmatpush1.bf16.msra.mxu0 %v2008
      %2023 = vmatprep.subr.bf16.mxu0 0
      %2024 = vmatpush1.bf16.msra.mxu0 %v2009
      %2025 = vmatprep.subr.bf16.mxu0 0
      %2026 = vmatpush1.bf16.msra.mxu0 %v2010
      %2027 = vmatprep.subr.bf16.mxu0 0
      %2028 = vmatpush1.bf16.msra.mxu0 0
      %2029 = vmatprep.subr.bf16.mxu0 0
      %2030 = vmatpush1.bf16.msra.mxu0 0
      %2031 = vmatprep.subr.bf16.mxu0 0
      %2032 = vmatpush1.bf16.msra.mxu0 0
      %2033 = vmatprep.subr.bf16.mxu0 0
      %2034 = vmatpush1.bf16.msra.mxu0 0
      %2035 = vmatprep.subr.bf16.mxu0 0
      %2036 = vmatpush1.bf16.msra.mxu0 0
      %2037 = vmatprep.subr.bf16.mxu0 0
      %2038 = vmatpush1.bf16.msra.mxu0 0
      %2039 = vmatprep.subr.bf16.mxu0 0
      %2040 = vmatpush1.bf16.msra.mxu0 0
      %2041 = vmatprep.subr.bf16.mxu0 0
      %2042 = vmatpush1.bf16.msra.mxu0 0
      %2043 = vmatprep.subr.bf16.mxu0 0
      %2044 = vmatpush1.bf16.msra.mxu0 0
      %2045 = vmatprep.subr.bf16.mxu0 0
      %2046 = vmatpush1.bf16.msra.mxu0 0
      %2047 = vmatprep.subr.bf16.mxu0 0
      %2048 = vmatpush1.bf16.msra.mxu0 0
      %2049 = vmatprep.subr.bf16.mxu0 0
      %2050 = vmatpush1.bf16.msra.mxu0 0
      %2051 = vmatprep.mubr.bf16.mxu0 0
      %2052 = vmatmul.mubr.bf16.gmra.mrb[0].mxu0 %v2017
      %v2053 = vpop.f32.mrb[0].mxu0
      %v2054 = vadd.f32 %v1989, %v2053
      %v2055 = vpop.f32.mrb[0].mxu0
      %v2056 = vpop.f32.mrb[0].mxu0
      %v2057 = vadd.f32 %v1989, %v2056
      %v2058 = vpop.f32.mrb[0].mxu0
      %2059 = vdwg.mxu0
      %v2060 = vadd.f32 %v1896, %v2054
      %v2061 = vadd.f32 %v1897, %v2057
      %s2062 = scalar_lea.vmem %s49, %s675
      %v2063 = vld [vmem:[%s2062] sm:$0x1]
      %s2064 = scalar_lea.vmem %s51, %s675
      %v2065 = vld [vmem:[%s2064] sm:$0x1]
      %v2066 = vsel %vm341, %v2060, 0.0
      %2067 = vadd.xlane.f32.xlu0 %v2066
      %v2068 = vpop.xlane.xlu0 %2067
      %v2069 = vsel %vm341, %v2061, 0.0
      %2070 = vadd.xlane.f32.xlu0 %v2069
      %v2071 = vpop.xlane.xlu0 %2070
      %v2072 = vmul.f32 %v2068, %v348
      %v2073 = vmul.f32 %v2071, %v348
      %v2074 = vsub.f32 %v2060, %v2072
      %v2075 = vsub.f32 %v2061, %v2073
      %v2076 = vmul.f32 %v2074, %v2074
      %v2077 = vmul.f32 %v2075, %v2075
      %v2078 = vsel %vm341, %v2076, 0.0
      %2079 = vadd.xlane.f32.xlu0 %v2078
      %v2080 = vpop.xlane.xlu0 %2079
      %v2081 = vsel %vm341, %v2077, 0.0
      %2082 = vadd.xlane.f32.xlu0 %v2081
      %v2083 = vpop.xlane.xlu0 %2082
      %v2084 = vmul.f32 %v2080, %v348
      %v2085 = vmul.f32 %v2083, %v348
      %v2086 = vadd.f32 %v2084, 1e-05
      %v2087 = vadd.f32 %v2085, 1e-05
      %v2088 = vrsqrt.pop %v2086
      %v2089 = vrsqrt.pop %v2087
      %v2090 = vmul.f32 %v2074, %v2088
      %v2091 = vmul.f32 %v2075, %v2089
      %v2093 = vlaneseq
      %v2094 = vshrl.u32 %v2093, 7
      %v2095 = vsub.s32 0, %v2094
      %v2096 = vrot.slane %v2063, %v2095
      %v2098 = vmul.f32 %v2090, %v2096
      %v2099 = vmul.f32 %v2091, %v2096
      %v2101 = vlaneseq
      %v2102 = vshrl.u32 %v2101, 7
      %v2103 = vsub.s32 0, %v2102
      %v2104 = vrot.slane %v2065, %v2103
      %v2106 = vadd.f32 %v2098, %v2104
      %v2107 = vadd.f32 %v2099, %v2104
    $region194: #{tpu_custom_call.1} parent=1 // loop_footer
      %s679 = sadd.s32 1, %s675
    $region195: #{tpu_custom_call.1} parent=1 // loop_footer_branch
      %674 = sbr.rel target = $region191
    $region196: #{tpu_custom_call.1} parent=1 // loop_exit
      _
    %v2108 = vsel %vm341, %v680, 0.0
    %v2109 = vrot.slane %v2108, 4
    %v2110 = vadd.f32 %v2108, %v2109
    %v2111 = vrot.slane %v2110, 2
    %v2112 = vadd.f32 %v2110, %v2111
    %v2113 = vrot.slane %v2112, 1
    %v2114 = vadd.f32 %v2112, %v2113
    %v2115 = vsel %vm341, %v681, 0.0
    %v2116 = vrot.slane %v2115, 4
    %v2117 = vadd.f32 %v2115, %v2116
    %v2118 = vrot.slane %v2117, 2
    %v2119 = vadd.f32 %v2117, %v2118
    %v2120 = vrot.slane %v2119, 1
    %v2121 = vadd.f32 %v2119, %v2120
    %v2122 = vmul.f32 %v2114, %v399
    %v2123 = vmul.f32 %v2121, %v399
    %v2124 = vmul.f32 %v680, 0.5
    %v2125 = vmul.f32 %v681, 0.5
    %v2126 = vadd.f32 %v2122, %v2124
    %v2127 = vadd.f32 %v2123, %v2125
    %v2128 = vld [vmem:[%s53] sm:$0xf]
    %v2129 = vld [vmem:[%s53 + $0x4] sm:$0xf]
    %v2130 = vld [vmem:[%s53 + $0x8] sm:$0xf]
    %v2131 = vld [vmem:[%s53 + $0xc] sm:$0xf]
    %v2132 = vld [vmem:[%s55] sm:$0x1]
    %v2133 = vpack.c.bf16 %v2126, %v2126
    %v2134 = vpack.c.bf16 %v2127, %v2127
    %v2136 = vlaneseq
    %v2137 = vshrl.u32 %v2136, 7
    %v2138 = vsub.s32 0, %v2137
    %v2139 = vrot.slane %v2132, %v2138
    %v2143 = vunpack.c.l.b16 %v2133
    %v2144 = vunpack.c.l.b16 %v2134
    %v2145 = vrot.slane %v2143, 7
    %v2146 = vrot.slane %v2144, 6
    %v2147 = vsel %vm419, %v2146, %v2145
    %v2148 = vpack.c.b16 %v2147, %v2147
    %v2153 = vunpack.c.l.b16 %v2128
    %v2154 = vunpack.c.l.b16 %v2129
    %v2155 = vunpack.c.l.b16 %v2130
    %v2156 = vunpack.c.l.b16 %v2131
    %v2157 = vpack.c.b16 %v2154, %v2153
    %v2158 = vpack.c.b16 %v2156, %v2155
    %v2162 = vsel %vm341, %v2148, 0
    %2164 = vmatprep.subr.bf16.mxu0 0
    %2165 = vmatpush1.bf16.msra.mxu0 %v2157
    %2166 = vmatprep.subr.bf16.mxu0 0
    %2167 = vmatpush1.bf16.msra.mxu0 %v2158
    %2168 = vmatprep.subr.bf16.mxu0 0
    %2169 = vmatpush1.bf16.msra.mxu0 0
    %2170 = vmatprep.subr.bf16.mxu0 0
    %2171 = vmatpush1.bf16.msra.mxu0 0
    %2172 = vmatprep.subr.bf16.mxu0 0
    %2173 = vmatpush1.bf16.msra.mxu0 0
    %2174 = vmatprep.subr.bf16.mxu0 0
    %2175 = vmatpush1.bf16.msra.mxu0 0
    %2176 = vmatprep.subr.bf16.mxu0 0
    %2177 = vmatpush1.bf16.msra.mxu0 0
    %2178 = vmatprep.subr.bf16.mxu0 0
    %2179 = vmatpush1.bf16.msra.mxu0 0
    %2180 = vmatprep.subr.bf16.mxu0 0
    %2181 = vmatpush1.bf16.msra.mxu0 0
    %2182 = vmatprep.subr.bf16.mxu0 0
    %2183 = vmatpush1.bf16.msra.mxu0 0
    %2184 = vmatprep.subr.bf16.mxu0 0
    %2185 = vmatpush1.bf16.msra.mxu0 0
    %2186 = vmatprep.subr.bf16.mxu0 0
    %2187 = vmatpush1.bf16.msra.mxu0 0
    %2188 = vmatprep.subr.bf16.mxu0 0
    %2189 = vmatpush1.bf16.msra.mxu0 0
    %2190 = vmatprep.subr.bf16.mxu0 0
    %2191 = vmatpush1.bf16.msra.mxu0 0
    %2192 = vmatprep.subr.bf16.mxu0 0
    %2193 = vmatpush1.bf16.msra.mxu0 0
    %2194 = vmatprep.subr.bf16.mxu0 0
    %2195 = vmatpush1.bf16.msra.mxu0 0
    %2196 = vmatprep.mubr.bf16.mxu0 0
    %2197 = vmatmul.mubr.bf16.gmra.mrb[0].mxu0 %v2162
    %v2198 = vpop.f32.mrb[0].mxu0
    %v2199 = vadd.f32 %v2139, %v2198
    %v2200 = vpop.f32.mrb[0].mxu0
    %v2201 = vpop.f32.mrb[0].mxu0
    %v2202 = vpop.f32.mrb[0].mxu0
    %2203 = vdwg.mxu0
    %v2204 = vld [vmem:[%s57] sm:$0x1]
    %v2205 = vld [vmem:[%s59] sm:$0x1]
    %vm2206 = vcmask 517120
    %v2207 = vsel %vm2206, %v2199, 0.0
    %2208 = vadd.xlane.f32.xlu0 %v2207
    %v2209 = vpop.xlane.xlu0 %2208
    %v2210 = vrcp.pop 64.0
    %v2211 = vmul.f32 %v2209, %v2210
    %v2212 = vsub.f32 %v2199, %v2211
    %v2213 = vmul.f32 %v2212, %v2212
    %v2214 = vsel %vm2206, %v2213, 0.0
    %2215 = vadd.xlane.f32.xlu0 %v2214
    %v2216 = vpop.xlane.xlu0 %2215
    %v2217 = vmul.f32 %v2216, %v2210
    %v2218 = vadd.f32 %v2217, 1e-05
    %v2219 = vrsqrt.pop %v2218
    %v2220 = vmul.f32 %v2212, %v2219
    %v2222 = vlaneseq
    %v2223 = vshrl.u32 %v2222, 7
    %v2224 = vsub.s32 0, %v2223
    %v2225 = vrot.slane %v2204, %v2224
    %v2227 = vmul.f32 %v2220, %v2225
    %v2229 = vlaneseq
    %v2230 = vshrl.u32 %v2229, 7
    %v2231 = vsub.s32 0, %v2230
    %v2232 = vrot.slane %v2205, %v2231
    %v2234 = vadd.f32 %v2227, %v2232
    %v2235 = vmax.f32 %v2234, 0.0
    %v2236 = vld [vmem:[%s61] sm:$0xf]
    %v2237 = vld [vmem:[%s61 + $0x4] sm:$0xf]
    %v2238 = vld [vmem:[%s61 + $0x8] sm:$0xf]
    %v2239 = vld [vmem:[%s61 + $0xc] sm:$0xf]
    %v2240 = vld [vmem:[%s61 + $0x10] sm:$0xf]
    %v2241 = vld [vmem:[%s61 + $0x14] sm:$0xf]
    %v2242 = vld [vmem:[%s61 + $0x18] sm:$0xf]
    %v2243 = vld [vmem:[%s61 + $0x1c] sm:$0xf]
    %v2244 = vld [vmem:[%s63] sm:$0x1]
    %v2245 = vpack.c.bf16 %v2235, %v2235
    %v2247 = vlaneseq
    %v2248 = vshrl.u32 %v2247, 7
    %v2249 = vsub.s32 0, %v2248
    %v2250 = vrot.slane %v2244, %v2249
    %v2260 = vunpack.c.l.b16 %v2236
    %v2261 = vunpack.c.l.b16 %v2237
    %v2262 = vunpack.c.l.b16 %v2238
    %v2263 = vunpack.c.l.b16 %v2239
    %v2264 = vunpack.c.l.b16 %v2240
    %v2265 = vunpack.c.l.b16 %v2241
    %v2266 = vunpack.c.l.b16 %v2242
    %v2267 = vunpack.c.l.b16 %v2243
    %v2268 = vpack.c.b16 %v2261, %v2260
    %v2269 = vpack.c.b16 %v2263, %v2262
    %v2270 = vpack.c.b16 %v2265, %v2264
    %v2271 = vpack.c.b16 %v2267, %v2266
    %vm2276 = vcmask 523264
    %v2278 = vsel %vm2276, %v2245, 0
    %2280 = vmatprep.subr.bf16.mxu0 0
    %2281 = vmatpush1.bf16.msra.mxu0 %v2268
    %2282 = vmatprep.subr.bf16.mxu0 0
    %2283 = vmatpush1.bf16.msra.mxu0 %v2269
    %2284 = vmatprep.subr.bf16.mxu0 0
    %2285 = vmatpush1.bf16.msra.mxu0 %v2270
    %2286 = vmatprep.subr.bf16.mxu0 0
    %2287 = vmatpush1.bf16.msra.mxu0 %v2271
    %2288 = vmatprep.subr.bf16.mxu0 0
    %2289 = vmatpush1.bf16.msra.mxu0 0
    %2290 = vmatprep.subr.bf16.mxu0 0
    %2291 = vmatpush1.bf16.msra.mxu0 0
    %2292 = vmatprep.subr.bf16.mxu0 0
    %2293 = vmatpush1.bf16.msra.mxu0 0
    %2294 = vmatprep.subr.bf16.mxu0 0
    %2295 = vmatpush1.bf16.msra.mxu0 0
    %2296 = vmatprep.subr.bf16.mxu0 0
    %2297 = vmatpush1.bf16.msra.mxu0 0
    %2298 = vmatprep.subr.bf16.mxu0 0
    %2299 = vmatpush1.bf16.msra.mxu0 0
    %2300 = vmatprep.subr.bf16.mxu0 0
    %2301 = vmatpush1.bf16.msra.mxu0 0
    %2302 = vmatprep.subr.bf16.mxu0 0
    %2303 = vmatpush1.bf16.msra.mxu0 0
    %2304 = vmatprep.subr.bf16.mxu0 0
    %2305 = vmatpush1.bf16.msra.mxu0 0
    %2306 = vmatprep.subr.bf16.mxu0 0
    %2307 = vmatpush1.bf16.msra.mxu0 0
    %2308 = vmatprep.subr.bf16.mxu0 0
    %2309 = vmatpush1.bf16.msra.mxu0 0
    %2310 = vmatprep.subr.bf16.mxu0 0
    %2311 = vmatpush1.bf16.msra.mxu0 0
    %2312 = vmatprep.mubr.bf16.mxu0 0
    %2313 = vmatmul.mubr.bf16.gmra.mrb[0].mxu0 %v2278
    %v2314 = vpop.f32.mrb[0].mxu0
    %v2315 = vadd.f32 %v2250, %v2314
    %v2316 = vpop.f32.mrb[0].mxu0
    %v2317 = vpop.f32.mrb[0].mxu0
    %v2318 = vpop.f32.mrb[0].mxu0
    %2319 = vdwg.mxu0
    %v2320 = vld [vmem:[%s65] sm:$0x1]
    %v2321 = vld [vmem:[%s67] sm:$0x1]
    %v2322 = vsel %vm479, %v2315, 0.0
    %2323 = vadd.xlane.f32.xlu0 %v2322
    %v2324 = vpop.xlane.xlu0 %2323
    %v2325 = vmul.f32 %v2324, %v348
    %v2326 = vsub.f32 %v2315, %v2325
    %v2327 = vmul.f32 %v2326, %v2326
    %v2328 = vsel %vm479, %v2327, 0.0
    %2329 = vadd.xlane.f32.xlu0 %v2328
    %v2330 = vpop.xlane.xlu0 %2329
    %v2331 = vmul.f32 %v2330, %v348
    %v2332 = vadd.f32 %v2331, 1e-05
    %v2333 = vrsqrt.pop %v2332
    %v2334 = vmul.f32 %v2326, %v2333
    %v2336 = vlaneseq
    %v2337 = vshrl.u32 %v2336, 7
    %v2338 = vsub.s32 0, %v2337
    %v2339 = vrot.slane %v2320, %v2338
    %v2341 = vmul.f32 %v2334, %v2339
    %v2343 = vlaneseq
    %v2344 = vshrl.u32 %v2343, 7
    %v2345 = vsub.s32 0, %v2344
    %v2346 = vrot.slane %v2321, %v2345
    %v2348 = vadd.f32 %v2341, %v2346
    %v2349 = vmax.f32 %v2348, 0.0
    %v2350 = vld [vmem:[%s69] sm:$0xf]
    %v2351 = vld [vmem:[%s69 + $0x4] sm:$0xf]
    %v2352 = vld [vmem:[%s69 + $0x8] sm:$0xf]
    %v2353 = vld [vmem:[%s69 + $0xc] sm:$0xf]
    %v2354 = vld [vmem:[%s71] sm:$0x1]
    %v2355 = vpack.c.bf16 %v2349, %v2349
    %v2357 = vlaneseq
    %v2358 = vshrl.u32 %v2357, 7
    %v2359 = vsub.s32 0, %v2358
    %v2360 = vrot.slane %v2354, %v2359
    %v2366 = vunpack.c.l.b16 %v2350
    %v2367 = vunpack.c.l.b16 %v2351
    %v2368 = vunpack.c.l.b16 %v2352
    %v2369 = vunpack.c.l.b16 %v2353
    %v2370 = vpack.c.b16 %v2367, %v2366
    %v2371 = vpack.c.b16 %v2369, %v2368
    %v2375 = vsel %vm341, %v2355, 0
    %2377 = vmatprep.subr.bf16.mxu0 0
    %2378 = vmatpush1.bf16.msra.mxu0 %v2370
    %2379 = vmatprep.subr.bf16.mxu0 0
    %2380 = vmatpush1.bf16.msra.mxu0 %v2371
    %2381 = vmatprep.subr.bf16.mxu0 0
    %2382 = vmatpush1.bf16.msra.mxu0 0
    %2383 = vmatprep.subr.bf16.mxu0 0
    %2384 = vmatpush1.bf16.msra.mxu0 0
    %2385 = vmatprep.subr.bf16.mxu0 0
    %2386 = vmatpush1.bf16.msra.mxu0 0
    %2387 = vmatprep.subr.bf16.mxu0 0
    %2388 = vmatpush1.bf16.msra.mxu0 0
    %2389 = vmatprep.subr.bf16.mxu0 0
    %2390 = vmatpush1.bf16.msra.mxu0 0
    %2391 = vmatprep.subr.bf16.mxu0 0
    %2392 = vmatpush1.bf16.msra.mxu0 0
    %2393 = vmatprep.subr.bf16.mxu0 0
    %2394 = vmatpush1.bf16.msra.mxu0 0
    %2395 = vmatprep.subr.bf16.mxu0 0
    %2396 = vmatpush1.bf16.msra.mxu0 0
    %2397 = vmatprep.subr.bf16.mxu0 0
    %2398 = vmatpush1.bf16.msra.mxu0 0
    %2399 = vmatprep.subr.bf16.mxu0 0
    %2400 = vmatpush1.bf16.msra.mxu0 0
    %2401 = vmatprep.subr.bf16.mxu0 0
    %2402 = vmatpush1.bf16.msra.mxu0 0
    %2403 = vmatprep.subr.bf16.mxu0 0
    %2404 = vmatpush1.bf16.msra.mxu0 0
    %2405 = vmatprep.subr.bf16.mxu0 0
    %2406 = vmatpush1.bf16.msra.mxu0 0
    %2407 = vmatprep.subr.bf16.mxu0 0
    %2408 = vmatpush1.bf16.msra.mxu0 0
    %2409 = vmatprep.mubr.bf16.mxu0 0
    %2410 = vmatmul.mubr.bf16.gmra.mrb[0].mxu0 %v2375
    %v2411 = vpop.f32.mrb[0].mxu0
    %v2412 = vadd.f32 %v2360, %v2411
    %v2413 = vpop.f32.mrb[0].mxu0
    %v2414 = vpop.f32.mrb[0].mxu0
    %v2415 = vpop.f32.mrb[0].mxu0
    %2416 = vdwg.mxu0
    %2417 = vst [vmem:[#allocation20] sm:$0x3] %v2412
    // Predicated region
    $region197: #{tpu_custom_call.1} parent=1 // pred_check
      _
    $region198: #{tpu_custom_call.1} parent=1 // pred_check_branch
      %2419 = sbr.rel (0) target = $region200
    $region199: #{tpu_custom_call.1} parent=1 // pred_region
      %s2421 = ssub.s32 32, 32
      %2422 = vsyncadd [#allocation4], %s2421
      %s2424 = sshll.u32 [#allocation20], 4
      %s2425 = int_to_ptr.vmem [resolvable:$true] %s2424
      %2427 = dma.vmem_to_hbm [thread:$0]  %s2425, 32, %s73, [#allocation4]
    $region200: #{tpu_custom_call.1} parent=1 // pred_fallthru
      _
    // Predicated region
    $region201: #{tpu_custom_call.1} parent=1 // pred_check
      _
    $region202: #{tpu_custom_call.1} parent=1 // pred_check_branch
      %2429 = sbr.rel (0) target = $region204
    $region203: #{tpu_custom_call.1} parent=1 // pred_region
      %2430 = dma.done [#allocation4], 32
    $region204: #{tpu_custom_call.1} parent=1 // pred_fallthru
      _
    %2431 = vsyncpa [#allocation3], 1
    %2432 = vsyncpa [#allocation6], 1
    %2433 = vsyncpa [#allocation9], 1
    %2434 = vsyncpa [#allocation12], 1
    %2435 = vsyncpa [#allocation15], 1
    %2436 = vsyncpa [#allocation18], 1
    %2437 = vsyncpa [#allocation4], 1

</llo_original>
